<compile_context>
chip_gen: v5e
topology: v5e:2x2
jax: 0.10.0
libtpu: 0.0.40
codegen_flags: <defaults>
</compile_context>

<pallas_src>
import jax
import jax.numpy as jnp
from jax.experimental import pallas as pl
from jax.experimental.pallas import tpu as pltpu


_MOSAIC = dict(vmem_limit_bytes=32 * 1024 * 1024)   # explicit scoped-VMEM budget


# ----------------------------------------------------------------------------
# helpers
# ----------------------------------------------------------------------------
def _round_up(x, m):
    return (x + m - 1) // m * m


def _bn_affine(bn, eps=1e-5):
    scale = bn["gamma"] / jnp.sqrt(bn["var"] + eps)
    shift = bn["beta"] - bn["mean"] * scale
    return scale, shift


def _col(v, dtype=jnp.float32):
    v = jnp.asarray(v, dtype)
    return v.reshape(v.shape[0], 1)


def _slab_geometry(H, W):
    """Flat per-image slab geometry for the shifted-window conv."""
    Hp, Wp = H + 2, W + 2                        # conv zero-pad ring
    P = Hp * Wp                                  # padded image, flattened
    guard = _round_up(Wp + 1, 128)               # left guard >= largest tap shift
    So = _round_up(P, 128)                       # output slab width (lane-dense)
    Si = _round_up(guard + (Wp + 1) + So, 128)   # input slab incl. both guards
    return Hp, Wp, P, guard, So, Si


def _to_slab(x, guard, si, dtype):
    """(N,C,H,W) -> (N,C,Si): conv pad ring + guards; image at [guard, guard+P)."""
    N, C, H, W = x.shape
    xp = jnp.pad(x, ((0, 0), (0, 0), (1, 1), (1, 1)))
    flat = xp.reshape(N, C, (H + 2) * (W + 2))
    flat = jnp.pad(flat, ((0, 0), (0, 0), (guard, si - guard - (H + 2) * (W + 2))))
    return flat.astype(dtype)


def _interior_mask(H, W, guard, si):
    """(1, Si) mask: 1.0 on original pixels, 0.0 on conv-pad ring / guards."""
    Hp, Wp = H + 2, W + 2
    yy = jax.lax.broadcasted_iota(jnp.int32, (Hp, Wp), 0)
    xx = jax.lax.broadcasted_iota(jnp.int32, (Hp, Wp), 1)
    inside = ((yy >= 1) & (yy <= H) & (xx >= 1) & (xx <= W)).astype(jnp.float32)
    flat = inside.reshape(1, Hp * Wp)
    return jnp.pad(flat, ((0, 0), (guard, si - guard - Hp * Wp)))


def _taps(w):
    """(Cout,Cin,3,3) -> (9,Cout,Cin) bf16, tap order k = 3*di + dj."""
    Cout, Cin, kh, kw = w.shape
    return w.transpose(2, 3, 0, 1).reshape(kh * kw, Cout, Cin).astype(jnp.bfloat16)


# ----------------------------------------------------------------------------
# Kernel 1: encoder branch  BN -> ReLU -> Conv3x3 (bias), bf16 output
# ----------------------------------------------------------------------------
def _make_encoder_kernel(Wp, So, guard, n_out):
    offs = [guard + (di - 1) * Wp + (dj - 1) for di in range(3) for dj in range(3)]

    def kernel(a_ref, mask_ref, s_ref, h_ref, w_ref, b_ref, o_ref, pre_ref):
        # BN + ReLU fused on the conv input; mask re-zeroes pad ring / guards.
        x = a_ref[0].astype(jnp.float32)                               # (Cin, Si)
        pre = jnp.maximum(x * s_ref[...] + h_ref[...], 0.0) * mask_ref[...]
        pre_ref[...] = pre.astype(jnp.bfloat16)
        # 3x3 conv = 9 statically shifted (Cout,Cin)@(Cin,So) dots, f32 acc,
        # no K padding and no K grid axis.
        acc = jnp.zeros((n_out, So), jnp.float32)
        for k, off in enumerate(offs):
            acc = acc + jnp.dot(w_ref[k], pre_ref[:, off:off + So],
                                preferred_element_type=jnp.float32)
        o_ref[0] = (acc + b_ref[...]).astype(o_ref.dtype)

    return kernel


# ----------------------------------------------------------------------------
# Kernel 2: decoder conv + maxpool-add + attn BN/ReLU + 1x1 conv + (* x2)
# ----------------------------------------------------------------------------
def _make_fused_decoder_kernel(Wp, So, guard, n_out):
    offs = [guard + (di - 1) * Wp + (dj - 1) for di in range(3) for dj in range(3)]

    def kernel(a_ref, enc4_ref, mask_ref, sd_ref, hd_ref, w_ref, b_ref,
               sa_ref, ha_ref, wa_ref, ba_ref, o_ref, pre_ref):
        x = a_ref[0]                                                   # (Cd, Si) f32
        # decoder BN + ReLU (+ pad-ring re-zero), bf16 for the MXU taps
        pre = jnp.maximum(x * sd_ref[...] + hd_ref[...], 0.0) * mask_ref[...]
        pre_ref[...] = pre.astype(jnp.bfloat16)
        # decoder 3x3 conv
        acc = jnp.zeros((n_out, So), jnp.float32)
        for k, off in enumerate(offs):
            acc = acc + jnp.dot(w_ref[k], pre_ref[:, off:off + So],
                                preferred_element_type=jnp.float32)
        dec = acc + b_ref[...]                                         # (D, So)
        # 2x2 max-pool of the encoder conv (phase-major layout, read once)
        encp = jnp.max(enc4_ref[0].astype(jnp.float32), axis=0)        # (D, So)
        # attention BN + ReLU
        y = jnp.maximum((encp + dec) * sa_ref[...] + ha_ref[...], 0.0)
        # 1x1 attention conv as VPU multiply + sublane reduce over D (D is tiny)
        attn = jnp.sum(y * wa_ref[...], axis=0, keepdims=True) + ba_ref[...]
        # broadcast multiply with the raw f32 x2 (same slab, shifted by guard)
        o_ref[0] = (attn * x[:, guard:guard + So]).astype(o_ref.dtype)

    return kernel


# ----------------------------------------------------------------------------
# AttentionBlock forward
# ----------------------------------------------------------------------------
def attention_block_forward(params, x1, x2):
    N, Ce, H1, W1 = x1.shape
    N2, Cd, H2, W2 = x2.shape
    assert N == N2 and H1 == 2 * H2 and W1 == 2 * W2, \
        "encoder feature map must be 2x the decoder feature map"
    # conv_decoder's BatchNorm2d(input_encoder) is applied to x2 (input_decoder
    # channels) in the reference module; only valid when the two sizes match.
    assert Ce == Cd, "AttentionBlock requires input_encoder == input_decoder"
    D = params["conv_enc"]["w"].shape[0]

    Hp1, Wp1, P1, G1, So1, Si1 = _slab_geometry(H1, W1)
    Hp2, Wp2, P2, G2, So2, Si2 = _slab_geometry(H2, W2)

    # ----------------- kernel 1: encoder BN + ReLU + Conv3x3 ----------------
    s_enc, h_enc = _bn_affine(params["bn_enc"])
    a1 = _to_slab(x1, G1, Si1, jnp.bfloat16)
    m1 = _interior_mask(H1, W1, G1, Si1)
    w1 = _taps(params["conv_enc"]["w"])

    enc_slab = pl.pallas_call(
        _make_encoder_kernel(Wp1, So1, G1, D),
        out_shape=jax.ShapeDtypeStruct((N, D, So1), jnp.bfloat16),
        grid=(N,),
        in_specs=[
            pl.BlockSpec((1, Ce, Si1), lambda n: (n, 0, 0)),
            pl.BlockSpec((1, Si1), lambda n: (0, 0)),
            pl.BlockSpec((Ce, 1), lambda n: (0, 0)),
            pl.BlockSpec((Ce, 1), lambda n: (0, 0)),
            pl.BlockSpec((9, D, Ce), lambda n: (0, 0, 0)),
            pl.BlockSpec((D, 1), lambda n: (0, 0)),
        ],
        out_specs=pl.BlockSpec((1, D, So1), lambda n: (n, 0, 0)),
        scratch_shapes=[pltpu.VMEM((Ce, Si1), jnp.bfloat16)],
        compiler_params=pltpu.CompilerParams(
            dimension_semantics=("parallel",), **_MOSAIC),
    )(a1, m1, _col(s_enc), _col(h_enc), w1, _col(params["conv_enc"]["b"]))

    # -------- XLA glue: stride-2 decimation into the 4 pool phases ----------
    # TODO(synk): this re-layout (and the slab packing above) stays in XLA;
    # the 2x2 max itself happens inside kernel 2.
    enc_conv = enc_slab[:, :, :P1].reshape(N, D, Hp1, Wp1)[:, :, 1:1 + H1, 1:1 + W1]
    phases = jnp.stack([enc_conv[:, :, dy::2, dx::2]
                        for dy in (0, 1) for dx in (0, 1)], axis=1)  # (N,4,D,H2,W2)
    phases = jnp.pad(phases, ((0, 0), (0, 0), (0, 0), (1, 1), (1, 1)))
    enc4 = phases.reshape(N, 4, D, P2)
    enc4 = jnp.pad(enc4, ((0, 0), (0, 0), (0, 0), (0, So2 - P2)))    # (N,4,D,So2) bf16

    # ---- kernel 2: decoder conv + pool-add + attn BN/ReLU/1x1 + mul x2 -----
    s_dec, h_dec = _bn_affine(params["bn_dec"])
    s_att, h_att = _bn_affine(params["bn_attn"])
    a2 = _to_slab(x2, G2, Si2, jnp.float32)      # f32: reused for the final multiply
    m2 = _interior_mask(H2, W2, G2, Si2)
    w2 = _taps(params["conv_dec"]["w"])
    wa = jnp.asarray(params["conv_attn"]["w"], jnp.float32).reshape(D, 1)
    ba = jnp.asarray(params["conv_attn"]["b"], jnp.float32).reshape(1, 1)

    out_slab = pl.pallas_call(
        _make_fused_decoder_kernel(Wp2, So2, G2, D),
        out_shape=jax.ShapeDtypeStruct((N, Cd, So2), jnp.float32),
        grid=(N,),
        in_specs=[
            pl.BlockSpec((1, Cd, Si2), lambda n: (n, 0, 0)),
            pl.BlockSpec((1, 4, D, So2), lambda n: (n, 0, 0, 0)),
            pl.BlockSpec((1, Si2), lambda n: (0, 0)),
            pl.BlockSpec((Cd, 1), lambda n: (0, 0)),
            pl.BlockSpec((Cd, 1), lambda n: (0, 0)),
            pl.BlockSpec((9, D, Cd), lambda n: (0, 0, 0)),
            pl.BlockSpec((D, 1), lambda n: (0, 0)),
            pl.BlockSpec((D, 1), lambda n: (0, 0)),
            pl.BlockSpec((D, 1), lambda n: (0, 0)),
            pl.BlockSpec((D, 1), lambda n: (0, 0)),
            pl.BlockSpec((1, 1), lambda n: (0, 0)),
        ],
        out_specs=pl.BlockSpec((1, Cd, So2), lambda n: (n, 0, 0)),
        scratch_shapes=[pltpu.VMEM((Cd, Si2), jnp.bfloat16)],
        compiler_params=pltpu.CompilerParams(
            dimension_semantics=("parallel",), **_MOSAIC),
    )(a2, enc4, m2, _col(s_dec), _col(h_dec), w2, _col(params["conv_dec"]["b"]),
      _col(s_att), _col(h_att), wa, ba)

    out = out_slab[:, :, :P2].reshape(N, Cd, Hp2, Wp2)[:, :, 1:1 + H2, 1:1 + W2]
    return out


# ----------------------------------------------------------------------------
# plain-JAX reference (numerical sanity check)
# ----------------------------------------------------------------------------
def _reference_forward(params, x1, x2):
    def bn(x, p):
        s, b = _bn_affine(p)
        return x * s[None, :, None, None] + b[None, :, None, None]

    def conv(x, w, b, pad):
        y = jax.lax.conv_general_dilated(
            x, w, (1, 1), [(pad, pad), (pad, pad)],
            dimension_numbers=("NCHW", "OIHW", "NCHW"),
            precision=jax.lax.Precision.HIGHEST)
        return y + b[None, :, None, None]

    enc = jax.nn.relu(bn(x1, params["bn_enc"]))
    enc = conv(enc, params["conv_enc"]["w"], params["conv_enc"]["b"], 1)
    enc = jax.lax.reduce_window(enc, -jnp.inf, jax.lax.max,
                                (1, 1, 2, 2), (1, 1, 2, 2), "VALID")
    dec = jax.nn.relu(bn(x2, params["bn_dec"]))
    dec = conv(dec, params["conv_dec"]["w"], params["conv_dec"]["b"], 1)
    out = jax.nn.relu(bn(enc + dec, params["bn_attn"]))
    out = conv(out, params["conv_attn"]["w"], params["conv_attn"]["b"], 0)
    return out * x2


# ----------------------------------------------------------------------------
# deterministic parameters + demo
# ----------------------------------------------------------------------------
class PInit:
    def __init__(self, key):
        self.key = key

    def take(self, shape, scale=0.1):
        self.key, sub = jax.random.split(self.key)
        return (scale * jax.random.normal(sub, shape)).astype(jnp.float32)


def make_params(key, input_encoder, input_decoder, output_dim):
    pg = PInit(key)

    def conv(cout, cin, k):
        return {"w": pg.take((cout, cin, k, k)), "b": pg.take((cout,), 0.05)}

    def bn(c):
        return {"gamma": 1.0 + pg.take((c,), 0.05), "beta": pg.take((c,), 0.05),
                "mean": pg.take((c,), 0.05), "var": 1.0 + jnp.abs(pg.take((c,), 0.05))}

    return {
        "bn_enc": bn(input_encoder),
        "conv_enc": conv(output_dim, input_encoder, 3),
        "bn_dec": bn(input_encoder),     # BatchNorm2d(input_encoder), as in the spec
        "conv_dec": conv(output_dim, input_decoder, 3),
        "bn_attn": bn(output_dim),
        "conv_attn": conv(1, output_dim, 1),
    }


if __name__ == "__main__":
    input_encoder = input_decoder = 8   # spec requires equal channels for conv_decoder's BN
    output_dim = 8
    key = jax.random.PRNGKey(0)
    pkey, k1, k2 = jax.random.split(key, 3)
    params = make_params(pkey, input_encoder, input_decoder, output_dim)
    x1 = jax.random.normal(k1, (2, input_encoder, 32, 32), jnp.float32)   # encoder map
    x2 = jax.random.normal(k2, (2, input_decoder, 16, 16), jnp.float32)   # decoder map

    fwd = jax.jit(attention_block_forward)
    out = fwd(params, x1, x2)
    jax.block_until_ready(out)
    assert out.shape == (2, input_decoder, 16, 16)

    ref = _reference_forward(params, x1, x2)
    max_err = float(jnp.max(jnp.abs(out - ref)))
    assert jnp.allclose(out, ref, atol=2.5e-1, rtol=1e-1), max_err
    print("KERNEL_OK")
</pallas_src>

<mosaic_0001>
module attributes {stable_mosaic.version = 11 : i64} {
  func.func @kernel(%arg0: i32, %arg1: memref<1x8x1536xbf16, #tpu.memory_space<vmem>>, %arg2: memref<1x1536xf32, #tpu.memory_space<vmem>>, %arg3: memref<8x1xf32, #tpu.memory_space<vmem>>, %arg4: memref<8x1xf32, #tpu.memory_space<vmem>>, %arg5: memref<9x8x8xbf16, #tpu.memory_space<vmem>>, %arg6: memref<8x1xf32, #tpu.memory_space<vmem>>, %arg7: memref<1x8x1280xbf16, #tpu.memory_space<vmem>>, %arg8: memref<8x1536xbf16, #tpu.memory_space<vmem>>) attributes {dimension_semantics = [#tpu.dimension_semantics<parallel>], iteration_bounds = array<i64: 2>, scalar_prefetch = 0 : i64, scratch_operands = 1 : i64, tpu.core_type = #tpu.core_type<tc>, window_params = [{transform_indices = @transform_0, window_bounds = array<i64: 1, 8, 1536>}, {pipeline_mode = #tpu.pipeline_mode<synchronous>, transform_indices = @transform_1, window_bounds = array<i64: 1, 1536>}, {pipeline_mode = #tpu.pipeline_mode<synchronous>, transform_indices = @transform_2, window_bounds = array<i64: 8, 1>}, {pipeline_mode = #tpu.pipeline_mode<synchronous>, transform_indices = @transform_3, window_bounds = array<i64: 8, 1>}, {pipeline_mode = #tpu.pipeline_mode<synchronous>, transform_indices = @transform_4, window_bounds = array<i64: 9, 8, 8>}, {pipeline_mode = #tpu.pipeline_mode<synchronous>, transform_indices = @transform_5, window_bounds = array<i64: 8, 1>}, {transform_indices = @transform_6, window_bounds = array<i64: 1, 8, 1280>}]} {
    %c0 = arith.constant 0 : index
    %c0_0 = arith.constant 0 : index
    %c0_1 = arith.constant 0 : index
    %0 = vector.load %arg1[%c0, %c0_0, %c0_1] : memref<1x8x1536xbf16, #tpu.memory_space<vmem>>, vector<1x8x1536xbf16>
    %1 = vector.shape_cast %0 : vector<1x8x1536xbf16> to vector<8x1536xbf16>
    %2 = arith.extf %1 : vector<8x1536xbf16> to vector<8x1536xf32>
    %c0_2 = arith.constant 0 : index
    %c0_3 = arith.constant 0 : index
    %3 = vector.load %arg3[%c0_2, %c0_3] : memref<8x1xf32, #tpu.memory_space<vmem>>, vector<8x1xf32>
    %4 = vector.broadcast %3 : vector<8x1xf32> to vector<8x1536xf32>
    %5 = arith.mulf %2, %4 : vector<8x1536xf32>
    %c0_4 = arith.constant 0 : index
    %c0_5 = arith.constant 0 : index
    %6 = vector.load %arg4[%c0_4, %c0_5] : memref<8x1xf32, #tpu.memory_space<vmem>>, vector<8x1xf32>
    %7 = vector.broadcast %6 : vector<8x1xf32> to vector<8x1536xf32>
    %8 = arith.addf %5, %7 : vector<8x1536xf32>
    %cst = arith.constant 0.000000e+00 : f32
    %9 = vector.broadcast %cst : f32 to vector<8x1536xf32>
    %10 = arith.maximumf %8, %9 : vector<8x1536xf32>
    %c0_6 = arith.constant 0 : index
    %c0_7 = arith.constant 0 : index
    %11 = vector.load %arg2[%c0_6, %c0_7] : memref<1x1536xf32, #tpu.memory_space<vmem>>, vector<1x1536xf32>
    %12 = vector.broadcast %11 : vector<1x1536xf32> to vector<8x1536xf32>
    %13 = arith.mulf %10, %12 : vector<8x1536xf32>
    %14 = arith.truncf %13 : vector<8x1536xf32> to vector<8x1536xbf16>
    %c0_8 = arith.constant 0 : index
    %c0_9 = arith.constant 0 : index
    %15 = vector.load %arg8[%c0_8, %c0_9] : memref<8x1536xbf16, #tpu.memory_space<vmem>>, vector<8x1536xbf16>
    tpu.vector_store %arg8[%c0_8, %c0_9], %14 {strides = array<i32>} : memref<8x1536xbf16, #tpu.memory_space<vmem>>, vector<8x1536xbf16>,
    %cst_10 = arith.constant 0.000000e+00 : f32
    %16 = vector.broadcast %cst_10 : f32 to vector<8x1280xf32>
    %c0_11 = arith.constant 0 : index
    %c0_12 = arith.constant 0 : index
    %c0_13 = arith.constant 0 : index
    %17 = vector.load %arg5[%c0_11, %c0_12, %c0_13] : memref<9x8x8xbf16, #tpu.memory_space<vmem>>, vector<1x8x8xbf16>
    %18 = vector.shape_cast %17 : vector<1x8x8xbf16> to vector<8x8xbf16>
    %c0_14 = arith.constant 0 : index
    %c93 = arith.constant 93 : index
    %19 = vector.load %arg8[%c0_14, %c93] : memref<8x1536xbf16, #tpu.memory_space<vmem>>, vector<8x1280xbf16>
    %cst_15 = arith.constant dense<0.000000e+00> : vector<8x1280xf32>
    %20 = tpu.matmul %18, %19, %cst_15 {dimension_numbers = #tpu.dot_dimension_numbers<[1], [0], [0], [1], [0, 0, 1, 1], [], []>} : vector<8x8xbf16>, vector<8x1280xbf16>, vector<8x1280xf32> -> vector<8x1280xf32>
    %21 = arith.addf %16, %20 : vector<8x1280xf32>
    %c1 = arith.constant 1 : index
    %c0_16 = arith.constant 0 : index
    %c0_17 = arith.constant 0 : index
    %22 = vector.load %arg5[%c1, %c0_16, %c0_17] : memref<9x8x8xbf16, #tpu.memory_space<vmem>>, vector<1x8x8xbf16>
    %23 = vector.shape_cast %22 : vector<1x8x8xbf16> to vector<8x8xbf16>
    %c0_18 = arith.constant 0 : index
    %c94 = arith.constant 94 : index
    %24 = vector.load %arg8[%c0_18, %c94] : memref<8x1536xbf16, #tpu.memory_space<vmem>>, vector<8x1280xbf16>
    %cst_19 = arith.constant dense<0.000000e+00> : vector<8x1280xf32>
    %25 = tpu.matmul %23, %24, %cst_19 {dimension_numbers = #tpu.dot_dimension_numbers<[1], [0], [0], [1], [0, 0, 1, 1], [], []>} : vector<8x8xbf16>, vector<8x1280xbf16>, vector<8x1280xf32> -> vector<8x1280xf32>
    %26 = arith.addf %21, %25 : vector<8x1280xf32>
    %c2 = arith.constant 2 : index
    %c0_20 = arith.constant 0 : index
    %c0_21 = arith.constant 0 : index
    %27 = vector.load %arg5[%c2, %c0_20, %c0_21] : memref<9x8x8xbf16, #tpu.memory_space<vmem>>, vector<1x8x8xbf16>
    %28 = vector.shape_cast %27 : vector<1x8x8xbf16> to vector<8x8xbf16>
    %c0_22 = arith.constant 0 : index
    %c95 = arith.constant 95 : index
    %29 = vector.load %arg8[%c0_22, %c95] : memref<8x1536xbf16, #tpu.memory_space<vmem>>, vector<8x1280xbf16>
    %cst_23 = arith.constant dense<0.000000e+00> : vector<8x1280xf32>
    %30 = tpu.matmul %28, %29, %cst_23 {dimension_numbers = #tpu.dot_dimension_numbers<[1], [0], [0], [1], [0, 0, 1, 1], [], []>} : vector<8x8xbf16>, vector<8x1280xbf16>, vector<8x1280xf32> -> vector<8x1280xf32>
    %31 = arith.addf %26, %30 : vector<8x1280xf32>
    %c3 = arith.constant 3 : index
    %c0_24 = arith.constant 0 : index
    %c0_25 = arith.constant 0 : index
    %32 = vector.load %arg5[%c3, %c0_24, %c0_25] : memref<9x8x8xbf16, #tpu.memory_space<vmem>>, vector<1x8x8xbf16>
    %33 = vector.shape_cast %32 : vector<1x8x8xbf16> to vector<8x8xbf16>
    %c0_26 = arith.constant 0 : index
    %c127 = arith.constant 127 : index
    %34 = vector.load %arg8[%c0_26, %c127] : memref<8x1536xbf16, #tpu.memory_space<vmem>>, vector<8x1280xbf16>
    %cst_27 = arith.constant dense<0.000000e+00> : vector<8x1280xf32>
    %35 = tpu.matmul %33, %34, %cst_27 {dimension_numbers = #tpu.dot_dimension_numbers<[1], [0], [0], [1], [0, 0, 1, 1], [], []>} : vector<8x8xbf16>, vector<8x1280xbf16>, vector<8x1280xf32> -> vector<8x1280xf32>
    %36 = arith.addf %31, %35 : vector<8x1280xf32>
    %c4 = arith.constant 4 : index
    %c0_28 = arith.constant 0 : index
    %c0_29 = arith.constant 0 : index
    %37 = vector.load %arg5[%c4, %c0_28, %c0_29] : memref<9x8x8xbf16, #tpu.memory_space<vmem>>, vector<1x8x8xbf16>
    %38 = vector.shape_cast %37 : vector<1x8x8xbf16> to vector<8x8xbf16>
    %c0_30 = arith.constant 0 : index
    %c128 = arith.constant 128 : index
    %39 = vector.load %arg8[%c0_30, %c128] : memref<8x1536xbf16, #tpu.memory_space<vmem>>, vector<8x1280xbf16>
    %cst_31 = arith.constant dense<0.000000e+00> : vector<8x1280xf32>
    %40 = tpu.matmul %38, %39, %cst_31 {dimension_numbers = #tpu.dot_dimension_numbers<[1], [0], [0], [1], [0, 0, 1, 1], [], []>} : vector<8x8xbf16>, vector<8x1280xbf16>, vector<8x1280xf32> -> vector<8x1280xf32>
    %41 = arith.addf %36, %40 : vector<8x1280xf32>
    %c5 = arith.constant 5 : index
    %c0_32 = arith.constant 0 : index
    %c0_33 = arith.constant 0 : index
    %42 = vector.load %arg5[%c5, %c0_32, %c0_33] : memref<9x8x8xbf16, #tpu.memory_space<vmem>>, vector<1x8x8xbf16>
    %43 = vector.shape_cast %42 : vector<1x8x8xbf16> to vector<8x8xbf16>
    %c0_34 = arith.constant 0 : index
    %c129 = arith.constant 129 : index
    %44 = vector.load %arg8[%c0_34, %c129] : memref<8x1536xbf16, #tpu.memory_space<vmem>>, vector<8x1280xbf16>
    %cst_35 = arith.constant dense<0.000000e+00> : vector<8x1280xf32>
    %45 = tpu.matmul %43, %44, %cst_35 {dimension_numbers = #tpu.dot_dimension_numbers<[1], [0], [0], [1], [0, 0, 1, 1], [], []>} : vector<8x8xbf16>, vector<8x1280xbf16>, vector<8x1280xf32> -> vector<8x1280xf32>
    %46 = arith.addf %41, %45 : vector<8x1280xf32>
    %c6 = arith.constant 6 : index
    %c0_36 = arith.constant 0 : index
    %c0_37 = arith.constant 0 : index
    %47 = vector.load %arg5[%c6, %c0_36, %c0_37] : memref<9x8x8xbf16, #tpu.memory_space<vmem>>, vector<1x8x8xbf16>
    %48 = vector.shape_cast %47 : vector<1x8x8xbf16> to vector<8x8xbf16>
    %c0_38 = arith.constant 0 : index
    %c161 = arith.constant 161 : index
    %49 = vector.load %arg8[%c0_38, %c161] : memref<8x1536xbf16, #tpu.memory_space<vmem>>, vector<8x1280xbf16>
    %cst_39 = arith.constant dense<0.000000e+00> : vector<8x1280xf32>
    %50 = tpu.matmul %48, %49, %cst_39 {dimension_numbers = #tpu.dot_dimension_numbers<[1], [0], [0], [1], [0, 0, 1, 1], [], []>} : vector<8x8xbf16>, vector<8x1280xbf16>, vector<8x1280xf32> -> vector<8x1280xf32>
    %51 = arith.addf %46, %50 : vector<8x1280xf32>
    %c7 = arith.constant 7 : index
    %c0_40 = arith.constant 0 : index
    %c0_41 = arith.constant 0 : index
    %52 = vector.load %arg5[%c7, %c0_40, %c0_41] : memref<9x8x8xbf16, #tpu.memory_space<vmem>>, vector<1x8x8xbf16>
    %53 = vector.shape_cast %52 : vector<1x8x8xbf16> to vector<8x8xbf16>
    %c0_42 = arith.constant 0 : index
    %c162 = arith.constant 162 : index
    %54 = vector.load %arg8[%c0_42, %c162] : memref<8x1536xbf16, #tpu.memory_space<vmem>>, vector<8x1280xbf16>
    %cst_43 = arith.constant dense<0.000000e+00> : vector<8x1280xf32>
    %55 = tpu.matmul %53, %54, %cst_43 {dimension_numbers = #tpu.dot_dimension_numbers<[1], [0], [0], [1], [0, 0, 1, 1], [], []>} : vector<8x8xbf16>, vector<8x1280xbf16>, vector<8x1280xf32> -> vector<8x1280xf32>
    %56 = arith.addf %51, %55 : vector<8x1280xf32>
    %c8 = arith.constant 8 : index
    %c0_44 = arith.constant 0 : index
    %c0_45 = arith.constant 0 : index
    %57 = vector.load %arg5[%c8, %c0_44, %c0_45] : memref<9x8x8xbf16, #tpu.memory_space<vmem>>, vector<1x8x8xbf16>
    %58 = vector.shape_cast %57 : vector<1x8x8xbf16> to vector<8x8xbf16>
    %c0_46 = arith.constant 0 : index
    %c163 = arith.constant 163 : index
    %59 = vector.load %arg8[%c0_46, %c163] : memref<8x1536xbf16, #tpu.memory_space<vmem>>, vector<8x1280xbf16>
    %cst_47 = arith.constant dense<0.000000e+00> : vector<8x1280xf32>
    %60 = tpu.matmul %58, %59, %cst_47 {dimension_numbers = #tpu.dot_dimension_numbers<[1], [0], [0], [1], [0, 0, 1, 1], [], []>} : vector<8x8xbf16>, vector<8x1280xbf16>, vector<8x1280xf32> -> vector<8x1280xf32>
    %61 = arith.addf %56, %60 : vector<8x1280xf32>
    %c0_48 = arith.constant 0 : index
    %c0_49 = arith.constant 0 : index
    %62 = vector.load %arg6[%c0_48, %c0_49] : memref<8x1xf32, #tpu.memory_space<vmem>>, vector<8x1xf32>
    %63 = vector.broadcast %62 : vector<8x1xf32> to vector<8x1280xf32>
    %64 = arith.addf %61, %63 : vector<8x1280xf32>
    %65 = arith.truncf %64 : vector<8x1280xf32> to vector<8x1280xbf16>
    %c0_50 = arith.constant 0 : index
    %c0_51 = arith.constant 0 : index
    %c0_52 = arith.constant 0 : index
    %66 = vector.load %arg7[%c0_50, %c0_51, %c0_52] : memref<1x8x1280xbf16, #tpu.memory_space<vmem>>, vector<1x8x1280xbf16>
    %67 = vector.shape_cast %66 : vector<1x8x1280xbf16> to vector<8x1280xbf16>
    %68 = vector.shape_cast %65 : vector<8x1280xbf16> to vector<1x8x1280xbf16>
    tpu.vector_store %arg7[%c0_50, %c0_51, %c0_52], %68 {strides = array<i32>} : memref<1x8x1280xbf16, #tpu.memory_space<vmem>>, vector<1x8x1280xbf16>,
    return
  }
  func.func @transform_0(%arg0: i32) -> (i32, i32, i32) {
    %c0_i32 = arith.constant 0 : i32
    %c0_i32_0 = arith.constant 0 : i32
    %c0_i32_1 = arith.constant 0 : i32
    return %arg0, %c0_i32, %c0_i32_0 : i32, i32, i32
  }
  func.func @transform_1(%arg0: i32) -> (i32, i32) {
    %c0_i32 = arith.constant 0 : i32
    %c0_i32_0 = arith.constant 0 : i32
    %c0_i32_1 = arith.constant 0 : i32
    return %c0_i32, %c0_i32_0 : i32, i32
  }
  func.func @transform_2(%arg0: i32) -> (i32, i32) {
    %c0_i32 = arith.constant 0 : i32
    %c0_i32_0 = arith.constant 0 : i32
    %c0_i32_1 = arith.constant 0 : i32
    return %c0_i32, %c0_i32_0 : i32, i32
  }
  func.func @transform_3(%arg0: i32) -> (i32, i32) {
    %c0_i32 = arith.constant 0 : i32
    %c0_i32_0 = arith.constant 0 : i32
    %c0_i32_1 = arith.constant 0 : i32
    return %c0_i32, %c0_i32_0 : i32, i32
  }
  func.func @transform_4(%arg0: i32) -> (i32, i32, i32) {
    %c0_i32 = arith.constant 0 : i32
    %c0_i32_0 = arith.constant 0 : i32
    %c0_i32_1 = arith.constant 0 : i32
    %c0_i32_2 = arith.constant 0 : i32
    return %c0_i32, %c0_i32_0, %c0_i32_1 : i32, i32, i32
  }
  func.func @transform_5(%arg0: i32) -> (i32, i32) {
    %c0_i32 = arith.constant 0 : i32
    %c0_i32_0 = arith.constant 0 : i32
    %c0_i32_1 = arith.constant 0 : i32
    return %c0_i32, %c0_i32_0 : i32, i32
  }
  func.func @transform_6(%arg0: i32) -> (i32, i32, i32) {
    %c0_i32 = arith.constant 0 : i32
    %c0_i32_0 = arith.constant 0 : i32
    %c0_i32_1 = arith.constant 0 : i32
    return %arg0, %c0_i32, %c0_i32_0 : i32, i32, i32
  }
}

module attributes {stable_mosaic.version = 11 : i64} {
  func.func @kernel(%arg0: i32, %arg1: memref<1x8x640xf32, #tpu.memory_space<vmem>>, %arg2: memref<1x4x8x384xbf16, #tpu.memory_space<vmem>>, %arg3: memref<1x640xf32, #tpu.memory_space<vmem>>, %arg4: memref<8x1xf32, #tpu.memory_space<vmem>>, %arg5: memref<8x1xf32, #tpu.memory_space<vmem>>, %arg6: memref<9x8x8xbf16, #tpu.memory_space<vmem>>, %arg7: memref<8x1xf32, #tpu.memory_space<vmem>>, %arg8: memref<8x1xf32, #tpu.memory_space<vmem>>, %arg9: memref<8x1xf32, #tpu.memory_space<vmem>>, %arg10: memref<8x1xf32, #tpu.memory_space<vmem>>, %arg11: memref<1x1xf32, #tpu.memory_space<vmem>>, %arg12: memref<1x8x384xf32, #tpu.memory_space<vmem>>, %arg13: memref<8x640xbf16, #tpu.memory_space<vmem>>) attributes {dimension_semantics = [#tpu.dimension_semantics<parallel>], iteration_bounds = array<i64: 2>, scalar_prefetch = 0 : i64, scratch_operands = 1 : i64, tpu.core_type = #tpu.core_type<tc>, window_params = [{transform_indices = @transform_0, window_bounds = array<i64: 1, 8, 640>}, {transform_indices = @transform_1, window_bounds = array<i64: 1, 4, 8, 384>}, {pipeline_mode = #tpu.pipeline_mode<synchronous>, transform_indices = @transform_2, window_bounds = array<i64: 1, 640>}, {pipeline_mode = #tpu.pipeline_mode<synchronous>, transform_indices = @transform_3, window_bounds = array<i64: 8, 1>}, {pipeline_mode = #tpu.pipeline_mode<synchronous>, transform_indices = @transform_4, window_bounds = array<i64: 8, 1>}, {pipeline_mode = #tpu.pipeline_mode<synchronous>, transform_indices = @transform_5, window_bounds = array<i64: 9, 8, 8>}, {pipeline_mode = #tpu.pipeline_mode<synchronous>, transform_indices = @transform_6, window_bounds = array<i64: 8, 1>}, {pipeline_mode = #tpu.pipeline_mode<synchronous>, transform_indices = @transform_7, window_bounds = array<i64: 8, 1>}, {pipeline_mode = #tpu.pipeline_mode<synchronous>, transform_indices = @transform_8, window_bounds = array<i64: 8, 1>}, {pipeline_mode = #tpu.pipeline_mode<synchronous>, transform_indices = @transform_9, window_bounds = array<i64: 8, 1>}, {pipeline_mode = #tpu.pipeline_mode<synchronous>, transform_indices = @transform_10, window_bounds = array<i64: 1, 1>}, {transform_indices = @transform_11, window_bounds = array<i64: 1, 8, 384>}]} {
    %c0 = arith.constant 0 : index
    %c0_0 = arith.constant 0 : index
    %c0_1 = arith.constant 0 : index
    %0 = vector.load %arg1[%c0, %c0_0, %c0_1] : memref<1x8x640xf32, #tpu.memory_space<vmem>>, vector<1x8x640xf32>
    %1 = vector.shape_cast %0 : vector<1x8x640xf32> to vector<8x640xf32>
    %c0_2 = arith.constant 0 : index
    %c0_3 = arith.constant 0 : index
    %2 = vector.load %arg4[%c0_2, %c0_3] : memref<8x1xf32, #tpu.memory_space<vmem>>, vector<8x1xf32>
    %3 = vector.broadcast %2 : vector<8x1xf32> to vector<8x640xf32>
    %4 = arith.mulf %1, %3 : vector<8x640xf32>
    %c0_4 = arith.constant 0 : index
    %c0_5 = arith.constant 0 : index
    %5 = vector.load %arg5[%c0_4, %c0_5] : memref<8x1xf32, #tpu.memory_space<vmem>>, vector<8x1xf32>
    %6 = vector.broadcast %5 : vector<8x1xf32> to vector<8x640xf32>
    %7 = arith.addf %4, %6 : vector<8x640xf32>
    %cst = arith.constant 0.000000e+00 : f32
    %8 = vector.broadcast %cst : f32 to vector<8x640xf32>
    %9 = arith.maximumf %7, %8 : vector<8x640xf32>
    %c0_6 = arith.constant 0 : index
    %c0_7 = arith.constant 0 : index
    %10 = vector.load %arg3[%c0_6, %c0_7] : memref<1x640xf32, #tpu.memory_space<vmem>>, vector<1x640xf32>
    %11 = vector.broadcast %10 : vector<1x640xf32> to vector<8x640xf32>
    %12 = arith.mulf %9, %11 : vector<8x640xf32>
    %13 = arith.truncf %12 : vector<8x640xf32> to vector<8x640xbf16>
    %c0_8 = arith.constant 0 : index
    %c0_9 = arith.constant 0 : index
    %14 = vector.load %arg13[%c0_8, %c0_9] : memref<8x640xbf16, #tpu.memory_space<vmem>>, vector<8x640xbf16>
    tpu.vector_store %arg13[%c0_8, %c0_9], %13 {strides = array<i32>} : memref<8x640xbf16, #tpu.memory_space<vmem>>, vector<8x640xbf16>,
    %cst_10 = arith.constant 0.000000e+00 : f32
    %15 = vector.broadcast %cst_10 : f32 to vector<8x384xf32>
    %c0_11 = arith.constant 0 : index
    %c0_12 = arith.constant 0 : index
    %c0_13 = arith.constant 0 : index
    %16 = vector.load %arg6[%c0_11, %c0_12, %c0_13] : memref<9x8x8xbf16, #tpu.memory_space<vmem>>, vector<1x8x8xbf16>
    %17 = vector.shape_cast %16 : vector<1x8x8xbf16> to vector<8x8xbf16>
    %c0_14 = arith.constant 0 : index
    %c109 = arith.constant 109 : index
    %18 = vector.load %arg13[%c0_14, %c109] : memref<8x640xbf16, #tpu.memory_space<vmem>>, vector<8x384xbf16>
    %cst_15 = arith.constant dense<0.000000e+00> : vector<8x384xf32>
    %19 = tpu.matmul %17, %18, %cst_15 {dimension_numbers = #tpu.dot_dimension_numbers<[1], [0], [0], [1], [0, 0, 1, 1], [], []>} : vector<8x8xbf16>, vector<8x384xbf16>, vector<8x384xf32> -> vector<8x384xf32>
    %20 = arith.addf %15, %19 : vector<8x384xf32>
    %c1 = arith.constant 1 : index
    %c0_16 = arith.constant 0 : index
    %c0_17 = arith.constant 0 : index
    %21 = vector.load %arg6[%c1, %c0_16, %c0_17] : memref<9x8x8xbf16, #tpu.memory_space<vmem>>, vector<1x8x8xbf16>
    %22 = vector.shape_cast %21 : vector<1x8x8xbf16> to vector<8x8xbf16>
    %c0_18 = arith.constant 0 : index
    %c110 = arith.constant 110 : index
    %23 = vector.load %arg13[%c0_18, %c110] : memref<8x640xbf16, #tpu.memory_space<vmem>>, vector<8x384xbf16>
    %cst_19 = arith.constant dense<0.000000e+00> : vector<8x384xf32>
    %24 = tpu.matmul %22, %23, %cst_19 {dimension_numbers = #tpu.dot_dimension_numbers<[1], [0], [0], [1], [0, 0, 1, 1], [], []>} : vector<8x8xbf16>, vector<8x384xbf16>, vector<8x384xf32> -> vector<8x384xf32>
    %25 = arith.addf %20, %24 : vector<8x384xf32>
    %c2 = arith.constant 2 : index
    %c0_20 = arith.constant 0 : index
    %c0_21 = arith.constant 0 : index
    %26 = vector.load %arg6[%c2, %c0_20, %c0_21] : memref<9x8x8xbf16, #tpu.memory_space<vmem>>, vector<1x8x8xbf16>
    %27 = vector.shape_cast %26 : vector<1x8x8xbf16> to vector<8x8xbf16>
    %c0_22 = arith.constant 0 : index
    %c111 = arith.constant 111 : index
    %28 = vector.load %arg13[%c0_22, %c111] : memref<8x640xbf16, #tpu.memory_space<vmem>>, vector<8x384xbf16>
    %cst_23 = arith.constant dense<0.000000e+00> : vector<8x384xf32>
    %29 = tpu.matmul %27, %28, %cst_23 {dimension_numbers = #tpu.dot_dimension_numbers<[1], [0], [0], [1], [0, 0, 1, 1], [], []>} : vector<8x8xbf16>, vector<8x384xbf16>, vector<8x384xf32> -> vector<8x384xf32>
    %30 = arith.addf %25, %29 : vector<8x384xf32>
    %c3 = arith.constant 3 : index
    %c0_24 = arith.constant 0 : index
    %c0_25 = arith.constant 0 : index
    %31 = vector.load %arg6[%c3, %c0_24, %c0_25] : memref<9x8x8xbf16, #tpu.memory_space<vmem>>, vector<1x8x8xbf16>
    %32 = vector.shape_cast %31 : vector<1x8x8xbf16> to vector<8x8xbf16>
    %c0_26 = arith.constant 0 : index
    %c127 = arith.constant 127 : index
    %33 = vector.load %arg13[%c0_26, %c127] : memref<8x640xbf16, #tpu.memory_space<vmem>>, vector<8x384xbf16>
    %cst_27 = arith.constant dense<0.000000e+00> : vector<8x384xf32>
    %34 = tpu.matmul %32, %33, %cst_27 {dimension_numbers = #tpu.dot_dimension_numbers<[1], [0], [0], [1], [0, 0, 1, 1], [], []>} : vector<8x8xbf16>, vector<8x384xbf16>, vector<8x384xf32> -> vector<8x384xf32>
    %35 = arith.addf %30, %34 : vector<8x384xf32>
    %c4 = arith.constant 4 : index
    %c0_28 = arith.constant 0 : index
    %c0_29 = arith.constant 0 : index
    %36 = vector.load %arg6[%c4, %c0_28, %c0_29] : memref<9x8x8xbf16, #tpu.memory_space<vmem>>, vector<1x8x8xbf16>
    %37 = vector.shape_cast %36 : vector<1x8x8xbf16> to vector<8x8xbf16>
    %c0_30 = arith.constant 0 : index
    %c128 = arith.constant 128 : index
    %38 = vector.load %arg13[%c0_30, %c128] : memref<8x640xbf16, #tpu.memory_space<vmem>>, vector<8x384xbf16>
    %cst_31 = arith.constant dense<0.000000e+00> : vector<8x384xf32>
    %39 = tpu.matmul %37, %38, %cst_31 {dimension_numbers = #tpu.dot_dimension_numbers<[1], [0], [0], [1], [0, 0, 1, 1], [], []>} : vector<8x8xbf16>, vector<8x384xbf16>, vector<8x384xf32> -> vector<8x384xf32>
    %40 = arith.addf %35, %39 : vector<8x384xf32>
    %c5 = arith.constant 5 : index
    %c0_32 = arith.constant 0 : index
    %c0_33 = arith.constant 0 : index
    %41 = vector.load %arg6[%c5, %c0_32, %c0_33] : memref<9x8x8xbf16, #tpu.memory_space<vmem>>, vector<1x8x8xbf16>
    %42 = vector.shape_cast %41 : vector<1x8x8xbf16> to vector<8x8xbf16>
    %c0_34 = arith.constant 0 : index
    %c129 = arith.constant 129 : index
    %43 = vector.load %arg13[%c0_34, %c129] : memref<8x640xbf16, #tpu.memory_space<vmem>>, vector<8x384xbf16>
    %cst_35 = arith.constant dense<0.000000e+00> : vector<8x384xf32>
    %44 = tpu.matmul %42, %43, %cst_35 {dimension_numbers = #tpu.dot_dimension_numbers<[1], [0], [0], [1], [0, 0, 1, 1], [], []>} : vector<8x8xbf16>, vector<8x384xbf16>, vector<8x384xf32> -> vector<8x384xf32>
    %45 = arith.addf %40, %44 : vector<8x384xf32>
    %c6 = arith.constant 6 : index
    %c0_36 = arith.constant 0 : index
    %c0_37 = arith.constant 0 : index
    %46 = vector.load %arg6[%c6, %c0_36, %c0_37] : memref<9x8x8xbf16, #tpu.memory_space<vmem>>, vector<1x8x8xbf16>
    %47 = vector.shape_cast %46 : vector<1x8x8xbf16> to vector<8x8xbf16>
    %c0_38 = arith.constant 0 : index
    %c145 = arith.constant 145 : index
    %48 = vector.load %arg13[%c0_38, %c145] : memref<8x640xbf16, #tpu.memory_space<vmem>>, vector<8x384xbf16>
    %cst_39 = arith.constant dense<0.000000e+00> : vector<8x384xf32>
    %49 = tpu.matmul %47, %48, %cst_39 {dimension_numbers = #tpu.dot_dimension_numbers<[1], [0], [0], [1], [0, 0, 1, 1], [], []>} : vector<8x8xbf16>, vector<8x384xbf16>, vector<8x384xf32> -> vector<8x384xf32>
    %50 = arith.addf %45, %49 : vector<8x384xf32>
    %c7 = arith.constant 7 : index
    %c0_40 = arith.constant 0 : index
    %c0_41 = arith.constant 0 : index
    %51 = vector.load %arg6[%c7, %c0_40, %c0_41] : memref<9x8x8xbf16, #tpu.memory_space<vmem>>, vector<1x8x8xbf16>
    %52 = vector.shape_cast %51 : vector<1x8x8xbf16> to vector<8x8xbf16>
    %c0_42 = arith.constant 0 : index
    %c146 = arith.constant 146 : index
    %53 = vector.load %arg13[%c0_42, %c146] : memref<8x640xbf16, #tpu.memory_space<vmem>>, vector<8x384xbf16>
    %cst_43 = arith.constant dense<0.000000e+00> : vector<8x384xf32>
    %54 = tpu.matmul %52, %53, %cst_43 {dimension_numbers = #tpu.dot_dimension_numbers<[1], [0], [0], [1], [0, 0, 1, 1], [], []>} : vector<8x8xbf16>, vector<8x384xbf16>, vector<8x384xf32> -> vector<8x384xf32>
    %55 = arith.addf %50, %54 : vector<8x384xf32>
    %c8 = arith.constant 8 : index
    %c0_44 = arith.constant 0 : index
    %c0_45 = arith.constant 0 : index
    %56 = vector.load %arg6[%c8, %c0_44, %c0_45] : memref<9x8x8xbf16, #tpu.memory_space<vmem>>, vector<1x8x8xbf16>
    %57 = vector.shape_cast %56 : vector<1x8x8xbf16> to vector<8x8xbf16>
    %c0_46 = arith.constant 0 : index
    %c147 = arith.constant 147 : index
    %58 = vector.load %arg13[%c0_46, %c147] : memref<8x640xbf16, #tpu.memory_space<vmem>>, vector<8x384xbf16>
    %cst_47 = arith.constant dense<0.000000e+00> : vector<8x384xf32>
    %59 = tpu.matmul %57, %58, %cst_47 {dimension_numbers = #tpu.dot_dimension_numbers<[1], [0], [0], [1], [0, 0, 1, 1], [], []>} : vector<8x8xbf16>, vector<8x384xbf16>, vector<8x384xf32> -> vector<8x384xf32>
    %60 = arith.addf %55, %59 : vector<8x384xf32>
    %c0_48 = arith.constant 0 : index
    %c0_49 = arith.constant 0 : index
    %61 = vector.load %arg7[%c0_48, %c0_49] : memref<8x1xf32, #tpu.memory_space<vmem>>, vector<8x1xf32>
    %62 = vector.broadcast %61 : vector<8x1xf32> to vector<8x384xf32>
    %63 = arith.addf %60, %62 : vector<8x384xf32>
    %c0_50 = arith.constant 0 : index
    %c0_51 = arith.constant 0 : index
    %c0_52 = arith.constant 0 : index
    %c0_53 = arith.constant 0 : index
    %64 = vector.load %arg2[%c0_50, %c0_51, %c0_52, %c0_53] : memref<1x4x8x384xbf16, #tpu.memory_space<vmem>>, vector<1x4x8x384xbf16>
    %65 = vector.shape_cast %64 : vector<1x4x8x384xbf16> to vector<4x8x384xbf16>
    %66 = arith.extf %65 : vector<4x8x384xbf16> to vector<4x8x384xf32>
    %cst_54 = arith.constant dense<0xFF800000> : vector<8x384xf32>
    %67 = vector.multi_reduction <maximumf>, %66, %cst_54 [0] : vector<4x8x384xf32> to vector<8x384xf32>
    %68 = arith.addf %67, %63 : vector<8x384xf32>
    %c0_55 = arith.constant 0 : index
    %c0_56 = arith.constant 0 : index
    %69 = vector.load %arg8[%c0_55, %c0_56] : memref<8x1xf32, #tpu.memory_space<vmem>>, vector<8x1xf32>
    %70 = vector.broadcast %69 : vector<8x1xf32> to vector<8x384xf32>
    %71 = arith.mulf %68, %70 : vector<8x384xf32>
    %c0_57 = arith.constant 0 : index
    %c0_58 = arith.constant 0 : index
    %72 = vector.load %arg9[%c0_57, %c0_58] : memref<8x1xf32, #tpu.memory_space<vmem>>, vector<8x1xf32>
    %73 = vector.broadcast %72 : vector<8x1xf32> to vector<8x384xf32>
    %74 = arith.addf %71, %73 : vector<8x384xf32>
    %cst_59 = arith.constant 0.000000e+00 : f32
    %75 = vector.broadcast %cst_59 : f32 to vector<8x384xf32>
    %76 = arith.maximumf %74, %75 : vector<8x384xf32>
    %c0_60 = arith.constant 0 : index
    %c0_61 = arith.constant 0 : index
    %77 = vector.load %arg10[%c0_60, %c0_61] : memref<8x1xf32, #tpu.memory_space<vmem>>, vector<8x1xf32>
    %78 = vector.broadcast %77 : vector<8x1xf32> to vector<8x384xf32>
    %79 = arith.mulf %76, %78 : vector<8x384xf32>
    %cst_62 = arith.constant dense<0.000000e+00> : vector<384xf32>
    %80 = vector.multi_reduction <add>, %79, %cst_62 [0] : vector<8x384xf32> to vector<384xf32>
    %81 = vector.shape_cast %80 : vector<384xf32> to vector<1x384xf32>
    %c0_63 = arith.constant 0 : index
    %c0_64 = arith.constant 0 : index
    %82 = vector.load %arg11[%c0_63, %c0_64] : memref<1x1xf32, #tpu.memory_space<vmem>>, vector<1x1xf32>
    %83 = vector.broadcast %82 : vector<1x1xf32> to vector<1x384xf32>
    %84 = arith.addf %81, %83 : vector<1x384xf32>
    %85 = vector.extract_strided_slice %1 {offsets = [0, 128], sizes = [8, 384], strides = [1, 1]} : vector<8x640xf32> to vector<8x384xf32>
    %86 = vector.broadcast %84 : vector<1x384xf32> to vector<8x384xf32>
    %87 = arith.mulf %86, %85 : vector<8x384xf32>
    %c0_65 = arith.constant 0 : index
    %c0_66 = arith.constant 0 : index
    %c0_67 = arith.constant 0 : index
    %88 = vector.load %arg12[%c0_65, %c0_66, %c0_67] : memref<1x8x384xf32, #tpu.memory_space<vmem>>, vector<1x8x384xf32>
    %89 = vector.shape_cast %88 : vector<1x8x384xf32> to vector<8x384xf32>
    %90 = vector.shape_cast %87 : vector<8x384xf32> to vector<1x8x384xf32>
    tpu.vector_store %arg12[%c0_65, %c0_66, %c0_67], %90 {strides = array<i32>} : memref<1x8x384xf32, #tpu.memory_space<vmem>>, vector<1x8x384xf32>,
    return
  }
  func.func @transform_0(%arg0: i32) -> (i32, i32, i32) {
    %c0_i32 = arith.constant 0 : i32
    %c0_i32_0 = arith.constant 0 : i32
    %c0_i32_1 = arith.constant 0 : i32
    return %arg0, %c0_i32, %c0_i32_0 : i32, i32, i32
  }
  func.func @transform_1(%arg0: i32) -> (i32, i32, i32, i32) {
    %c0_i32 = arith.constant 0 : i32
    %c0_i32_0 = arith.constant 0 : i32
    %c0_i32_1 = arith.constant 0 : i32
    %c0_i32_2 = arith.constant 0 : i32
    return %arg0, %c0_i32, %c0_i32_0, %c0_i32_1 : i32, i32, i32, i32
  }
  func.func @transform_2(%arg0: i32) -> (i32, i32) {
    %c0_i32 = arith.constant 0 : i32
    %c0_i32_0 = arith.constant 0 : i32
    %c0_i32_1 = arith.constant 0 : i32
    return %c0_i32, %c0_i32_0 : i32, i32
  }
  func.func @transform_3(%arg0: i32) -> (i32, i32) {
    %c0_i32 = arith.constant 0 : i32
    %c0_i32_0 = arith.constant 0 : i32
    %c0_i32_1 = arith.constant 0 : i32
    return %c0_i32, %c0_i32_0 : i32, i32
  }
  func.func @transform_4(%arg0: i32) -> (i32, i32) {
    %c0_i32 = arith.constant 0 : i32
    %c0_i32_0 = arith.constant 0 : i32
    %c0_i32_1 = arith.constant 0 : i32
    return %c0_i32, %c0_i32_0 : i32, i32
  }
  func.func @transform_5(%arg0: i32) -> (i32, i32, i32) {
    %c0_i32 = arith.constant 0 : i32
    %c0_i32_0 = arith.constant 0 : i32
    %c0_i32_1 = arith.constant 0 : i32
    %c0_i32_2 = arith.constant 0 : i32
    return %c0_i32, %c0_i32_0, %c0_i32_1 : i32, i32, i32
  }
  func.func @transform_6(%arg0: i32) -> (i32, i32) {
    %c0_i32 = arith.constant 0 : i32
    %c0_i32_0 = arith.constant 0 : i32
    %c0_i32_1 = arith.constant 0 : i32
    return %c0_i32, %c0_i32_0 : i32, i32
  }
  func.func @transform_7(%arg0: i32) -> (i32, i32) {
    %c0_i32 = arith.constant 0 : i32
    %c0_i32_0 = arith.constant 0 : i32
    %c0_i32_1 = arith.constant 0 : i32
    return %c0_i32, %c0_i32_0 : i32, i32
  }
  func.func @transform_8(%arg0: i32) -> (i32, i32) {
    %c0_i32 = arith.constant 0 : i32
    %c0_i32_0 = arith.constant 0 : i32
    %c0_i32_1 = arith.constant 0 : i32
    return %c0_i32, %c0_i32_0 : i32, i32
  }
  func.func @transform_9(%arg0: i32) -> (i32, i32) {
    %c0_i32 = arith.constant 0 : i32
    %c0_i32_0 = arith.constant 0 : i32
    %c0_i32_1 = arith.constant 0 : i32
    return %c0_i32, %c0_i32_0 : i32, i32
  }
  func.func @transform_10(%arg0: i32) -> (i32, i32) {
    %c0_i32 = arith.constant 0 : i32
    %c0_i32_0 = arith.constant 0 : i32
    %c0_i32_1 = arith.constant 0 : i32
    return %c0_i32, %c0_i32_0 : i32, i32
  }
  func.func @transform_11(%arg0: i32) -> (i32, i32, i32) {
    %c0_i32 = arith.constant 0 : i32
    %c0_i32_0 = arith.constant 0 : i32
    %c0_i32_1 = arith.constant 0 : i32
    return %arg0, %c0_i32, %c0_i32_0 : i32, i32, i32
  }
}

</mosaic_0001>

<llo_original>
// kernel: attention_block_forward.2
$region0: #{attention_block_forward.2}
  #allocation0 [shape = 'u32[]', space=smem, size = 0x4, offset = 0x4, fixed_abs, tag = 'smem constant byte address 0x4 - core index']
  #allocation1 [shape = 'u32[72,128]{1,0:T(1,128)}', space=vmem, size = 0x9000, scoped, tag = 'internal scratch']
  #allocation2 [shape = 'bf16[8,1536]{1,0:T(8,128)(2,1)}', space=vmem, size = 0x6000, scoped, tag = 'scratch operand']
  %s0 = inlined_call_operand.vmem [shape: bf16[2,8,1536], index: 0, kind: input, shape index: {}]
  %s1 = inlined_call_operand.vmem [shape: f32[1,1536], index: 1, kind: input, shape index: {}]
  %s2 = inlined_call_operand.vmem [shape: f32[8,1], index: 2, kind: input, shape index: {}]
  %s3 = inlined_call_operand.vmem [shape: f32[8,1], index: 3, kind: input, shape index: {}]
  %s4 = inlined_call_operand.vmem [shape: bf16[9,8,8], index: 4, kind: input, shape index: {}]
  %s5 = inlined_call_operand.vmem [shape: f32[8,1], index: 5, kind: input, shape index: {}]
  %s6 = inlined_call_operand.vmem [shape: bf16[2,8,1280], index: 6, kind: output, shape index: {}]
  %s7 = sld [smem:[#allocation0]]
  $region57: #{attention_block_forward.2} parent=0
    _
  %s9 = ssub.s32 1, %s7
  %s10 = scalar_select 0, %s9, %s7
  loop: start=0, step=1, limit=4
  $region2: #{attention_block_forward.2} parent=0 // loop_pre_header
    _
  $region3: #{attention_block_forward.2} parent=0 // loop_header
    %s12 = sphi 0, %s16
    %p13 = scmp.ge.s32.totalorder %s12, 4
    %s22 = sphi 0, %s24
    %s25 = sphi 0, %s22
    %s26 = sphi 0, %s25
    %s42 = sphi 0, %s26
    %s46 = sphi 0, %s46
    %s48 = sphi 0, %s46
    %s49 = sphi 0, %s48
    %s63 = sphi 0, %s49
    %s67 = sphi 0, %s67
    %s69 = sphi 0, %s67
    %s70 = sphi 0, %s69
    %s84 = sphi 0, %s70
    %s88 = sphi 0, %s88
    %s90 = sphi 0, %s88
    %s91 = sphi 0, %s90
    %s105 = sphi 0, %s91
    %s109 = sphi 0, %s109
    %s111 = sphi 0, %s109
    %s112 = sphi 0, %s111
    %s126 = sphi 0, %s112
    %s130 = sphi 0, %s130
    %s132 = sphi 0, %s130
    %s133 = sphi 0, %s132
    %s147 = sphi 0, %s133
    %s153 = sphi 0, %s155
    %s156 = sphi 0, %s153
    %s157 = sphi 0, %s156
    %s173 = sphi 0, %s157
  $region4: #{attention_block_forward.2} parent=0 // loop_header_branch
    %15 = sbr.rel (%p13) target = $region8
  $region5: #{attention_block_forward.2} parent=0 // loop_body
    %s17 = ssub.s32 %s12, 1
    %s18 = ssub.s32 %s12, 2
    %s19 = sadd.s32 %s12, 1
    %s20 = ssub.s32 %s12, %s19
    %p21 = scmp.eq.s32.totalorder %s20, 0
    %s23 = sadd.s32 %s22, 1
    %s24 = scalar_select %p21, %s22, %s23
    %p27 = pneg %p21
    %p28 = scmp.eq.s32.totalorder %s12, 1
    %p29 = por %p27, %p28
    %p30 = scmp.ne.s32.totalorder %s22, %s25
    %p31 = scmp.eq.s32.totalorder %s12, 0
    %p32 = por %p30, %p31
    %p33 = scmp.ne.s32.totalorder %s22, %s25
    %p34 = scmp.eq.s32.totalorder %s17, 1
    %p35 = por %p33, %p34
    %p36 = scmp.ne.s32.totalorder %s25, %s26
    %p37 = scmp.eq.s32.totalorder %s17, 0
    %p38 = por %p36, %p37
    %p39 = scmp.ne.s32.totalorder %s25, %s26
    %p40 = scmp.eq.s32.totalorder %s18, 1
    %p41 = por %p39, %p40
    %p43 = scmp.ne.s32.totalorder %s26, %s42
    %p44 = scmp.eq.s32.totalorder %s18, 0
    %p45 = por %p43, %p44
    %s47 = sadd.s32 %s46, 1
    %p50 = scmp.eq.s32.totalorder %s12, 1
    %p51 = scmp.ne.s32.totalorder %s46, %s48
    %p52 = scmp.eq.s32.totalorder %s12, 0
    %p53 = por %p51, %p52
    %p54 = scmp.ne.s32.totalorder %s46, %s48
    %p55 = scmp.eq.s32.totalorder %s17, 1
    %p56 = por %p54, %p55
    %p57 = scmp.ne.s32.totalorder %s48, %s49
    %p58 = scmp.eq.s32.totalorder %s17, 0
    %p59 = por %p57, %p58
    %p60 = scmp.ne.s32.totalorder %s48, %s49
    %p61 = scmp.eq.s32.totalorder %s18, 1
    %p62 = por %p60, %p61
    %p64 = scmp.ne.s32.totalorder %s49, %s63
    %p65 = scmp.eq.s32.totalorder %s18, 0
    %p66 = por %p64, %p65
    %s68 = sadd.s32 %s67, 1
    %p71 = scmp.eq.s32.totalorder %s12, 1
    %p72 = scmp.ne.s32.totalorder %s67, %s69
    %p73 = scmp.eq.s32.totalorder %s12, 0
    %p74 = por %p72, %p73
    %p75 = scmp.ne.s32.totalorder %s67, %s69
    %p76 = scmp.eq.s32.totalorder %s17, 1
    %p77 = por %p75, %p76
    %p78 = scmp.ne.s32.totalorder %s69, %s70
    %p79 = scmp.eq.s32.totalorder %s17, 0
    %p80 = por %p78, %p79
    %p81 = scmp.ne.s32.totalorder %s69, %s70
    %p82 = scmp.eq.s32.totalorder %s18, 1
    %p83 = por %p81, %p82
    %p85 = scmp.ne.s32.totalorder %s70, %s84
    %p86 = scmp.eq.s32.totalorder %s18, 0
    %p87 = por %p85, %p86
    %s89 = sadd.s32 %s88, 1
    %p92 = scmp.eq.s32.totalorder %s12, 1
    %p93 = scmp.ne.s32.totalorder %s88, %s90
    %p94 = scmp.eq.s32.totalorder %s12, 0
    %p95 = por %p93, %p94
    %p96 = scmp.ne.s32.totalorder %s88, %s90
    %p97 = scmp.eq.s32.totalorder %s17, 1
    %p98 = por %p96, %p97
    %p99 = scmp.ne.s32.totalorder %s90, %s91
    %p100 = scmp.eq.s32.totalorder %s17, 0
    %p101 = por %p99, %p100
    %p102 = scmp.ne.s32.totalorder %s90, %s91
    %p103 = scmp.eq.s32.totalorder %s18, 1
    %p104 = por %p102, %p103
    %p106 = scmp.ne.s32.totalorder %s91, %s105
    %p107 = scmp.eq.s32.totalorder %s18, 0
    %p108 = por %p106, %p107
    %s110 = sadd.s32 %s109, 1
    %p113 = scmp.eq.s32.totalorder %s12, 1
    %p114 = scmp.ne.s32.totalorder %s109, %s111
    %p115 = scmp.eq.s32.totalorder %s12, 0
    %p116 = por %p114, %p115
    %p117 = scmp.ne.s32.totalorder %s109, %s111
    %p118 = scmp.eq.s32.totalorder %s17, 1
    %p119 = por %p117, %p118
    %p120 = scmp.ne.s32.totalorder %s111, %s112
    %p121 = scmp.eq.s32.totalorder %s17, 0
    %p122 = por %p120, %p121
    %p123 = scmp.ne.s32.totalorder %s111, %s112
    %p124 = scmp.eq.s32.totalorder %s18, 1
    %p125 = por %p123, %p124
    %p127 = scmp.ne.s32.totalorder %s112, %s126
    %p128 = scmp.eq.s32.totalorder %s18, 0
    %p129 = por %p127, %p128
    %s131 = sadd.s32 %s130, 1
    %p134 = scmp.eq.s32.totalorder %s12, 1
    %p135 = scmp.ne.s32.totalorder %s130, %s132
    %p136 = scmp.eq.s32.totalorder %s12, 0
    %p137 = por %p135, %p136
    %p138 = scmp.ne.s32.totalorder %s130, %s132
    %p139 = scmp.eq.s32.totalorder %s17, 1
    %p140 = por %p138, %p139
    %p141 = scmp.ne.s32.totalorder %s132, %s133
    %p142 = scmp.eq.s32.totalorder %s17, 0
    %p143 = por %p141, %p142
    %p144 = scmp.ne.s32.totalorder %s132, %s133
    %p145 = scmp.eq.s32.totalorder %s18, 1
    %p146 = por %p144, %p145
    %p148 = scmp.ne.s32.totalorder %s133, %s147
    %p149 = scmp.eq.s32.totalorder %s18, 0
    %p150 = por %p148, %p149
    %s151 = ssub.s32 %s12, %s19
    %p152 = scmp.eq.s32.totalorder %s151, 0
    %s154 = sadd.s32 %s153, 1
    %s155 = scalar_select %p152, %s153, %s154
    %p158 = pneg %p152
    %p159 = scmp.eq.s32.totalorder %s12, 1
    %p160 = por %p158, %p159
    %p161 = scmp.ne.s32.totalorder %s153, %s156
    %p162 = scmp.eq.s32.totalorder %s12, 0
    %p163 = por %p161, %p162
    %p164 = scmp.ne.s32.totalorder %s153, %s156
    %p165 = scmp.eq.s32.totalorder %s17, 1
    %p166 = por %p164, %p165
    %p167 = scmp.ne.s32.totalorder %s156, %s157
    %p168 = scmp.eq.s32.totalorder %s17, 0
    %p169 = por %p167, %p168
    %p170 = scmp.ne.s32.totalorder %s156, %s157
    %p171 = scmp.eq.s32.totalorder %s18, 1
    %p172 = por %p170, %p171
    %p174 = scmp.ne.s32.totalorder %s157, %s173
    %p175 = scmp.eq.s32.totalorder %s18, 0
    %p176 = por %p174, %p175
    %p177 = scmp.le.s32.totalorder 1, %s12
    %p178 = scmp.lt.s32.totalorder %s12, 3
    %p179 = pnand %p177, %p178
    %p180 = pneg %p179
    // Predicated region
    $region9: #{attention_block_forward.2} parent=5 // pred_check
      _
    $region10: #{attention_block_forward.2} parent=5 // pred_check_branch
      %182 = sbr.rel (%p179) target = $region12
    $region11: #{attention_block_forward.2} parent=5 // pred_region
      %s183 = ssub.s32 %s12, 1
      // Predicated region
      $region13: #{attention_block_forward.2} parent=11 // pred_check
        %p184 = pneg %p59
      $region14: #{attention_block_forward.2} parent=11 // pred_check_branch
        %186 = sbr.rel (%p184) target = $region16
      $region15: #{attention_block_forward.2} parent=11 // pred_region
        _
      $region16: #{attention_block_forward.2} parent=11 // pred_fallthru
        _
      // Predicated region
      $region17: #{attention_block_forward.2} parent=11 // pred_check
        %p187 = pneg %p80
      $region18: #{attention_block_forward.2} parent=11 // pred_check_branch
        %189 = sbr.rel (%p187) target = $region20
      $region19: #{attention_block_forward.2} parent=11 // pred_region
        _
      $region20: #{attention_block_forward.2} parent=11 // pred_fallthru
        _
      // Predicated region
      $region21: #{attention_block_forward.2} parent=11 // pred_check
        %p190 = pneg %p101
      $region22: #{attention_block_forward.2} parent=11 // pred_check_branch
        %192 = sbr.rel (%p190) target = $region24
      $region23: #{attention_block_forward.2} parent=11 // pred_region
        _
      $region24: #{attention_block_forward.2} parent=11 // pred_fallthru
        _
      // Predicated region
      $region25: #{attention_block_forward.2} parent=11 // pred_check
        %p193 = pneg %p122
      $region26: #{attention_block_forward.2} parent=11 // pred_check_branch
        %195 = sbr.rel (%p193) target = $region28
      $region27: #{attention_block_forward.2} parent=11 // pred_region
        _
      $region28: #{attention_block_forward.2} parent=11 // pred_fallthru
        _
      // Predicated region
      $region29: #{attention_block_forward.2} parent=11 // pred_check
        %p196 = pneg %p143
      $region30: #{attention_block_forward.2} parent=11 // pred_check_branch
        %198 = sbr.rel (%p196) target = $region32
      $region31: #{attention_block_forward.2} parent=11 // pred_region
        _
      $region32: #{attention_block_forward.2} parent=11 // pred_fallthru
        _
    $region12: #{attention_block_forward.2} parent=5 // pred_fallthru
      _
    %p199 = scmp.lt.s32.totalorder %s12, 2
    // Predicated region
    $region33: #{attention_block_forward.2} parent=5 // pred_check
      %p200 = pneg %p199
    $region34: #{attention_block_forward.2} parent=5 // pred_check_branch
      %202 = sbr.rel (%p200) target = $region36
    $region35: #{attention_block_forward.2} parent=5 // pred_region
      // Predicated region
      $region37: #{attention_block_forward.2} parent=35 // pred_check
        %p203 = pneg %p32
      $region38: #{attention_block_forward.2} parent=35 // pred_check_branch
        %205 = sbr.rel (%p203) target = $region40
      $region39: #{attention_block_forward.2} parent=35 // pred_region
        %p206 = scmp.lt.s32.totalorder %s12, 1
        %s207 = scalar_select %p206, %s12, 1
        %s208 = smul.addr %s207, 12
        %s209 = smul.addr %s208, 4
        %s210 = scalar_lea.vmem %s0, %s209
      $region40: #{attention_block_forward.2} parent=35 // pred_fallthru
        _
    $region36: #{attention_block_forward.2} parent=5 // pred_fallthru
      _
    %p211 = scmp.le.s32.totalorder 1, %s12
    %p212 = scmp.lt.s32.totalorder %s12, 3
    %p213 = pnand %p211, %p212
    %p214 = pneg %p213
    // Predicated region
    $region41: #{attention_block_forward.2} parent=5 // pred_check
      _
    $region42: #{attention_block_forward.2} parent=5 // pred_check_branch
      %216 = sbr.rel (%p213) target = $region44
    $region43: #{attention_block_forward.2} parent=5 // pred_region
      %s217 = ssub.s32 %s12, 1
      %p218 = scmp.lt.s32.totalorder %s17, 1
      %s219 = scalar_select %p218, %s17, 1
      %s220 = smul.addr %s219, 12
      %s221 = smul.addr %s220, 4
      %s222 = scalar_lea.vmem %s0, %s221
      %p223 = pneg %p38
      %p224 = pneg %p35
      %p225 = pneg %p59
      %p226 = pneg %p56
      %p227 = pneg %p80
      %p228 = pneg %p77
      %p229 = pneg %p101
      %p230 = pneg %p98
      %p231 = pneg %p122
      %p232 = pneg %p119
      %p233 = pneg %p143
      %p234 = pneg %p140
      %p235 = pneg %p169
      %p236 = pneg %p166
      %p237 = scmp.lt.s32.totalorder %s17, 1
      %s238 = scalar_select %p237, %s17, 1
      %s239 = smul.addr %s238, 10
      %s240 = smul.addr %s239, 4
      %s241 = scalar_lea.vmem %s6, %s240
      %p242 = scmp.lt.s32.totalorder %s17, 1
      %s243 = scalar_select %p242, %s17, 1
      %s244 = smul.addr %s243, 12
      %s245 = smul.addr %s244, 4
      %s246 = scalar_lea.vmem %s0, %s245
      %p247 = scmp.lt.s32.totalorder %s17, 1
      %s248 = scalar_select %p247, %s17, 1
      %s249 = smul.addr %s248, 10
      %s250 = smul.addr %s249, 4
      %s251 = scalar_lea.vmem %s6, %s250
      %v253 = vld [vmem:[%s246] sm:$0xff]
      %v254 = vld [vmem:[%s246 + $0x8] sm:$0xff]
      %v255 = vld [vmem:[%s246 + $0x10] sm:$0xff]
      %v256 = vld [vmem:[%s246 + $0x18] sm:$0xff]
      %v257 = vld [vmem:[%s246 + $0x20] sm:$0xff]
      %v258 = vld [vmem:[%s246 + $0x28] sm:$0xff]
      %v259 = vunpack.c.l.bf16 %v253
      %v260 = vunpack.c.h.bf16 %v253
      %v261 = vunpack.c.l.bf16 %v254
      %v262 = vunpack.c.h.bf16 %v254
      %v263 = vunpack.c.l.bf16 %v255
      %v264 = vunpack.c.h.bf16 %v255
      %v265 = vunpack.c.l.bf16 %v256
      %v266 = vunpack.c.h.bf16 %v256
      %v267 = vunpack.c.l.bf16 %v257
      %v268 = vunpack.c.h.bf16 %v257
      %v269 = vunpack.c.l.bf16 %v258
      %v270 = vunpack.c.h.bf16 %v258
      %v271 = vld [vmem:[%s2] sm:$0xff]
      %273 = vset.pattern.permute.xlu0 0
      %274 = vperm.xlu0 %273, %v271
      %v275 = vpop.permute.xlu0 %274
      %v277 = vmul.f32 %v259, %v275
      %v278 = vmul.f32 %v260, %v275
      %v279 = vmul.f32 %v261, %v275
      %v280 = vmul.f32 %v262, %v275
      %v281 = vmul.f32 %v263, %v275
      %v282 = vmul.f32 %v264, %v275
      %v283 = vmul.f32 %v265, %v275
      %v284 = vmul.f32 %v266, %v275
      %v285 = vmul.f32 %v267, %v275
      %v286 = vmul.f32 %v268, %v275
      %v287 = vmul.f32 %v269, %v275
      %v288 = vmul.f32 %v270, %v275
      %v289 = vld [vmem:[%s3] sm:$0xff]
      %291 = vset.pattern.permute.xlu0 0
      %292 = vperm.xlu0 %291, %v289
      %v293 = vpop.permute.xlu0 %292
      %v295 = vadd.f32 %v277, %v293
      %v296 = vadd.f32 %v278, %v293
      %v297 = vadd.f32 %v279, %v293
      %v298 = vadd.f32 %v280, %v293
      %v299 = vadd.f32 %v281, %v293
      %v300 = vadd.f32 %v282, %v293
      %v301 = vadd.f32 %v283, %v293
      %v302 = vadd.f32 %v284, %v293
      %v303 = vadd.f32 %v285, %v293
      %v304 = vadd.f32 %v286, %v293
      %v305 = vadd.f32 %v287, %v293
      %v306 = vadd.f32 %v288, %v293
      %v307 = vmax.f32 %v295, 0.0
      %v308 = vmax.f32 %v296, 0.0
      %v309 = vmax.f32 %v297, 0.0
      %v310 = vmax.f32 %v298, 0.0
      %v311 = vmax.f32 %v299, 0.0
      %v312 = vmax.f32 %v300, 0.0
      %v313 = vmax.f32 %v301, 0.0
      %v314 = vmax.f32 %v302, 0.0
      %v315 = vmax.f32 %v303, 0.0
      %v316 = vmax.f32 %v304, 0.0
      %v317 = vmax.f32 %v305, 0.0
      %v318 = vmax.f32 %v306, 0.0
      %v319 = vld [vmem:[%s1] sm:$0xff]
      %v320 = vld [vmem:[%s1 + $0x8] sm:$0xf]
      %v323 = vperm.slane %v319, 0
      %v324 = vperm.slane %v319, 1
      %v325 = vperm.slane %v319, 2
      %v326 = vperm.slane %v319, 3
      %v327 = vperm.slane %v319, 4
      %v328 = vperm.slane %v319, 5
      %v329 = vperm.slane %v319, 6
      %v330 = vperm.slane %v319, 7
      %v331 = vperm.slane %v320, 0
      %v332 = vperm.slane %v320, 1
      %v333 = vperm.slane %v320, 2
      %v334 = vperm.slane %v320, 3
      %v347 = vmul.f32 %v307, %v323
      %v348 = vmul.f32 %v308, %v324
      %v349 = vmul.f32 %v309, %v325
      %v350 = vmul.f32 %v310, %v326
      %v351 = vmul.f32 %v311, %v327
      %v352 = vmul.f32 %v312, %v328
      %v353 = vmul.f32 %v313, %v329
      %v354 = vmul.f32 %v314, %v330
      %v355 = vmul.f32 %v315, %v331
      %v356 = vmul.f32 %v316, %v332
      %v357 = vmul.f32 %v317, %v333
      %v358 = vmul.f32 %v318, %v334
      %v359 = vpack.c.bf16 %v348, %v347
      %v360 = vpack.c.bf16 %v350, %v349
      %v361 = vpack.c.bf16 %v352, %v351
      %v362 = vpack.c.bf16 %v354, %v353
      %v363 = vpack.c.bf16 %v356, %v355
      %v364 = vpack.c.bf16 %v358, %v357
      %365 = vst [vmem:[#allocation2] sm:$0xff] %v359
      %366 = vst [vmem:[#allocation2 + $0x8] sm:$0xff] %v360
      %367 = vst [vmem:[#allocation2 + $0x10] sm:$0xff] %v361
      %368 = vst [vmem:[#allocation2 + $0x18] sm:$0xff] %v362
      %369 = vst [vmem:[#allocation2 + $0x20] sm:$0xff] %v363
      %370 = vst [vmem:[#allocation2 + $0x28] sm:$0xff] %v364
      %v371 = vld [vmem:[%s4] sm:$0xf]
      %v372 = vld [vmem:[#allocation2] sm:$0xff]
      %v373 = vld [vmem:[#allocation2 + $0x8] sm:$0xff]
      %v374 = vld [vmem:[#allocation2 + $0x10] sm:$0xff]
      %v375 = vld [vmem:[#allocation2 + $0x18] sm:$0xff]
      %v376 = vld [vmem:[#allocation2 + $0x20] sm:$0xff]
      %v377 = vld [vmem:[#allocation2 + $0x28] sm:$0xf]
      %s378 = scalar_lea.vmem %s4, 4
      %v379 = vld [vmem:[%s378] sm:$0xf]
      %v386 = vunpack.c.l.b16 %v372
      %v387 = vunpack.c.h.b16 %v372
      %v388 = vunpack.c.l.b16 %v373
      %v389 = vunpack.c.h.b16 %v373
      %v390 = vunpack.c.l.b16 %v374
      %v391 = vunpack.c.h.b16 %v374
      %v392 = vunpack.c.l.b16 %v375
      %v393 = vunpack.c.h.b16 %v375
      %v394 = vunpack.c.l.b16 %v376
      %v395 = vunpack.c.h.b16 %v376
      %v396 = vunpack.c.l.b16 %v377
      %v397 = vpack.c.b16 %v386, %v386
      %v398 = vpack.c.b16 %v387, %v387
      %v399 = vpack.c.b16 %v388, %v388
      %v400 = vpack.c.b16 %v389, %v389
      %v401 = vpack.c.b16 %v390, %v390
      %v402 = vpack.c.b16 %v391, %v391
      %v403 = vpack.c.b16 %v392, %v392
      %v404 = vpack.c.b16 %v393, %v393
      %v405 = vpack.c.b16 %v394, %v394
      %v406 = vpack.c.b16 %v395, %v395
      %v407 = vpack.c.b16 %v396, %v396
      %408 = vrot.lane.b32.xlu0 %v397, 34
      %v409 = vpop.permute.xlu0 %408
      %410 = vrot.lane.b32.xlu0 %v398, 34
      %v411 = vpop.permute.xlu0 %410
      %412 = vrot.lane.b32.xlu0 %v399, 34
      %v413 = vpop.permute.xlu0 %412
      %414 = vrot.lane.b32.xlu0 %v400, 34
      %v415 = vpop.permute.xlu0 %414
      %416 = vrot.lane.b32.xlu0 %v401, 34
      %v417 = vpop.permute.xlu0 %416
      %418 = vrot.lane.b32.xlu0 %v402, 34
      %v419 = vpop.permute.xlu0 %418
      %420 = vrot.lane.b32.xlu0 %v403, 34
      %v421 = vpop.permute.xlu0 %420
      %422 = vrot.lane.b32.xlu0 %v404, 34
      %v423 = vpop.permute.xlu0 %422
      %424 = vrot.lane.b32.xlu0 %v405, 34
      %v425 = vpop.permute.xlu0 %424
      %426 = vrot.lane.b32.xlu0 %v406, 34
      %v427 = vpop.permute.xlu0 %426
      %428 = vrot.lane.b32.xlu0 %v407, 34
      %v429 = vpop.permute.xlu0 %428
      %vm430 = vcmask 277504
      %v431 = vsel %vm430, %v409, %v411
      %v432 = vsel %vm430, %v411, %v413
      %v433 = vsel %vm430, %v413, %v415
      %v434 = vsel %vm430, %v415, %v417
      %v435 = vsel %vm430, %v417, %v419
      %v436 = vsel %vm430, %v419, %v421
      %v437 = vsel %vm430, %v421, %v423
      %v438 = vsel %vm430, %v423, %v425
      %v439 = vsel %vm430, %v425, %v427
      %v440 = vsel %vm430, %v427, %v429
      %vm441 = vcmask 64512
      %v443 = vsel %vm441, %v379, 0
      %vm445 = vcmask 1043456
      %v447 = vsel %vm445, %v431, 0
      %v450 = vsel %vm445, %v432, 0
      %v453 = vsel %vm445, %v433, 0
      %v456 = vsel %vm445, %v434, 0
      %v459 = vsel %vm445, %v435, 0
      %v462 = vsel %vm445, %v436, 0
      %v465 = vsel %vm445, %v437, 0
      %v468 = vsel %vm445, %v438, 0
      %v471 = vsel %vm445, %v439, 0
      %v474 = vsel %vm445, %v440, 0
      %476 = vmatpush.bf16.msra.mxu0 0
      %477 = vmatpush.bf16.msra.mxu0 0
      %478 = vmatpush.bf16.msra.mxu0 0
      %479 = vmatpush.bf16.msra.mxu0 0
      %480 = vmatpush.bf16.msra.mxu0 0
      %481 = vmatpush.bf16.msra.mxu0 0
      %482 = vmatpush.bf16.msra.mxu0 0
      %483 = vmatpush.bf16.msra.mxu0 %v447
      %484 = vmatmul.bf16.gmra.mxu0 %v443
      %v485 = vpop.f32.mrf.mxu0
      %v486 = vadd.f32 0.0, %v485
      %v487 = vpop.f32.mrf.mxu0
      %488 = vdwg.mxu0
      %489 = vmatpush.bf16.msra.mxu0 0
      %490 = vmatpush.bf16.msra.mxu0 0
      %491 = vmatpush.bf16.msra.mxu0 0
      %492 = vmatpush.bf16.msra.mxu0 0
      %493 = vmatpush.bf16.msra.mxu0 0
      %494 = vmatpush.bf16.msra.mxu0 0
      %495 = vmatpush.bf16.msra.mxu0 0
      %496 = vmatpush.bf16.msra.mxu0 %v450
      %497 = vmatmul.bf16.gmra.mxu0 %v443
      %v498 = vpop.f32.mrf.mxu0
      %v499 = vadd.f32 0.0, %v498
      %v500 = vpop.f32.mrf.mxu0
      %501 = vdwg.mxu0
      %502 = vmatpush.bf16.msra.mxu0 0
      %503 = vmatpush.bf16.msra.mxu0 0
      %504 = vmatpush.bf16.msra.mxu0 0
      %505 = vmatpush.bf16.msra.mxu0 0
      %506 = vmatpush.bf16.msra.mxu0 0
      %507 = vmatpush.bf16.msra.mxu0 0
      %508 = vmatpush.bf16.msra.mxu0 0
      %509 = vmatpush.bf16.msra.mxu0 %v453
      %510 = vmatmul.bf16.gmra.mxu0 %v443
      %v511 = vpop.f32.mrf.mxu0
      %v512 = vadd.f32 0.0, %v511
      %v513 = vpop.f32.mrf.mxu0
      %514 = vdwg.mxu0
      %515 = vmatpush.bf16.msra.mxu0 0
      %516 = vmatpush.bf16.msra.mxu0 0
      %517 = vmatpush.bf16.msra.mxu0 0
      %518 = vmatpush.bf16.msra.mxu0 0
      %519 = vmatpush.bf16.msra.mxu0 0
      %520 = vmatpush.bf16.msra.mxu0 0
      %521 = vmatpush.bf16.msra.mxu0 0
      %522 = vmatpush.bf16.msra.mxu0 %v456
      %523 = vmatmul.bf16.gmra.mxu0 %v443
      %v524 = vpop.f32.mrf.mxu0
      %v525 = vadd.f32 0.0, %v524
      %v526 = vpop.f32.mrf.mxu0
      %527 = vdwg.mxu0
      %528 = vmatpush.bf16.msra.mxu0 0
      %529 = vmatpush.bf16.msra.mxu0 0
      %530 = vmatpush.bf16.msra.mxu0 0
      %531 = vmatpush.bf16.msra.mxu0 0
      %532 = vmatpush.bf16.msra.mxu0 0
      %533 = vmatpush.bf16.msra.mxu0 0
      %534 = vmatpush.bf16.msra.mxu0 0
      %535 = vmatpush.bf16.msra.mxu0 %v459
      %536 = vmatmul.bf16.gmra.mxu0 %v443
      %v537 = vpop.f32.mrf.mxu0
      %v538 = vadd.f32 0.0, %v537
      %v539 = vpop.f32.mrf.mxu0
      %540 = vdwg.mxu0
      %541 = vmatpush.bf16.msra.mxu0 0
      %542 = vmatpush.bf16.msra.mxu0 0
      %543 = vmatpush.bf16.msra.mxu0 0
      %544 = vmatpush.bf16.msra.mxu0 0
      %545 = vmatpush.bf16.msra.mxu0 0
      %546 = vmatpush.bf16.msra.mxu0 0
      %547 = vmatpush.bf16.msra.mxu0 0
      %548 = vmatpush.bf16.msra.mxu0 %v462
      %549 = vmatmul.bf16.gmra.mxu0 %v443
      %v550 = vpop.f32.mrf.mxu0
      %v551 = vadd.f32 0.0, %v550
      %v552 = vpop.f32.mrf.mxu0
      %553 = vdwg.mxu0
      %554 = vmatpush.bf16.msra.mxu0 0
      %555 = vmatpush.bf16.msra.mxu0 0
      %556 = vmatpush.bf16.msra.mxu0 0
      %557 = vmatpush.bf16.msra.mxu0 0
      %558 = vmatpush.bf16.msra.mxu0 0
      %559 = vmatpush.bf16.msra.mxu0 0
      %560 = vmatpush.bf16.msra.mxu0 0
      %561 = vmatpush.bf16.msra.mxu0 %v465
      %562 = vmatmul.bf16.gmra.mxu0 %v443
      %v563 = vpop.f32.mrf.mxu0
      %v564 = vadd.f32 0.0, %v563
      %v565 = vpop.f32.mrf.mxu0
      %566 = vdwg.mxu0
      %567 = vmatpush.bf16.msra.mxu0 0
      %568 = vmatpush.bf16.msra.mxu0 0
      %569 = vmatpush.bf16.msra.mxu0 0
      %570 = vmatpush.bf16.msra.mxu0 0
      %571 = vmatpush.bf16.msra.mxu0 0
      %572 = vmatpush.bf16.msra.mxu0 0
      %573 = vmatpush.bf16.msra.mxu0 0
      %574 = vmatpush.bf16.msra.mxu0 %v468
      %575 = vmatmul.bf16.gmra.mxu0 %v443
      %v576 = vpop.f32.mrf.mxu0
      %v577 = vadd.f32 0.0, %v576
      %v578 = vpop.f32.mrf.mxu0
      %579 = vdwg.mxu0
      %580 = vmatpush.bf16.msra.mxu0 0
      %581 = vmatpush.bf16.msra.mxu0 0
      %582 = vmatpush.bf16.msra.mxu0 0
      %583 = vmatpush.bf16.msra.mxu0 0
      %584 = vmatpush.bf16.msra.mxu0 0
      %585 = vmatpush.bf16.msra.mxu0 0
      %586 = vmatpush.bf16.msra.mxu0 0
      %587 = vmatpush.bf16.msra.mxu0 %v471
      %588 = vmatmul.bf16.gmra.mxu0 %v443
      %v589 = vpop.f32.mrf.mxu0
      %v590 = vadd.f32 0.0, %v589
      %v591 = vpop.f32.mrf.mxu0
      %592 = vdwg.mxu0
      %593 = vmatpush.bf16.msra.mxu0 0
      %594 = vmatpush.bf16.msra.mxu0 0
      %595 = vmatpush.bf16.msra.mxu0 0
      %596 = vmatpush.bf16.msra.mxu0 0
      %597 = vmatpush.bf16.msra.mxu0 0
      %598 = vmatpush.bf16.msra.mxu0 0
      %599 = vmatpush.bf16.msra.mxu0 0
      %600 = vmatpush.bf16.msra.mxu0 %v474
      %601 = vmatmul.bf16.gmra.mxu0 %v443
      %v602 = vpop.f32.mrf.mxu0
      %v603 = vadd.f32 0.0, %v602
      %v604 = vpop.f32.mrf.mxu0
      %605 = vdwg.mxu0
      %606 = vrot.lane.b32.xlu0 %v397, 35
      %v607 = vpop.permute.xlu0 %606
      %608 = vrot.lane.b32.xlu0 %v398, 35
      %v609 = vpop.permute.xlu0 %608
      %610 = vrot.lane.b32.xlu0 %v399, 35
      %v611 = vpop.permute.xlu0 %610
      %612 = vrot.lane.b32.xlu0 %v400, 35
      %v613 = vpop.permute.xlu0 %612
      %614 = vrot.lane.b32.xlu0 %v401, 35
      %v615 = vpop.permute.xlu0 %614
      %616 = vrot.lane.b32.xlu0 %v402, 35
      %v617 = vpop.permute.xlu0 %616
      %618 = vrot.lane.b32.xlu0 %v403, 35
      %v619 = vpop.permute.xlu0 %618
      %620 = vrot.lane.b32.xlu0 %v404, 35
      %v621 = vpop.permute.xlu0 %620
      %622 = vrot.lane.b32.xlu0 %v405, 35
      %v623 = vpop.permute.xlu0 %622
      %624 = vrot.lane.b32.xlu0 %v406, 35
      %v625 = vpop.permute.xlu0 %624
      %626 = vrot.lane.b32.xlu0 %v407, 35
      %v627 = vpop.permute.xlu0 %626
      %vm628 = vcmask 285696
      %v629 = vsel %vm628, %v607, %v609
      %v630 = vsel %vm628, %v609, %v611
      %v631 = vsel %vm628, %v611, %v613
      %v632 = vsel %vm628, %v613, %v615
      %v633 = vsel %vm628, %v615, %v617
      %v634 = vsel %vm628, %v617, %v619
      %v635 = vsel %vm628, %v619, %v621
      %v636 = vsel %vm628, %v621, %v623
      %v637 = vsel %vm628, %v623, %v625
      %v638 = vsel %vm628, %v625, %v627
      %v640 = vsel %vm441, %v371, 0
      %v643 = vsel %vm445, %v629, 0
      %v646 = vsel %vm445, %v630, 0
      %v649 = vsel %vm445, %v631, 0
      %v652 = vsel %vm445, %v632, 0
      %v655 = vsel %vm445, %v633, 0
      %v658 = vsel %vm445, %v634, 0
      %v661 = vsel %vm445, %v635, 0
      %v664 = vsel %vm445, %v636, 0
      %v667 = vsel %vm445, %v637, 0
      %v670 = vsel %vm445, %v638, 0
      %672 = vmatpush.bf16.msra.mxu0 0
      %673 = vmatpush.bf16.msra.mxu0 0
      %674 = vmatpush.bf16.msra.mxu0 0
      %675 = vmatpush.bf16.msra.mxu0 0
      %676 = vmatpush.bf16.msra.mxu0 0
      %677 = vmatpush.bf16.msra.mxu0 0
      %678 = vmatpush.bf16.msra.mxu0 0
      %679 = vmatpush.bf16.msra.mxu0 %v643
      %680 = vmatmul.bf16.gmra.mxu0 %v640
      %v681 = vpop.f32.mrf.mxu0
      %v682 = vadd.f32 %v486, %v681
      %v683 = vpop.f32.mrf.mxu0
      %684 = vdwg.mxu0
      %685 = vmatpush.bf16.msra.mxu0 0
      %686 = vmatpush.bf16.msra.mxu0 0
      %687 = vmatpush.bf16.msra.mxu0 0
      %688 = vmatpush.bf16.msra.mxu0 0
      %689 = vmatpush.bf16.msra.mxu0 0
      %690 = vmatpush.bf16.msra.mxu0 0
      %691 = vmatpush.bf16.msra.mxu0 0
      %692 = vmatpush.bf16.msra.mxu0 %v646
      %693 = vmatmul.bf16.gmra.mxu0 %v640
      %v694 = vpop.f32.mrf.mxu0
      %v695 = vadd.f32 %v499, %v694
      %v696 = vpop.f32.mrf.mxu0
      %697 = vdwg.mxu0
      %698 = vmatpush.bf16.msra.mxu0 0
      %699 = vmatpush.bf16.msra.mxu0 0
      %700 = vmatpush.bf16.msra.mxu0 0
      %701 = vmatpush.bf16.msra.mxu0 0
      %702 = vmatpush.bf16.msra.mxu0 0
      %703 = vmatpush.bf16.msra.mxu0 0
      %704 = vmatpush.bf16.msra.mxu0 0
      %705 = vmatpush.bf16.msra.mxu0 %v649
      %706 = vmatmul.bf16.gmra.mxu0 %v640
      %v707 = vpop.f32.mrf.mxu0
      %v708 = vadd.f32 %v512, %v707
      %v709 = vpop.f32.mrf.mxu0
      %710 = vdwg.mxu0
      %711 = vmatpush.bf16.msra.mxu0 0
      %712 = vmatpush.bf16.msra.mxu0 0
      %713 = vmatpush.bf16.msra.mxu0 0
      %714 = vmatpush.bf16.msra.mxu0 0
      %715 = vmatpush.bf16.msra.mxu0 0
      %716 = vmatpush.bf16.msra.mxu0 0
      %717 = vmatpush.bf16.msra.mxu0 0
      %718 = vmatpush.bf16.msra.mxu0 %v652
      %719 = vmatmul.bf16.gmra.mxu0 %v640
      %v720 = vpop.f32.mrf.mxu0
      %v721 = vadd.f32 %v525, %v720
      %v722 = vpop.f32.mrf.mxu0
      %723 = vdwg.mxu0
      %724 = vmatpush.bf16.msra.mxu0 0
      %725 = vmatpush.bf16.msra.mxu0 0
      %726 = vmatpush.bf16.msra.mxu0 0
      %727 = vmatpush.bf16.msra.mxu0 0
      %728 = vmatpush.bf16.msra.mxu0 0
      %729 = vmatpush.bf16.msra.mxu0 0
      %730 = vmatpush.bf16.msra.mxu0 0
      %731 = vmatpush.bf16.msra.mxu0 %v655
      %732 = vmatmul.bf16.gmra.mxu0 %v640
      %v733 = vpop.f32.mrf.mxu0
      %v734 = vadd.f32 %v538, %v733
      %v735 = vpop.f32.mrf.mxu0
      %736 = vdwg.mxu0
      %737 = vmatpush.bf16.msra.mxu0 0
      %738 = vmatpush.bf16.msra.mxu0 0
      %739 = vmatpush.bf16.msra.mxu0 0
      %740 = vmatpush.bf16.msra.mxu0 0
      %741 = vmatpush.bf16.msra.mxu0 0
      %742 = vmatpush.bf16.msra.mxu0 0
      %743 = vmatpush.bf16.msra.mxu0 0
      %744 = vmatpush.bf16.msra.mxu0 %v658
      %745 = vmatmul.bf16.gmra.mxu0 %v640
      %v746 = vpop.f32.mrf.mxu0
      %v747 = vadd.f32 %v551, %v746
      %v748 = vpop.f32.mrf.mxu0
      %749 = vdwg.mxu0
      %750 = vmatpush.bf16.msra.mxu0 0
      %751 = vmatpush.bf16.msra.mxu0 0
      %752 = vmatpush.bf16.msra.mxu0 0
      %753 = vmatpush.bf16.msra.mxu0 0
      %754 = vmatpush.bf16.msra.mxu0 0
      %755 = vmatpush.bf16.msra.mxu0 0
      %756 = vmatpush.bf16.msra.mxu0 0
      %757 = vmatpush.bf16.msra.mxu0 %v661
      %758 = vmatmul.bf16.gmra.mxu0 %v640
      %v759 = vpop.f32.mrf.mxu0
      %v760 = vadd.f32 %v564, %v759
      %v761 = vpop.f32.mrf.mxu0
      %762 = vdwg.mxu0
      %763 = vmatpush.bf16.msra.mxu0 0
      %764 = vmatpush.bf16.msra.mxu0 0
      %765 = vmatpush.bf16.msra.mxu0 0
      %766 = vmatpush.bf16.msra.mxu0 0
      %767 = vmatpush.bf16.msra.mxu0 0
      %768 = vmatpush.bf16.msra.mxu0 0
      %769 = vmatpush.bf16.msra.mxu0 0
      %770 = vmatpush.bf16.msra.mxu0 %v664
      %771 = vmatmul.bf16.gmra.mxu0 %v640
      %v772 = vpop.f32.mrf.mxu0
      %v773 = vadd.f32 %v577, %v772
      %v774 = vpop.f32.mrf.mxu0
      %775 = vdwg.mxu0
      %776 = vmatpush.bf16.msra.mxu0 0
      %777 = vmatpush.bf16.msra.mxu0 0
      %778 = vmatpush.bf16.msra.mxu0 0
      %779 = vmatpush.bf16.msra.mxu0 0
      %780 = vmatpush.bf16.msra.mxu0 0
      %781 = vmatpush.bf16.msra.mxu0 0
      %782 = vmatpush.bf16.msra.mxu0 0
      %783 = vmatpush.bf16.msra.mxu0 %v667
      %784 = vmatmul.bf16.gmra.mxu0 %v640
      %v785 = vpop.f32.mrf.mxu0
      %v786 = vadd.f32 %v590, %v785
      %v787 = vpop.f32.mrf.mxu0
      %788 = vdwg.mxu0
      %789 = vmatpush.bf16.msra.mxu0 0
      %790 = vmatpush.bf16.msra.mxu0 0
      %791 = vmatpush.bf16.msra.mxu0 0
      %792 = vmatpush.bf16.msra.mxu0 0
      %793 = vmatpush.bf16.msra.mxu0 0
      %794 = vmatpush.bf16.msra.mxu0 0
      %795 = vmatpush.bf16.msra.mxu0 0
      %796 = vmatpush.bf16.msra.mxu0 %v670
      %797 = vmatmul.bf16.gmra.mxu0 %v640
      %v798 = vpop.f32.mrf.mxu0
      %v799 = vadd.f32 %v603, %v798
      %v800 = vpop.f32.mrf.mxu0
      %801 = vdwg.mxu0
      %s802 = scalar_lea.vmem %s4, 8
      %v803 = vld [vmem:[%s802] sm:$0xf]
      %804 = vrot.lane.b32.xlu0 %v397, 33
      %v805 = vpop.permute.xlu0 %804
      %806 = vrot.lane.b32.xlu0 %v398, 33
      %v807 = vpop.permute.xlu0 %806
      %808 = vrot.lane.b32.xlu0 %v399, 33
      %v809 = vpop.permute.xlu0 %808
      %810 = vrot.lane.b32.xlu0 %v400, 33
      %v811 = vpop.permute.xlu0 %810
      %812 = vrot.lane.b32.xlu0 %v401, 33
      %v813 = vpop.permute.xlu0 %812
      %814 = vrot.lane.b32.xlu0 %v402, 33
      %v815 = vpop.permute.xlu0 %814
      %816 = vrot.lane.b32.xlu0 %v403, 33
      %v817 = vpop.permute.xlu0 %816
      %818 = vrot.lane.b32.xlu0 %v404, 33
      %v819 = vpop.permute.xlu0 %818
      %820 = vrot.lane.b32.xlu0 %v405, 33
      %v821 = vpop.permute.xlu0 %820
      %822 = vrot.lane.b32.xlu0 %v406, 33
      %v823 = vpop.permute.xlu0 %822
      %824 = vrot.lane.b32.xlu0 %v407, 33
      %v825 = vpop.permute.xlu0 %824
      %vm826 = vcmask 269312
      %v827 = vsel %vm826, %v805, %v807
      %v828 = vsel %vm826, %v807, %v809
      %v829 = vsel %vm826, %v809, %v811
      %v830 = vsel %vm826, %v811, %v813
      %v831 = vsel %vm826, %v813, %v815
      %v832 = vsel %vm826, %v815, %v817
      %v833 = vsel %vm826, %v817, %v819
      %v834 = vsel %vm826, %v819, %v821
      %v835 = vsel %vm826, %v821, %v823
      %v836 = vsel %vm826, %v823, %v825
      %v838 = vsel %vm441, %v803, 0
      %v841 = vsel %vm445, %v827, 0
      %v844 = vsel %vm445, %v828, 0
      %v847 = vsel %vm445, %v829, 0
      %v850 = vsel %vm445, %v830, 0
      %v853 = vsel %vm445, %v831, 0
      %v856 = vsel %vm445, %v832, 0
      %v859 = vsel %vm445, %v833, 0
      %v862 = vsel %vm445, %v834, 0
      %v865 = vsel %vm445, %v835, 0
      %v868 = vsel %vm445, %v836, 0
      %870 = vmatpush.bf16.msra.mxu0 0
      %871 = vmatpush.bf16.msra.mxu0 0
      %872 = vmatpush.bf16.msra.mxu0 0
      %873 = vmatpush.bf16.msra.mxu0 0
      %874 = vmatpush.bf16.msra.mxu0 0
      %875 = vmatpush.bf16.msra.mxu0 0
      %876 = vmatpush.bf16.msra.mxu0 0
      %877 = vmatpush.bf16.msra.mxu0 %v841
      %878 = vmatmul.bf16.gmra.mxu0 %v838
      %v879 = vpop.f32.mrf.mxu0
      %v880 = vadd.f32 0.0, %v879
      %v881 = vpop.f32.mrf.mxu0
      %882 = vdwg.mxu0
      %883 = vmatpush.bf16.msra.mxu0 0
      %884 = vmatpush.bf16.msra.mxu0 0
      %885 = vmatpush.bf16.msra.mxu0 0
      %886 = vmatpush.bf16.msra.mxu0 0
      %887 = vmatpush.bf16.msra.mxu0 0
      %888 = vmatpush.bf16.msra.mxu0 0
      %889 = vmatpush.bf16.msra.mxu0 0
      %890 = vmatpush.bf16.msra.mxu0 %v844
      %891 = vmatmul.bf16.gmra.mxu0 %v838
      %v892 = vpop.f32.mrf.mxu0
      %v893 = vadd.f32 0.0, %v892
      %v894 = vpop.f32.mrf.mxu0
      %895 = vdwg.mxu0
      %896 = vmatpush.bf16.msra.mxu0 0
      %897 = vmatpush.bf16.msra.mxu0 0
      %898 = vmatpush.bf16.msra.mxu0 0
      %899 = vmatpush.bf16.msra.mxu0 0
      %900 = vmatpush.bf16.msra.mxu0 0
      %901 = vmatpush.bf16.msra.mxu0 0
      %902 = vmatpush.bf16.msra.mxu0 0
      %903 = vmatpush.bf16.msra.mxu0 %v847
      %904 = vmatmul.bf16.gmra.mxu0 %v838
      %v905 = vpop.f32.mrf.mxu0
      %v906 = vadd.f32 0.0, %v905
      %v907 = vpop.f32.mrf.mxu0
      %908 = vdwg.mxu0
      %909 = vmatpush.bf16.msra.mxu0 0
      %910 = vmatpush.bf16.msra.mxu0 0
      %911 = vmatpush.bf16.msra.mxu0 0
      %912 = vmatpush.bf16.msra.mxu0 0
      %913 = vmatpush.bf16.msra.mxu0 0
      %914 = vmatpush.bf16.msra.mxu0 0
      %915 = vmatpush.bf16.msra.mxu0 0
      %916 = vmatpush.bf16.msra.mxu0 %v850
      %917 = vmatmul.bf16.gmra.mxu0 %v838
      %v918 = vpop.f32.mrf.mxu0
      %v919 = vadd.f32 0.0, %v918
      %v920 = vpop.f32.mrf.mxu0
      %921 = vdwg.mxu0
      %922 = vmatpush.bf16.msra.mxu0 0
      %923 = vmatpush.bf16.msra.mxu0 0
      %924 = vmatpush.bf16.msra.mxu0 0
      %925 = vmatpush.bf16.msra.mxu0 0
      %926 = vmatpush.bf16.msra.mxu0 0
      %927 = vmatpush.bf16.msra.mxu0 0
      %928 = vmatpush.bf16.msra.mxu0 0
      %929 = vmatpush.bf16.msra.mxu0 %v853
      %930 = vmatmul.bf16.gmra.mxu0 %v838
      %v931 = vpop.f32.mrf.mxu0
      %v932 = vadd.f32 0.0, %v931
      %v933 = vpop.f32.mrf.mxu0
      %934 = vdwg.mxu0
      %935 = vmatpush.bf16.msra.mxu0 0
      %936 = vmatpush.bf16.msra.mxu0 0
      %937 = vmatpush.bf16.msra.mxu0 0
      %938 = vmatpush.bf16.msra.mxu0 0
      %939 = vmatpush.bf16.msra.mxu0 0
      %940 = vmatpush.bf16.msra.mxu0 0
      %941 = vmatpush.bf16.msra.mxu0 0
      %942 = vmatpush.bf16.msra.mxu0 %v856
      %943 = vmatmul.bf16.gmra.mxu0 %v838
      %v944 = vpop.f32.mrf.mxu0
      %v945 = vadd.f32 0.0, %v944
      %v946 = vpop.f32.mrf.mxu0
      %947 = vdwg.mxu0
      %948 = vmatpush.bf16.msra.mxu0 0
      %949 = vmatpush.bf16.msra.mxu0 0
      %950 = vmatpush.bf16.msra.mxu0 0
      %951 = vmatpush.bf16.msra.mxu0 0
      %952 = vmatpush.bf16.msra.mxu0 0
      %953 = vmatpush.bf16.msra.mxu0 0
      %954 = vmatpush.bf16.msra.mxu0 0
      %955 = vmatpush.bf16.msra.mxu0 %v859
      %956 = vmatmul.bf16.gmra.mxu0 %v838
      %v957 = vpop.f32.mrf.mxu0
      %v958 = vadd.f32 0.0, %v957
      %v959 = vpop.f32.mrf.mxu0
      %960 = vdwg.mxu0
      %961 = vmatpush.bf16.msra.mxu0 0
      %962 = vmatpush.bf16.msra.mxu0 0
      %963 = vmatpush.bf16.msra.mxu0 0
      %964 = vmatpush.bf16.msra.mxu0 0
      %965 = vmatpush.bf16.msra.mxu0 0
      %966 = vmatpush.bf16.msra.mxu0 0
      %967 = vmatpush.bf16.msra.mxu0 0
      %968 = vmatpush.bf16.msra.mxu0 %v862
      %969 = vmatmul.bf16.gmra.mxu0 %v838
      %v970 = vpop.f32.mrf.mxu0
      %v971 = vadd.f32 0.0, %v970
      %v972 = vpop.f32.mrf.mxu0
      %973 = vdwg.mxu0
      %974 = vmatpush.bf16.msra.mxu0 0
      %975 = vmatpush.bf16.msra.mxu0 0
      %976 = vmatpush.bf16.msra.mxu0 0
      %977 = vmatpush.bf16.msra.mxu0 0
      %978 = vmatpush.bf16.msra.mxu0 0
      %979 = vmatpush.bf16.msra.mxu0 0
      %980 = vmatpush.bf16.msra.mxu0 0
      %981 = vmatpush.bf16.msra.mxu0 %v865
      %982 = vmatmul.bf16.gmra.mxu0 %v838
      %v983 = vpop.f32.mrf.mxu0
      %v984 = vadd.f32 0.0, %v983
      %v985 = vpop.f32.mrf.mxu0
      %986 = vdwg.mxu0
      %987 = vmatpush.bf16.msra.mxu0 0
      %988 = vmatpush.bf16.msra.mxu0 0
      %989 = vmatpush.bf16.msra.mxu0 0
      %990 = vmatpush.bf16.msra.mxu0 0
      %991 = vmatpush.bf16.msra.mxu0 0
      %992 = vmatpush.bf16.msra.mxu0 0
      %993 = vmatpush.bf16.msra.mxu0 0
      %994 = vmatpush.bf16.msra.mxu0 %v868
      %995 = vmatmul.bf16.gmra.mxu0 %v838
      %v996 = vpop.f32.mrf.mxu0
      %v997 = vadd.f32 0.0, %v996
      %v998 = vpop.f32.mrf.mxu0
      %999 = vdwg.mxu0
      %v1000 = vadd.f32 %v682, %v880
      %v1001 = vadd.f32 %v695, %v893
      %v1002 = vadd.f32 %v708, %v906
      %v1003 = vadd.f32 %v721, %v919
      %v1004 = vadd.f32 %v734, %v932
      %v1005 = vadd.f32 %v747, %v945
      %v1006 = vadd.f32 %v760, %v958
      %v1007 = vadd.f32 %v773, %v971
      %v1008 = vadd.f32 %v786, %v984
      %v1009 = vadd.f32 %v799, %v997
      %s1010 = scalar_lea.vmem %s4, 12
      %v1011 = vld [vmem:[%s1010] sm:$0xf]
      %1012 = vrot.lane.b32.xlu0 %v397, 1
      %v1013 = vpop.permute.xlu0 %1012
      %1014 = vrot.lane.b32.xlu0 %v398, 1
      %v1015 = vpop.permute.xlu0 %1014
      %1016 = vrot.lane.b32.xlu0 %v399, 1
      %v1017 = vpop.permute.xlu0 %1016
      %1018 = vrot.lane.b32.xlu0 %v400, 1
      %v1019 = vpop.permute.xlu0 %1018
      %1020 = vrot.lane.b32.xlu0 %v401, 1
      %v1021 = vpop.permute.xlu0 %1020
      %1022 = vrot.lane.b32.xlu0 %v402, 1
      %v1023 = vpop.permute.xlu0 %1022
      %1024 = vrot.lane.b32.xlu0 %v403, 1
      %v1025 = vpop.permute.xlu0 %1024
      %1026 = vrot.lane.b32.xlu0 %v404, 1
      %v1027 = vpop.permute.xlu0 %1026
      %1028 = vrot.lane.b32.xlu0 %v405, 1
      %v1029 = vpop.permute.xlu0 %1028
      %1030 = vrot.lane.b32.xlu0 %v406, 1
      %v1031 = vpop.permute.xlu0 %1030
      %1032 = vrot.lane.b32.xlu0 %v407, 1
      %v1033 = vpop.permute.xlu0 %1032
      %vm1034 = vcmask 7168
      %v1035 = vsel %vm1034, %v1013, %v1015
      %v1036 = vsel %vm1034, %v1015, %v1017
      %v1037 = vsel %vm1034, %v1017, %v1019
      %v1038 = vsel %vm1034, %v1019, %v1021
      %v1039 = vsel %vm1034, %v1021, %v1023
      %v1040 = vsel %vm1034, %v1023, %v1025
      %v1041 = vsel %vm1034, %v1025, %v1027
      %v1042 = vsel %vm1034, %v1027, %v1029
      %v1043 = vsel %vm1034, %v1029, %v1031
      %v1044 = vsel %vm1034, %v1031, %v1033
      %v1046 = vsel %vm441, %v1011, 0
      %v1049 = vsel %vm445, %v1035, 0
      %v1052 = vsel %vm445, %v1036, 0
      %v1055 = vsel %vm445, %v1037, 0
      %v1058 = vsel %vm445, %v1038, 0
      %v1061 = vsel %vm445, %v1039, 0
      %v1064 = vsel %vm445, %v1040, 0
      %v1067 = vsel %vm445, %v1041, 0
      %v1070 = vsel %vm445, %v1042, 0
      %v1073 = vsel %vm445, %v1043, 0
      %v1076 = vsel %vm445, %v1044, 0
      %1078 = vmatpush.bf16.msra.mxu0 0
      %1079 = vmatpush.bf16.msra.mxu0 0
      %1080 = vmatpush.bf16.msra.mxu0 0
      %1081 = vmatpush.bf16.msra.mxu0 0
      %1082 = vmatpush.bf16.msra.mxu0 0
      %1083 = vmatpush.bf16.msra.mxu0 0
      %1084 = vmatpush.bf16.msra.mxu0 0
      %1085 = vmatpush.bf16.msra.mxu0 %v1049
      %1086 = vmatmul.bf16.gmra.mxu0 %v1046
      %v1087 = vpop.f32.mrf.mxu0
      %v1088 = vadd.f32 0.0, %v1087
      %v1089 = vpop.f32.mrf.mxu0
      %1090 = vdwg.mxu0
      %1091 = vmatpush.bf16.msra.mxu0 0
      %1092 = vmatpush.bf16.msra.mxu0 0
      %1093 = vmatpush.bf16.msra.mxu0 0
      %1094 = vmatpush.bf16.msra.mxu0 0
      %1095 = vmatpush.bf16.msra.mxu0 0
      %1096 = vmatpush.bf16.msra.mxu0 0
      %1097 = vmatpush.bf16.msra.mxu0 0
      %1098 = vmatpush.bf16.msra.mxu0 %v1052
      %1099 = vmatmul.bf16.gmra.mxu0 %v1046
      %v1100 = vpop.f32.mrf.mxu0
      %v1101 = vadd.f32 0.0, %v1100
      %v1102 = vpop.f32.mrf.mxu0
      %1103 = vdwg.mxu0
      %1104 = vmatpush.bf16.msra.mxu0 0
      %1105 = vmatpush.bf16.msra.mxu0 0
      %1106 = vmatpush.bf16.msra.mxu0 0
      %1107 = vmatpush.bf16.msra.mxu0 0
      %1108 = vmatpush.bf16.msra.mxu0 0
      %1109 = vmatpush.bf16.msra.mxu0 0
      %1110 = vmatpush.bf16.msra.mxu0 0
      %1111 = vmatpush.bf16.msra.mxu0 %v1055
      %1112 = vmatmul.bf16.gmra.mxu0 %v1046
      %v1113 = vpop.f32.mrf.mxu0
      %v1114 = vadd.f32 0.0, %v1113
      %v1115 = vpop.f32.mrf.mxu0
      %1116 = vdwg.mxu0
      %1117 = vmatpush.bf16.msra.mxu0 0
      %1118 = vmatpush.bf16.msra.mxu0 0
      %1119 = vmatpush.bf16.msra.mxu0 0
      %1120 = vmatpush.bf16.msra.mxu0 0
      %1121 = vmatpush.bf16.msra.mxu0 0
      %1122 = vmatpush.bf16.msra.mxu0 0
      %1123 = vmatpush.bf16.msra.mxu0 0
      %1124 = vmatpush.bf16.msra.mxu0 %v1058
      %1125 = vmatmul.bf16.gmra.mxu0 %v1046
      %v1126 = vpop.f32.mrf.mxu0
      %v1127 = vadd.f32 0.0, %v1126
      %v1128 = vpop.f32.mrf.mxu0
      %1129 = vdwg.mxu0
      %1130 = vmatpush.bf16.msra.mxu0 0
      %1131 = vmatpush.bf16.msra.mxu0 0
      %1132 = vmatpush.bf16.msra.mxu0 0
      %1133 = vmatpush.bf16.msra.mxu0 0
      %1134 = vmatpush.bf16.msra.mxu0 0
      %1135 = vmatpush.bf16.msra.mxu0 0
      %1136 = vmatpush.bf16.msra.mxu0 0
      %1137 = vmatpush.bf16.msra.mxu0 %v1061
      %1138 = vmatmul.bf16.gmra.mxu0 %v1046
      %v1139 = vpop.f32.mrf.mxu0
      %v1140 = vadd.f32 0.0, %v1139
      %v1141 = vpop.f32.mrf.mxu0
      %1142 = vdwg.mxu0
      %1143 = vmatpush.bf16.msra.mxu0 0
      %1144 = vmatpush.bf16.msra.mxu0 0
      %1145 = vmatpush.bf16.msra.mxu0 0
      %1146 = vmatpush.bf16.msra.mxu0 0
      %1147 = vmatpush.bf16.msra.mxu0 0
      %1148 = vmatpush.bf16.msra.mxu0 0
      %1149 = vmatpush.bf16.msra.mxu0 0
      %1150 = vmatpush.bf16.msra.mxu0 %v1064
      %1151 = vmatmul.bf16.gmra.mxu0 %v1046
      %v1152 = vpop.f32.mrf.mxu0
      %v1153 = vadd.f32 0.0, %v1152
      %v1154 = vpop.f32.mrf.mxu0
      %1155 = vdwg.mxu0
      %1156 = vmatpush.bf16.msra.mxu0 0
      %1157 = vmatpush.bf16.msra.mxu0 0
      %1158 = vmatpush.bf16.msra.mxu0 0
      %1159 = vmatpush.bf16.msra.mxu0 0
      %1160 = vmatpush.bf16.msra.mxu0 0
      %1161 = vmatpush.bf16.msra.mxu0 0
      %1162 = vmatpush.bf16.msra.mxu0 0
      %1163 = vmatpush.bf16.msra.mxu0 %v1067
      %1164 = vmatmul.bf16.gmra.mxu0 %v1046
      %v1165 = vpop.f32.mrf.mxu0
      %v1166 = vadd.f32 0.0, %v1165
      %v1167 = vpop.f32.mrf.mxu0
      %1168 = vdwg.mxu0
      %1169 = vmatpush.bf16.msra.mxu0 0
      %1170 = vmatpush.bf16.msra.mxu0 0
      %1171 = vmatpush.bf16.msra.mxu0 0
      %1172 = vmatpush.bf16.msra.mxu0 0
      %1173 = vmatpush.bf16.msra.mxu0 0
      %1174 = vmatpush.bf16.msra.mxu0 0
      %1175 = vmatpush.bf16.msra.mxu0 0
      %1176 = vmatpush.bf16.msra.mxu0 %v1070
      %1177 = vmatmul.bf16.gmra.mxu0 %v1046
      %v1178 = vpop.f32.mrf.mxu0
      %v1179 = vadd.f32 0.0, %v1178
      %v1180 = vpop.f32.mrf.mxu0
      %1181 = vdwg.mxu0
      %1182 = vmatpush.bf16.msra.mxu0 0
      %1183 = vmatpush.bf16.msra.mxu0 0
      %1184 = vmatpush.bf16.msra.mxu0 0
      %1185 = vmatpush.bf16.msra.mxu0 0
      %1186 = vmatpush.bf16.msra.mxu0 0
      %1187 = vmatpush.bf16.msra.mxu0 0
      %1188 = vmatpush.bf16.msra.mxu0 0
      %1189 = vmatpush.bf16.msra.mxu0 %v1073
      %1190 = vmatmul.bf16.gmra.mxu0 %v1046
      %v1191 = vpop.f32.mrf.mxu0
      %v1192 = vadd.f32 0.0, %v1191
      %v1193 = vpop.f32.mrf.mxu0
      %1194 = vdwg.mxu0
      %1195 = vmatpush.bf16.msra.mxu0 0
      %1196 = vmatpush.bf16.msra.mxu0 0
      %1197 = vmatpush.bf16.msra.mxu0 0
      %1198 = vmatpush.bf16.msra.mxu0 0
      %1199 = vmatpush.bf16.msra.mxu0 0
      %1200 = vmatpush.bf16.msra.mxu0 0
      %1201 = vmatpush.bf16.msra.mxu0 0
      %1202 = vmatpush.bf16.msra.mxu0 %v1076
      %1203 = vmatmul.bf16.gmra.mxu0 %v1046
      %v1204 = vpop.f32.mrf.mxu0
      %v1205 = vadd.f32 0.0, %v1204
      %v1206 = vpop.f32.mrf.mxu0
      %1207 = vdwg.mxu0
      %v1208 = vadd.f32 %v1000, %v1088
      %v1209 = vadd.f32 %v1001, %v1101
      %v1210 = vadd.f32 %v1002, %v1114
      %v1211 = vadd.f32 %v1003, %v1127
      %v1212 = vadd.f32 %v1004, %v1140
      %v1213 = vadd.f32 %v1005, %v1153
      %v1214 = vadd.f32 %v1006, %v1166
      %v1215 = vadd.f32 %v1007, %v1179
      %v1216 = vadd.f32 %v1008, %v1192
      %v1217 = vadd.f32 %v1009, %v1205
      %s1218 = scalar_lea.vmem %s4, 16
      %v1219 = vld [vmem:[%s1218] sm:$0xf]
      %v1220 = vld [vmem:[#allocation2 + $0x4] sm:$0xff]
      %v1221 = vld [vmem:[#allocation2 + $0xc] sm:$0xff]
      %v1222 = vld [vmem:[#allocation2 + $0x14] sm:$0xff]
      %v1223 = vld [vmem:[#allocation2 + $0x1c] sm:$0xff]
      %v1224 = vld [vmem:[#allocation2 + $0x24] sm:$0xff]
      %v1230 = vunpack.c.l.b16 %v1220
      %v1231 = vunpack.c.h.b16 %v1220
      %v1232 = vunpack.c.l.b16 %v1221
      %v1233 = vunpack.c.h.b16 %v1221
      %v1234 = vunpack.c.l.b16 %v1222
      %v1235 = vunpack.c.h.b16 %v1222
      %v1236 = vunpack.c.l.b16 %v1223
      %v1237 = vunpack.c.h.b16 %v1223
      %v1238 = vunpack.c.l.b16 %v1224
      %v1239 = vunpack.c.h.b16 %v1224
      %v1240 = vpack.c.b16 %v1230, %v1230
      %v1241 = vpack.c.b16 %v1231, %v1231
      %v1242 = vpack.c.b16 %v1232, %v1232
      %v1243 = vpack.c.b16 %v1233, %v1233
      %v1244 = vpack.c.b16 %v1234, %v1234
      %v1245 = vpack.c.b16 %v1235, %v1235
      %v1246 = vpack.c.b16 %v1236, %v1236
      %v1247 = vpack.c.b16 %v1237, %v1237
      %v1248 = vpack.c.b16 %v1238, %v1238
      %v1249 = vpack.c.b16 %v1239, %v1239
      %v1251 = vsel %vm441, %v1219, 0
      %v1254 = vsel %vm445, %v1240, 0
      %v1257 = vsel %vm445, %v1241, 0
      %v1260 = vsel %vm445, %v1242, 0
      %v1263 = vsel %vm445, %v1243, 0
      %v1266 = vsel %vm445, %v1244, 0
      %v1269 = vsel %vm445, %v1245, 0
      %v1272 = vsel %vm445, %v1246, 0
      %v1275 = vsel %vm445, %v1247, 0
      %v1278 = vsel %vm445, %v1248, 0
      %v1281 = vsel %vm445, %v1249, 0
      %1283 = vmatpush.bf16.msra.mxu0 0
      %1284 = vmatpush.bf16.msra.mxu0 0
      %1285 = vmatpush.bf16.msra.mxu0 0
      %1286 = vmatpush.bf16.msra.mxu0 0
      %1287 = vmatpush.bf16.msra.mxu0 0
      %1288 = vmatpush.bf16.msra.mxu0 0
      %1289 = vmatpush.bf16.msra.mxu0 0
      %1290 = vmatpush.bf16.msra.mxu0 %v1254
      %1291 = vmatmul.bf16.gmra.mxu0 %v1251
      %v1292 = vpop.f32.mrf.mxu0
      %v1293 = vadd.f32 0.0, %v1292
      %v1294 = vpop.f32.mrf.mxu0
      %1295 = vdwg.mxu0
      %1296 = vmatpush.bf16.msra.mxu0 0
      %1297 = vmatpush.bf16.msra.mxu0 0
      %1298 = vmatpush.bf16.msra.mxu0 0
      %1299 = vmatpush.bf16.msra.mxu0 0
      %1300 = vmatpush.bf16.msra.mxu0 0
      %1301 = vmatpush.bf16.msra.mxu0 0
      %1302 = vmatpush.bf16.msra.mxu0 0
      %1303 = vmatpush.bf16.msra.mxu0 %v1257
      %1304 = vmatmul.bf16.gmra.mxu0 %v1251
      %v1305 = vpop.f32.mrf.mxu0
      %v1306 = vadd.f32 0.0, %v1305
      %v1307 = vpop.f32.mrf.mxu0
      %1308 = vdwg.mxu0
      %1309 = vmatpush.bf16.msra.mxu0 0
      %1310 = vmatpush.bf16.msra.mxu0 0
      %1311 = vmatpush.bf16.msra.mxu0 0
      %1312 = vmatpush.bf16.msra.mxu0 0
      %1313 = vmatpush.bf16.msra.mxu0 0
      %1314 = vmatpush.bf16.msra.mxu0 0
      %1315 = vmatpush.bf16.msra.mxu0 0
      %1316 = vmatpush.bf16.msra.mxu0 %v1260
      %1317 = vmatmul.bf16.gmra.mxu0 %v1251
      %v1318 = vpop.f32.mrf.mxu0
      %v1319 = vadd.f32 0.0, %v1318
      %v1320 = vpop.f32.mrf.mxu0
      %1321 = vdwg.mxu0
      %1322 = vmatpush.bf16.msra.mxu0 0
      %1323 = vmatpush.bf16.msra.mxu0 0
      %1324 = vmatpush.bf16.msra.mxu0 0
      %1325 = vmatpush.bf16.msra.mxu0 0
      %1326 = vmatpush.bf16.msra.mxu0 0
      %1327 = vmatpush.bf16.msra.mxu0 0
      %1328 = vmatpush.bf16.msra.mxu0 0
      %1329 = vmatpush.bf16.msra.mxu0 %v1263
      %1330 = vmatmul.bf16.gmra.mxu0 %v1251
      %v1331 = vpop.f32.mrf.mxu0
      %v1332 = vadd.f32 0.0, %v1331
      %v1333 = vpop.f32.mrf.mxu0
      %1334 = vdwg.mxu0
      %1335 = vmatpush.bf16.msra.mxu0 0
      %1336 = vmatpush.bf16.msra.mxu0 0
      %1337 = vmatpush.bf16.msra.mxu0 0
      %1338 = vmatpush.bf16.msra.mxu0 0
      %1339 = vmatpush.bf16.msra.mxu0 0
      %1340 = vmatpush.bf16.msra.mxu0 0
      %1341 = vmatpush.bf16.msra.mxu0 0
      %1342 = vmatpush.bf16.msra.mxu0 %v1266
      %1343 = vmatmul.bf16.gmra.mxu0 %v1251
      %v1344 = vpop.f32.mrf.mxu0
      %v1345 = vadd.f32 0.0, %v1344
      %v1346 = vpop.f32.mrf.mxu0
      %1347 = vdwg.mxu0
      %1348 = vmatpush.bf16.msra.mxu0 0
      %1349 = vmatpush.bf16.msra.mxu0 0
      %1350 = vmatpush.bf16.msra.mxu0 0
      %1351 = vmatpush.bf16.msra.mxu0 0
      %1352 = vmatpush.bf16.msra.mxu0 0
      %1353 = vmatpush.bf16.msra.mxu0 0
      %1354 = vmatpush.bf16.msra.mxu0 0
      %1355 = vmatpush.bf16.msra.mxu0 %v1269
      %1356 = vmatmul.bf16.gmra.mxu0 %v1251
      %v1357 = vpop.f32.mrf.mxu0
      %v1358 = vadd.f32 0.0, %v1357
      %v1359 = vpop.f32.mrf.mxu0
      %1360 = vdwg.mxu0
      %1361 = vmatpush.bf16.msra.mxu0 0
      %1362 = vmatpush.bf16.msra.mxu0 0
      %1363 = vmatpush.bf16.msra.mxu0 0
      %1364 = vmatpush.bf16.msra.mxu0 0
      %1365 = vmatpush.bf16.msra.mxu0 0
      %1366 = vmatpush.bf16.msra.mxu0 0
      %1367 = vmatpush.bf16.msra.mxu0 0
      %1368 = vmatpush.bf16.msra.mxu0 %v1272
      %1369 = vmatmul.bf16.gmra.mxu0 %v1251
      %v1370 = vpop.f32.mrf.mxu0
      %v1371 = vadd.f32 0.0, %v1370
      %v1372 = vpop.f32.mrf.mxu0
      %1373 = vdwg.mxu0
      %1374 = vmatpush.bf16.msra.mxu0 0
      %1375 = vmatpush.bf16.msra.mxu0 0
      %1376 = vmatpush.bf16.msra.mxu0 0
      %1377 = vmatpush.bf16.msra.mxu0 0
      %1378 = vmatpush.bf16.msra.mxu0 0
      %1379 = vmatpush.bf16.msra.mxu0 0
      %1380 = vmatpush.bf16.msra.mxu0 0
      %1381 = vmatpush.bf16.msra.mxu0 %v1275
      %1382 = vmatmul.bf16.gmra.mxu0 %v1251
      %v1383 = vpop.f32.mrf.mxu0
      %v1384 = vadd.f32 0.0, %v1383
      %v1385 = vpop.f32.mrf.mxu0
      %1386 = vdwg.mxu0
      %1387 = vmatpush.bf16.msra.mxu0 0
      %1388 = vmatpush.bf16.msra.mxu0 0
      %1389 = vmatpush.bf16.msra.mxu0 0
      %1390 = vmatpush.bf16.msra.mxu0 0
      %1391 = vmatpush.bf16.msra.mxu0 0
      %1392 = vmatpush.bf16.msra.mxu0 0
      %1393 = vmatpush.bf16.msra.mxu0 0
      %1394 = vmatpush.bf16.msra.mxu0 %v1278
      %1395 = vmatmul.bf16.gmra.mxu0 %v1251
      %v1396 = vpop.f32.mrf.mxu0
      %v1397 = vadd.f32 0.0, %v1396
      %v1398 = vpop.f32.mrf.mxu0
      %1399 = vdwg.mxu0
      %1400 = vmatpush.bf16.msra.mxu0 0
      %1401 = vmatpush.bf16.msra.mxu0 0
      %1402 = vmatpush.bf16.msra.mxu0 0
      %1403 = vmatpush.bf16.msra.mxu0 0
      %1404 = vmatpush.bf16.msra.mxu0 0
      %1405 = vmatpush.bf16.msra.mxu0 0
      %1406 = vmatpush.bf16.msra.mxu0 0
      %1407 = vmatpush.bf16.msra.mxu0 %v1281
      %1408 = vmatmul.bf16.gmra.mxu0 %v1251
      %v1409 = vpop.f32.mrf.mxu0
      %v1410 = vadd.f32 0.0, %v1409
      %v1411 = vpop.f32.mrf.mxu0
      %1412 = vdwg.mxu0
      %v1413 = vadd.f32 %v1208, %v1293
      %v1414 = vadd.f32 %v1209, %v1306
      %v1415 = vadd.f32 %v1210, %v1319
      %v1416 = vadd.f32 %v1211, %v1332
      %v1417 = vadd.f32 %v1212, %v1345
      %v1418 = vadd.f32 %v1213, %v1358
      %v1419 = vadd.f32 %v1214, %v1371
      %v1420 = vadd.f32 %v1215, %v1384
      %v1421 = vadd.f32 %v1216, %v1397
      %v1422 = vadd.f32 %v1217, %v1410
      %s1423 = scalar_lea.vmem %s4, 20
      %v1424 = vld [vmem:[%s1423] sm:$0xf]
      %v1425 = vld [vmem:[#allocation2 + $0x4] sm:$0xff]
      %v1426 = vld [vmem:[#allocation2 + $0xc] sm:$0xff]
      %v1427 = vld [vmem:[#allocation2 + $0x14] sm:$0xff]
      %v1428 = vld [vmem:[#allocation2 + $0x1c] sm:$0xff]
      %v1429 = vld [vmem:[#allocation2 + $0x24] sm:$0xff]
      %v1430 = vld [vmem:[#allocation2 + $0x2c] sm:$0xf]
      %v1437 = vunpack.c.l.b16 %v1425
      %v1438 = vunpack.c.h.b16 %v1425
      %v1439 = vunpack.c.l.b16 %v1426
      %v1440 = vunpack.c.h.b16 %v1426
      %v1441 = vunpack.c.l.b16 %v1427
      %v1442 = vunpack.c.h.b16 %v1427
      %v1443 = vunpack.c.l.b16 %v1428
      %v1444 = vunpack.c.h.b16 %v1428
      %v1445 = vunpack.c.l.b16 %v1429
      %v1446 = vunpack.c.h.b16 %v1429
      %v1447 = vunpack.c.l.b16 %v1430
      %v1448 = vpack.c.b16 %v1437, %v1437
      %v1449 = vpack.c.b16 %v1438, %v1438
      %v1450 = vpack.c.b16 %v1439, %v1439
      %v1451 = vpack.c.b16 %v1440, %v1440
      %v1452 = vpack.c.b16 %v1441, %v1441
      %v1453 = vpack.c.b16 %v1442, %v1442
      %v1454 = vpack.c.b16 %v1443, %v1443
      %v1455 = vpack.c.b16 %v1444, %v1444
      %v1456 = vpack.c.b16 %v1445, %v1445
      %v1457 = vpack.c.b16 %v1446, %v1446
      %v1458 = vpack.c.b16 %v1447, %v1447
      %1459 = vrot.lane.b32.xlu0 %v1448, 127
      %v1460 = vpop.permute.xlu0 %1459
      %1461 = vrot.lane.b32.xlu0 %v1449, 127
      %v1462 = vpop.permute.xlu0 %1461
      %1463 = vrot.lane.b32.xlu0 %v1450, 127
      %v1464 = vpop.permute.xlu0 %1463
      %1465 = vrot.lane.b32.xlu0 %v1451, 127
      %v1466 = vpop.permute.xlu0 %1465
      %1467 = vrot.lane.b32.xlu0 %v1452, 127
      %v1468 = vpop.permute.xlu0 %1467
      %1469 = vrot.lane.b32.xlu0 %v1453, 127
      %v1470 = vpop.permute.xlu0 %1469
      %1471 = vrot.lane.b32.xlu0 %v1454, 127
      %v1472 = vpop.permute.xlu0 %1471
      %1473 = vrot.lane.b32.xlu0 %v1455, 127
      %v1474 = vpop.permute.xlu0 %1473
      %1475 = vrot.lane.b32.xlu0 %v1456, 127
      %v1476 = vpop.permute.xlu0 %1475
      %1477 = vrot.lane.b32.xlu0 %v1457, 127
      %v1478 = vpop.permute.xlu0 %1477
      %1479 = vrot.lane.b32.xlu0 %v1458, 127
      %v1480 = vpop.permute.xlu0 %1479
      %vm1481 = vcmask 1039360
      %v1482 = vsel %vm1481, %v1460, %v1462
      %v1483 = vsel %vm1481, %v1462, %v1464
      %v1484 = vsel %vm1481, %v1464, %v1466
      %v1485 = vsel %vm1481, %v1466, %v1468
      %v1486 = vsel %vm1481, %v1468, %v1470
      %v1487 = vsel %vm1481, %v1470, %v1472
      %v1488 = vsel %vm1481, %v1472, %v1474
      %v1489 = vsel %vm1481, %v1474, %v1476
      %v1490 = vsel %vm1481, %v1476, %v1478
      %v1491 = vsel %vm1481, %v1478, %v1480
      %v1493 = vsel %vm441, %v1424, 0
      %v1496 = vsel %vm445, %v1482, 0
      %v1499 = vsel %vm445, %v1483, 0
      %v1502 = vsel %vm445, %v1484, 0
      %v1505 = vsel %vm445, %v1485, 0
      %v1508 = vsel %vm445, %v1486, 0
      %v1511 = vsel %vm445, %v1487, 0
      %v1514 = vsel %vm445, %v1488, 0
      %v1517 = vsel %vm445, %v1489, 0
      %v1520 = vsel %vm445, %v1490, 0
      %v1523 = vsel %vm445, %v1491, 0
      %1525 = vmatpush.bf16.msra.mxu0 0
      %1526 = vmatpush.bf16.msra.mxu0 0
      %1527 = vmatpush.bf16.msra.mxu0 0
      %1528 = vmatpush.bf16.msra.mxu0 0
      %1529 = vmatpush.bf16.msra.mxu0 0
      %1530 = vmatpush.bf16.msra.mxu0 0
      %1531 = vmatpush.bf16.msra.mxu0 0
      %1532 = vmatpush.bf16.msra.mxu0 %v1496
      %1533 = vmatmul.bf16.gmra.mxu0 %v1493
      %v1534 = vpop.f32.mrf.mxu0
      %v1535 = vadd.f32 0.0, %v1534
      %v1536 = vpop.f32.mrf.mxu0
      %1537 = vdwg.mxu0
      %1538 = vmatpush.bf16.msra.mxu0 0
      %1539 = vmatpush.bf16.msra.mxu0 0
      %1540 = vmatpush.bf16.msra.mxu0 0
      %1541 = vmatpush.bf16.msra.mxu0 0
      %1542 = vmatpush.bf16.msra.mxu0 0
      %1543 = vmatpush.bf16.msra.mxu0 0
      %1544 = vmatpush.bf16.msra.mxu0 0
      %1545 = vmatpush.bf16.msra.mxu0 %v1499
      %1546 = vmatmul.bf16.gmra.mxu0 %v1493
      %v1547 = vpop.f32.mrf.mxu0
      %v1548 = vadd.f32 0.0, %v1547
      %v1549 = vpop.f32.mrf.mxu0
      %1550 = vdwg.mxu0
      %1551 = vmatpush.bf16.msra.mxu0 0
      %1552 = vmatpush.bf16.msra.mxu0 0
      %1553 = vmatpush.bf16.msra.mxu0 0
      %1554 = vmatpush.bf16.msra.mxu0 0
      %1555 = vmatpush.bf16.msra.mxu0 0
      %1556 = vmatpush.bf16.msra.mxu0 0
      %1557 = vmatpush.bf16.msra.mxu0 0
      %1558 = vmatpush.bf16.msra.mxu0 %v1502
      %1559 = vmatmul.bf16.gmra.mxu0 %v1493
      %v1560 = vpop.f32.mrf.mxu0
      %v1561 = vadd.f32 0.0, %v1560
      %v1562 = vpop.f32.mrf.mxu0
      %1563 = vdwg.mxu0
      %1564 = vmatpush.bf16.msra.mxu0 0
      %1565 = vmatpush.bf16.msra.mxu0 0
      %1566 = vmatpush.bf16.msra.mxu0 0
      %1567 = vmatpush.bf16.msra.mxu0 0
      %1568 = vmatpush.bf16.msra.mxu0 0
      %1569 = vmatpush.bf16.msra.mxu0 0
      %1570 = vmatpush.bf16.msra.mxu0 0
      %1571 = vmatpush.bf16.msra.mxu0 %v1505
      %1572 = vmatmul.bf16.gmra.mxu0 %v1493
      %v1573 = vpop.f32.mrf.mxu0
      %v1574 = vadd.f32 0.0, %v1573
      %v1575 = vpop.f32.mrf.mxu0
      %1576 = vdwg.mxu0
      %1577 = vmatpush.bf16.msra.mxu0 0
      %1578 = vmatpush.bf16.msra.mxu0 0
      %1579 = vmatpush.bf16.msra.mxu0 0
      %1580 = vmatpush.bf16.msra.mxu0 0
      %1581 = vmatpush.bf16.msra.mxu0 0
      %1582 = vmatpush.bf16.msra.mxu0 0
      %1583 = vmatpush.bf16.msra.mxu0 0
      %1584 = vmatpush.bf16.msra.mxu0 %v1508
      %1585 = vmatmul.bf16.gmra.mxu0 %v1493
      %v1586 = vpop.f32.mrf.mxu0
      %v1587 = vadd.f32 0.0, %v1586
      %v1588 = vpop.f32.mrf.mxu0
      %1589 = vdwg.mxu0
      %1590 = vmatpush.bf16.msra.mxu0 0
      %1591 = vmatpush.bf16.msra.mxu0 0
      %1592 = vmatpush.bf16.msra.mxu0 0
      %1593 = vmatpush.bf16.msra.mxu0 0
      %1594 = vmatpush.bf16.msra.mxu0 0
      %1595 = vmatpush.bf16.msra.mxu0 0
      %1596 = vmatpush.bf16.msra.mxu0 0
      %1597 = vmatpush.bf16.msra.mxu0 %v1511
      %1598 = vmatmul.bf16.gmra.mxu0 %v1493
      %v1599 = vpop.f32.mrf.mxu0
      %v1600 = vadd.f32 0.0, %v1599
      %v1601 = vpop.f32.mrf.mxu0
      %1602 = vdwg.mxu0
      %1603 = vmatpush.bf16.msra.mxu0 0
      %1604 = vmatpush.bf16.msra.mxu0 0
      %1605 = vmatpush.bf16.msra.mxu0 0
      %1606 = vmatpush.bf16.msra.mxu0 0
      %1607 = vmatpush.bf16.msra.mxu0 0
      %1608 = vmatpush.bf16.msra.mxu0 0
      %1609 = vmatpush.bf16.msra.mxu0 0
      %1610 = vmatpush.bf16.msra.mxu0 %v1514
      %1611 = vmatmul.bf16.gmra.mxu0 %v1493
      %v1612 = vpop.f32.mrf.mxu0
      %v1613 = vadd.f32 0.0, %v1612
      %v1614 = vpop.f32.mrf.mxu0
      %1615 = vdwg.mxu0
      %1616 = vmatpush.bf16.msra.mxu0 0
      %1617 = vmatpush.bf16.msra.mxu0 0
      %1618 = vmatpush.bf16.msra.mxu0 0
      %1619 = vmatpush.bf16.msra.mxu0 0
      %1620 = vmatpush.bf16.msra.mxu0 0
      %1621 = vmatpush.bf16.msra.mxu0 0
      %1622 = vmatpush.bf16.msra.mxu0 0
      %1623 = vmatpush.bf16.msra.mxu0 %v1517
      %1624 = vmatmul.bf16.gmra.mxu0 %v1493
      %v1625 = vpop.f32.mrf.mxu0
      %v1626 = vadd.f32 0.0, %v1625
      %v1627 = vpop.f32.mrf.mxu0
      %1628 = vdwg.mxu0
      %1629 = vmatpush.bf16.msra.mxu0 0
      %1630 = vmatpush.bf16.msra.mxu0 0
      %1631 = vmatpush.bf16.msra.mxu0 0
      %1632 = vmatpush.bf16.msra.mxu0 0
      %1633 = vmatpush.bf16.msra.mxu0 0
      %1634 = vmatpush.bf16.msra.mxu0 0
      %1635 = vmatpush.bf16.msra.mxu0 0
      %1636 = vmatpush.bf16.msra.mxu0 %v1520
      %1637 = vmatmul.bf16.gmra.mxu0 %v1493
      %v1638 = vpop.f32.mrf.mxu0
      %v1639 = vadd.f32 0.0, %v1638
      %v1640 = vpop.f32.mrf.mxu0
      %1641 = vdwg.mxu0
      %1642 = vmatpush.bf16.msra.mxu0 0
      %1643 = vmatpush.bf16.msra.mxu0 0
      %1644 = vmatpush.bf16.msra.mxu0 0
      %1645 = vmatpush.bf16.msra.mxu0 0
      %1646 = vmatpush.bf16.msra.mxu0 0
      %1647 = vmatpush.bf16.msra.mxu0 0
      %1648 = vmatpush.bf16.msra.mxu0 0
      %1649 = vmatpush.bf16.msra.mxu0 %v1523
      %1650 = vmatmul.bf16.gmra.mxu0 %v1493
      %v1651 = vpop.f32.mrf.mxu0
      %v1652 = vadd.f32 0.0, %v1651
      %v1653 = vpop.f32.mrf.mxu0
      %1654 = vdwg.mxu0
      %v1655 = vadd.f32 %v1413, %v1535
      %v1656 = vadd.f32 %v1414, %v1548
      %v1657 = vadd.f32 %v1415, %v1561
      %v1658 = vadd.f32 %v1416, %v1574
      %v1659 = vadd.f32 %v1417, %v1587
      %v1660 = vadd.f32 %v1418, %v1600
      %v1661 = vadd.f32 %v1419, %v1613
      %v1662 = vadd.f32 %v1420, %v1626
      %v1663 = vadd.f32 %v1421, %v1639
      %v1664 = vadd.f32 %v1422, %v1652
      %s1665 = scalar_lea.vmem %s4, 24
      %v1666 = vld [vmem:[%s1665] sm:$0xf]
      %1667 = vrot.lane.b32.xlu0 %v1448, 95
      %v1668 = vpop.permute.xlu0 %1667
      %1669 = vrot.lane.b32.xlu0 %v1449, 95
      %v1670 = vpop.permute.xlu0 %1669
      %1671 = vrot.lane.b32.xlu0 %v1450, 95
      %v1672 = vpop.permute.xlu0 %1671
      %1673 = vrot.lane.b32.xlu0 %v1451, 95
      %v1674 = vpop.permute.xlu0 %1673
      %1675 = vrot.lane.b32.xlu0 %v1452, 95
      %v1676 = vpop.permute.xlu0 %1675
      %1677 = vrot.lane.b32.xlu0 %v1453, 95
      %v1678 = vpop.permute.xlu0 %1677
      %1679 = vrot.lane.b32.xlu0 %v1454, 95
      %v1680 = vpop.permute.xlu0 %1679
      %1681 = vrot.lane.b32.xlu0 %v1455, 95
      %v1682 = vpop.permute.xlu0 %1681
      %1683 = vrot.lane.b32.xlu0 %v1456, 95
      %v1684 = vpop.permute.xlu0 %1683
      %1685 = vrot.lane.b32.xlu0 %v1457, 95
      %v1686 = vpop.permute.xlu0 %1685
      %1687 = vrot.lane.b32.xlu0 %v1458, 95
      %v1688 = vpop.permute.xlu0 %1687
      %vm1689 = vcmask 777216
      %v1690 = vsel %vm1689, %v1668, %v1670
      %v1691 = vsel %vm1689, %v1670, %v1672
      %v1692 = vsel %vm1689, %v1672, %v1674
      %v1693 = vsel %vm1689, %v1674, %v1676
      %v1694 = vsel %vm1689, %v1676, %v1678
      %v1695 = vsel %vm1689, %v1678, %v1680
      %v1696 = vsel %vm1689, %v1680, %v1682
      %v1697 = vsel %vm1689, %v1682, %v1684
      %v1698 = vsel %vm1689, %v1684, %v1686
      %v1699 = vsel %vm1689, %v1686, %v1688
      %v1701 = vsel %vm441, %v1666, 0
      %v1704 = vsel %vm445, %v1690, 0
      %v1707 = vsel %vm445, %v1691, 0
      %v1710 = vsel %vm445, %v1692, 0
      %v1713 = vsel %vm445, %v1693, 0
      %v1716 = vsel %vm445, %v1694, 0
      %v1719 = vsel %vm445, %v1695, 0
      %v1722 = vsel %vm445, %v1696, 0
      %v1725 = vsel %vm445, %v1697, 0
      %v1728 = vsel %vm445, %v1698, 0
      %v1731 = vsel %vm445, %v1699, 0
      %1733 = vmatpush.bf16.msra.mxu0 0
      %1734 = vmatpush.bf16.msra.mxu0 0
      %1735 = vmatpush.bf16.msra.mxu0 0
      %1736 = vmatpush.bf16.msra.mxu0 0
      %1737 = vmatpush.bf16.msra.mxu0 0
      %1738 = vmatpush.bf16.msra.mxu0 0
      %1739 = vmatpush.bf16.msra.mxu0 0
      %1740 = vmatpush.bf16.msra.mxu0 %v1704
      %1741 = vmatmul.bf16.gmra.mxu0 %v1701
      %v1742 = vpop.f32.mrf.mxu0
      %v1743 = vadd.f32 0.0, %v1742
      %v1744 = vpop.f32.mrf.mxu0
      %1745 = vdwg.mxu0
      %1746 = vmatpush.bf16.msra.mxu0 0
      %1747 = vmatpush.bf16.msra.mxu0 0
      %1748 = vmatpush.bf16.msra.mxu0 0
      %1749 = vmatpush.bf16.msra.mxu0 0
      %1750 = vmatpush.bf16.msra.mxu0 0
      %1751 = vmatpush.bf16.msra.mxu0 0
      %1752 = vmatpush.bf16.msra.mxu0 0
      %1753 = vmatpush.bf16.msra.mxu0 %v1707
      %1754 = vmatmul.bf16.gmra.mxu0 %v1701
      %v1755 = vpop.f32.mrf.mxu0
      %v1756 = vadd.f32 0.0, %v1755
      %v1757 = vpop.f32.mrf.mxu0
      %1758 = vdwg.mxu0
      %1759 = vmatpush.bf16.msra.mxu0 0
      %1760 = vmatpush.bf16.msra.mxu0 0
      %1761 = vmatpush.bf16.msra.mxu0 0
      %1762 = vmatpush.bf16.msra.mxu0 0
      %1763 = vmatpush.bf16.msra.mxu0 0
      %1764 = vmatpush.bf16.msra.mxu0 0
      %1765 = vmatpush.bf16.msra.mxu0 0
      %1766 = vmatpush.bf16.msra.mxu0 %v1710
      %1767 = vmatmul.bf16.gmra.mxu0 %v1701
      %v1768 = vpop.f32.mrf.mxu0
      %v1769 = vadd.f32 0.0, %v1768
      %v1770 = vpop.f32.mrf.mxu0
      %1771 = vdwg.mxu0
      %1772 = vmatpush.bf16.msra.mxu0 0
      %1773 = vmatpush.bf16.msra.mxu0 0
      %1774 = vmatpush.bf16.msra.mxu0 0
      %1775 = vmatpush.bf16.msra.mxu0 0
      %1776 = vmatpush.bf16.msra.mxu0 0
      %1777 = vmatpush.bf16.msra.mxu0 0
      %1778 = vmatpush.bf16.msra.mxu0 0
      %1779 = vmatpush.bf16.msra.mxu0 %v1713
      %1780 = vmatmul.bf16.gmra.mxu0 %v1701
      %v1781 = vpop.f32.mrf.mxu0
      %v1782 = vadd.f32 0.0, %v1781
      %v1783 = vpop.f32.mrf.mxu0
      %1784 = vdwg.mxu0
      %1785 = vmatpush.bf16.msra.mxu0 0
      %1786 = vmatpush.bf16.msra.mxu0 0
      %1787 = vmatpush.bf16.msra.mxu0 0
      %1788 = vmatpush.bf16.msra.mxu0 0
      %1789 = vmatpush.bf16.msra.mxu0 0
      %1790 = vmatpush.bf16.msra.mxu0 0
      %1791 = vmatpush.bf16.msra.mxu0 0
      %1792 = vmatpush.bf16.msra.mxu0 %v1716
      %1793 = vmatmul.bf16.gmra.mxu0 %v1701
      %v1794 = vpop.f32.mrf.mxu0
      %v1795 = vadd.f32 0.0, %v1794
      %v1796 = vpop.f32.mrf.mxu0
      %1797 = vdwg.mxu0
      %1798 = vmatpush.bf16.msra.mxu0 0
      %1799 = vmatpush.bf16.msra.mxu0 0
      %1800 = vmatpush.bf16.msra.mxu0 0
      %1801 = vmatpush.bf16.msra.mxu0 0
      %1802 = vmatpush.bf16.msra.mxu0 0
      %1803 = vmatpush.bf16.msra.mxu0 0
      %1804 = vmatpush.bf16.msra.mxu0 0
      %1805 = vmatpush.bf16.msra.mxu0 %v1719
      %1806 = vmatmul.bf16.gmra.mxu0 %v1701
      %v1807 = vpop.f32.mrf.mxu0
      %v1808 = vadd.f32 0.0, %v1807
      %v1809 = vpop.f32.mrf.mxu0
      %1810 = vdwg.mxu0
      %1811 = vmatpush.bf16.msra.mxu0 0
      %1812 = vmatpush.bf16.msra.mxu0 0
      %1813 = vmatpush.bf16.msra.mxu0 0
      %1814 = vmatpush.bf16.msra.mxu0 0
      %1815 = vmatpush.bf16.msra.mxu0 0
      %1816 = vmatpush.bf16.msra.mxu0 0
      %1817 = vmatpush.bf16.msra.mxu0 0
      %1818 = vmatpush.bf16.msra.mxu0 %v1722
      %1819 = vmatmul.bf16.gmra.mxu0 %v1701
      %v1820 = vpop.f32.mrf.mxu0
      %v1821 = vadd.f32 0.0, %v1820
      %v1822 = vpop.f32.mrf.mxu0
      %1823 = vdwg.mxu0
      %1824 = vmatpush.bf16.msra.mxu0 0
      %1825 = vmatpush.bf16.msra.mxu0 0
      %1826 = vmatpush.bf16.msra.mxu0 0
      %1827 = vmatpush.bf16.msra.mxu0 0
      %1828 = vmatpush.bf16.msra.mxu0 0
      %1829 = vmatpush.bf16.msra.mxu0 0
      %1830 = vmatpush.bf16.msra.mxu0 0
      %1831 = vmatpush.bf16.msra.mxu0 %v1725
      %1832 = vmatmul.bf16.gmra.mxu0 %v1701
      %v1833 = vpop.f32.mrf.mxu0
      %v1834 = vadd.f32 0.0, %v1833
      %v1835 = vpop.f32.mrf.mxu0
      %1836 = vdwg.mxu0
      %1837 = vmatpush.bf16.msra.mxu0 0
      %1838 = vmatpush.bf16.msra.mxu0 0
      %1839 = vmatpush.bf16.msra.mxu0 0
      %1840 = vmatpush.bf16.msra.mxu0 0
      %1841 = vmatpush.bf16.msra.mxu0 0
      %1842 = vmatpush.bf16.msra.mxu0 0
      %1843 = vmatpush.bf16.msra.mxu0 0
      %1844 = vmatpush.bf16.msra.mxu0 %v1728
      %1845 = vmatmul.bf16.gmra.mxu0 %v1701
      %v1846 = vpop.f32.mrf.mxu0
      %v1847 = vadd.f32 0.0, %v1846
      %v1848 = vpop.f32.mrf.mxu0
      %1849 = vdwg.mxu0
      %1850 = vmatpush.bf16.msra.mxu0 0
      %1851 = vmatpush.bf16.msra.mxu0 0
      %1852 = vmatpush.bf16.msra.mxu0 0
      %1853 = vmatpush.bf16.msra.mxu0 0
      %1854 = vmatpush.bf16.msra.mxu0 0
      %1855 = vmatpush.bf16.msra.mxu0 0
      %1856 = vmatpush.bf16.msra.mxu0 0
      %1857 = vmatpush.bf16.msra.mxu0 %v1731
      %1858 = vmatmul.bf16.gmra.mxu0 %v1701
      %v1859 = vpop.f32.mrf.mxu0
      %v1860 = vadd.f32 0.0, %v1859
      %v1861 = vpop.f32.mrf.mxu0
      %1862 = vdwg.mxu0
      %v1863 = vadd.f32 %v1655, %v1743
      %v1864 = vadd.f32 %v1656, %v1756
      %v1865 = vadd.f32 %v1657, %v1769
      %v1866 = vadd.f32 %v1658, %v1782
      %v1867 = vadd.f32 %v1659, %v1795
      %v1868 = vadd.f32 %v1660, %v1808
      %v1869 = vadd.f32 %v1661, %v1821
      %v1870 = vadd.f32 %v1662, %v1834
      %v1871 = vadd.f32 %v1663, %v1847
      %v1872 = vadd.f32 %v1664, %v1860
      %s1873 = scalar_lea.vmem %s4, 28
      %v1874 = vld [vmem:[%s1873] sm:$0xf]
      %1875 = vrot.lane.b32.xlu0 %v1448, 94
      %v1876 = vpop.permute.xlu0 %1875
      %1877 = vrot.lane.b32.xlu0 %v1449, 94
      %v1878 = vpop.permute.xlu0 %1877
      %1879 = vrot.lane.b32.xlu0 %v1450, 94
      %v1880 = vpop.permute.xlu0 %1879
      %1881 = vrot.lane.b32.xlu0 %v1451, 94
      %v1882 = vpop.permute.xlu0 %1881
      %1883 = vrot.lane.b32.xlu0 %v1452, 94
      %v1884 = vpop.permute.xlu0 %1883
      %1885 = vrot.lane.b32.xlu0 %v1453, 94
      %v1886 = vpop.permute.xlu0 %1885
      %1887 = vrot.lane.b32.xlu0 %v1454, 94
      %v1888 = vpop.permute.xlu0 %1887
      %1889 = vrot.lane.b32.xlu0 %v1455, 94
      %v1890 = vpop.permute.xlu0 %1889
      %1891 = vrot.lane.b32.xlu0 %v1456, 94
      %v1892 = vpop.permute.xlu0 %1891
      %1893 = vrot.lane.b32.xlu0 %v1457, 94
      %v1894 = vpop.permute.xlu0 %1893
      %1895 = vrot.lane.b32.xlu0 %v1458, 94
      %v1896 = vpop.permute.xlu0 %1895
      %vm1897 = vcmask 769024
      %v1898 = vsel %vm1897, %v1876, %v1878
      %v1899 = vsel %vm1897, %v1878, %v1880
      %v1900 = vsel %vm1897, %v1880, %v1882
      %v1901 = vsel %vm1897, %v1882, %v1884
      %v1902 = vsel %vm1897, %v1884, %v1886
      %v1903 = vsel %vm1897, %v1886, %v1888
      %v1904 = vsel %vm1897, %v1888, %v1890
      %v1905 = vsel %vm1897, %v1890, %v1892
      %v1906 = vsel %vm1897, %v1892, %v1894
      %v1907 = vsel %vm1897, %v1894, %v1896
      %v1909 = vsel %vm441, %v1874, 0
      %v1912 = vsel %vm445, %v1898, 0
      %v1915 = vsel %vm445, %v1899, 0
      %v1918 = vsel %vm445, %v1900, 0
      %v1921 = vsel %vm445, %v1901, 0
      %v1924 = vsel %vm445, %v1902, 0
      %v1927 = vsel %vm445, %v1903, 0
      %v1930 = vsel %vm445, %v1904, 0
      %v1933 = vsel %vm445, %v1905, 0
      %v1936 = vsel %vm445, %v1906, 0
      %v1939 = vsel %vm445, %v1907, 0
      %1941 = vmatpush.bf16.msra.mxu0 0
      %1942 = vmatpush.bf16.msra.mxu0 0
      %1943 = vmatpush.bf16.msra.mxu0 0
      %1944 = vmatpush.bf16.msra.mxu0 0
      %1945 = vmatpush.bf16.msra.mxu0 0
      %1946 = vmatpush.bf16.msra.mxu0 0
      %1947 = vmatpush.bf16.msra.mxu0 0
      %1948 = vmatpush.bf16.msra.mxu0 %v1912
      %1949 = vmatmul.bf16.gmra.mxu0 %v1909
      %v1950 = vpop.f32.mrf.mxu0
      %v1951 = vadd.f32 0.0, %v1950
      %v1952 = vpop.f32.mrf.mxu0
      %1953 = vdwg.mxu0
      %1954 = vmatpush.bf16.msra.mxu0 0
      %1955 = vmatpush.bf16.msra.mxu0 0
      %1956 = vmatpush.bf16.msra.mxu0 0
      %1957 = vmatpush.bf16.msra.mxu0 0
      %1958 = vmatpush.bf16.msra.mxu0 0
      %1959 = vmatpush.bf16.msra.mxu0 0
      %1960 = vmatpush.bf16.msra.mxu0 0
      %1961 = vmatpush.bf16.msra.mxu0 %v1915
      %1962 = vmatmul.bf16.gmra.mxu0 %v1909
      %v1963 = vpop.f32.mrf.mxu0
      %v1964 = vadd.f32 0.0, %v1963
      %v1965 = vpop.f32.mrf.mxu0
      %1966 = vdwg.mxu0
      %1967 = vmatpush.bf16.msra.mxu0 0
      %1968 = vmatpush.bf16.msra.mxu0 0
      %1969 = vmatpush.bf16.msra.mxu0 0
      %1970 = vmatpush.bf16.msra.mxu0 0
      %1971 = vmatpush.bf16.msra.mxu0 0
      %1972 = vmatpush.bf16.msra.mxu0 0
      %1973 = vmatpush.bf16.msra.mxu0 0
      %1974 = vmatpush.bf16.msra.mxu0 %v1918
      %1975 = vmatmul.bf16.gmra.mxu0 %v1909
      %v1976 = vpop.f32.mrf.mxu0
      %v1977 = vadd.f32 0.0, %v1976
      %v1978 = vpop.f32.mrf.mxu0
      %1979 = vdwg.mxu0
      %1980 = vmatpush.bf16.msra.mxu0 0
      %1981 = vmatpush.bf16.msra.mxu0 0
      %1982 = vmatpush.bf16.msra.mxu0 0
      %1983 = vmatpush.bf16.msra.mxu0 0
      %1984 = vmatpush.bf16.msra.mxu0 0
      %1985 = vmatpush.bf16.msra.mxu0 0
      %1986 = vmatpush.bf16.msra.mxu0 0
      %1987 = vmatpush.bf16.msra.mxu0 %v1921
      %1988 = vmatmul.bf16.gmra.mxu0 %v1909
      %v1989 = vpop.f32.mrf.mxu0
      %v1990 = vadd.f32 0.0, %v1989
      %v1991 = vpop.f32.mrf.mxu0
      %1992 = vdwg.mxu0
      %1993 = vmatpush.bf16.msra.mxu0 0
      %1994 = vmatpush.bf16.msra.mxu0 0
      %1995 = vmatpush.bf16.msra.mxu0 0
      %1996 = vmatpush.bf16.msra.mxu0 0
      %1997 = vmatpush.bf16.msra.mxu0 0
      %1998 = vmatpush.bf16.msra.mxu0 0
      %1999 = vmatpush.bf16.msra.mxu0 0
      %2000 = vmatpush.bf16.msra.mxu0 %v1924
      %2001 = vmatmul.bf16.gmra.mxu0 %v1909
      %v2002 = vpop.f32.mrf.mxu0
      %v2003 = vadd.f32 0.0, %v2002
      %v2004 = vpop.f32.mrf.mxu0
      %2005 = vdwg.mxu0
      %2006 = vmatpush.bf16.msra.mxu0 0
      %2007 = vmatpush.bf16.msra.mxu0 0
      %2008 = vmatpush.bf16.msra.mxu0 0
      %2009 = vmatpush.bf16.msra.mxu0 0
      %2010 = vmatpush.bf16.msra.mxu0 0
      %2011 = vmatpush.bf16.msra.mxu0 0
      %2012 = vmatpush.bf16.msra.mxu0 0
      %2013 = vmatpush.bf16.msra.mxu0 %v1927
      %2014 = vmatmul.bf16.gmra.mxu0 %v1909
      %v2015 = vpop.f32.mrf.mxu0
      %v2016 = vadd.f32 0.0, %v2015
      %v2017 = vpop.f32.mrf.mxu0
      %2018 = vdwg.mxu0
      %2019 = vmatpush.bf16.msra.mxu0 0
      %2020 = vmatpush.bf16.msra.mxu0 0
      %2021 = vmatpush.bf16.msra.mxu0 0
      %2022 = vmatpush.bf16.msra.mxu0 0
      %2023 = vmatpush.bf16.msra.mxu0 0
      %2024 = vmatpush.bf16.msra.mxu0 0
      %2025 = vmatpush.bf16.msra.mxu0 0
      %2026 = vmatpush.bf16.msra.mxu0 %v1930
      %2027 = vmatmul.bf16.gmra.mxu0 %v1909
      %v2028 = vpop.f32.mrf.mxu0
      %v2029 = vadd.f32 0.0, %v2028
      %v2030 = vpop.f32.mrf.mxu0
      %2031 = vdwg.mxu0
      %2032 = vmatpush.bf16.msra.mxu0 0
      %2033 = vmatpush.bf16.msra.mxu0 0
      %2034 = vmatpush.bf16.msra.mxu0 0
      %2035 = vmatpush.bf16.msra.mxu0 0
      %2036 = vmatpush.bf16.msra.mxu0 0
      %2037 = vmatpush.bf16.msra.mxu0 0
      %2038 = vmatpush.bf16.msra.mxu0 0
      %2039 = vmatpush.bf16.msra.mxu0 %v1933
      %2040 = vmatmul.bf16.gmra.mxu0 %v1909
      %v2041 = vpop.f32.mrf.mxu0
      %v2042 = vadd.f32 0.0, %v2041
      %v2043 = vpop.f32.mrf.mxu0
      %2044 = vdwg.mxu0
      %2045 = vmatpush.bf16.msra.mxu0 0
      %2046 = vmatpush.bf16.msra.mxu0 0
      %2047 = vmatpush.bf16.msra.mxu0 0
      %2048 = vmatpush.bf16.msra.mxu0 0
      %2049 = vmatpush.bf16.msra.mxu0 0
      %2050 = vmatpush.bf16.msra.mxu0 0
      %2051 = vmatpush.bf16.msra.mxu0 0
      %2052 = vmatpush.bf16.msra.mxu0 %v1936
      %2053 = vmatmul.bf16.gmra.mxu0 %v1909
      %v2054 = vpop.f32.mrf.mxu0
      %v2055 = vadd.f32 0.0, %v2054
      %v2056 = vpop.f32.mrf.mxu0
      %2057 = vdwg.mxu0
      %2058 = vmatpush.bf16.msra.mxu0 0
      %2059 = vmatpush.bf16.msra.mxu0 0
      %2060 = vmatpush.bf16.msra.mxu0 0
      %2061 = vmatpush.bf16.msra.mxu0 0
      %2062 = vmatpush.bf16.msra.mxu0 0
      %2063 = vmatpush.bf16.msra.mxu0 0
      %2064 = vmatpush.bf16.msra.mxu0 0
      %2065 = vmatpush.bf16.msra.mxu0 %v1939
      %2066 = vmatmul.bf16.gmra.mxu0 %v1909
      %v2067 = vpop.f32.mrf.mxu0
      %v2068 = vadd.f32 0.0, %v2067
      %v2069 = vpop.f32.mrf.mxu0
      %2070 = vdwg.mxu0
      %v2071 = vadd.f32 %v1863, %v1951
      %v2072 = vadd.f32 %v1864, %v1964
      %v2073 = vadd.f32 %v1865, %v1977
      %v2074 = vadd.f32 %v1866, %v1990
      %v2075 = vadd.f32 %v1867, %v2003
      %v2076 = vadd.f32 %v1868, %v2016
      %v2077 = vadd.f32 %v1869, %v2029
      %v2078 = vadd.f32 %v1870, %v2042
      %v2079 = vadd.f32 %v1871, %v2055
      %v2080 = vadd.f32 %v1872, %v2068
      %s2081 = scalar_lea.vmem %s4, 32
      %v2082 = vld [vmem:[%s2081] sm:$0xf]
      %2083 = vrot.lane.b32.xlu0 %v1448, 93
      %v2084 = vpop.permute.xlu0 %2083
      %2085 = vrot.lane.b32.xlu0 %v1449, 93
      %v2086 = vpop.permute.xlu0 %2085
      %2087 = vrot.lane.b32.xlu0 %v1450, 93
      %v2088 = vpop.permute.xlu0 %2087
      %2089 = vrot.lane.b32.xlu0 %v1451, 93
      %v2090 = vpop.permute.xlu0 %2089
      %2091 = vrot.lane.b32.xlu0 %v1452, 93
      %v2092 = vpop.permute.xlu0 %2091
      %2093 = vrot.lane.b32.xlu0 %v1453, 93
      %v2094 = vpop.permute.xlu0 %2093
      %2095 = vrot.lane.b32.xlu0 %v1454, 93
      %v2096 = vpop.permute.xlu0 %2095
      %2097 = vrot.lane.b32.xlu0 %v1455, 93
      %v2098 = vpop.permute.xlu0 %2097
      %2099 = vrot.lane.b32.xlu0 %v1456, 93
      %v2100 = vpop.permute.xlu0 %2099
      %2101 = vrot.lane.b32.xlu0 %v1457, 93
      %v2102 = vpop.permute.xlu0 %2101
      %2103 = vrot.lane.b32.xlu0 %v1458, 93
      %v2104 = vpop.permute.xlu0 %2103
      %vm2105 = vcmask 760832
      %v2106 = vsel %vm2105, %v2084, %v2086
      %v2107 = vsel %vm2105, %v2086, %v2088
      %v2108 = vsel %vm2105, %v2088, %v2090
      %v2109 = vsel %vm2105, %v2090, %v2092
      %v2110 = vsel %vm2105, %v2092, %v2094
      %v2111 = vsel %vm2105, %v2094, %v2096
      %v2112 = vsel %vm2105, %v2096, %v2098
      %v2113 = vsel %vm2105, %v2098, %v2100
      %v2114 = vsel %vm2105, %v2100, %v2102
      %v2115 = vsel %vm2105, %v2102, %v2104
      %v2117 = vsel %vm441, %v2082, 0
      %v2120 = vsel %vm445, %v2106, 0
      %v2123 = vsel %vm445, %v2107, 0
      %v2126 = vsel %vm445, %v2108, 0
      %v2129 = vsel %vm445, %v2109, 0
      %v2132 = vsel %vm445, %v2110, 0
      %v2135 = vsel %vm445, %v2111, 0
      %v2138 = vsel %vm445, %v2112, 0
      %v2141 = vsel %vm445, %v2113, 0
      %v2144 = vsel %vm445, %v2114, 0
      %v2147 = vsel %vm445, %v2115, 0
      %2149 = vmatpush.bf16.msra.mxu0 0
      %2150 = vmatpush.bf16.msra.mxu0 0
      %2151 = vmatpush.bf16.msra.mxu0 0
      %2152 = vmatpush.bf16.msra.mxu0 0
      %2153 = vmatpush.bf16.msra.mxu0 0
      %2154 = vmatpush.bf16.msra.mxu0 0
      %2155 = vmatpush.bf16.msra.mxu0 0
      %2156 = vmatpush.bf16.msra.mxu0 %v2120
      %2157 = vmatmul.bf16.gmra.mxu0 %v2117
      %v2158 = vpop.f32.mrf.mxu0
      %v2159 = vadd.f32 0.0, %v2158
      %v2160 = vpop.f32.mrf.mxu0
      %2161 = vdwg.mxu0
      %2162 = vmatpush.bf16.msra.mxu0 0
      %2163 = vmatpush.bf16.msra.mxu0 0
      %2164 = vmatpush.bf16.msra.mxu0 0
      %2165 = vmatpush.bf16.msra.mxu0 0
      %2166 = vmatpush.bf16.msra.mxu0 0
      %2167 = vmatpush.bf16.msra.mxu0 0
      %2168 = vmatpush.bf16.msra.mxu0 0
      %2169 = vmatpush.bf16.msra.mxu0 %v2123
      %2170 = vmatmul.bf16.gmra.mxu0 %v2117
      %v2171 = vpop.f32.mrf.mxu0
      %v2172 = vadd.f32 0.0, %v2171
      %v2173 = vpop.f32.mrf.mxu0
      %2174 = vdwg.mxu0
      %2175 = vmatpush.bf16.msra.mxu0 0
      %2176 = vmatpush.bf16.msra.mxu0 0
      %2177 = vmatpush.bf16.msra.mxu0 0
      %2178 = vmatpush.bf16.msra.mxu0 0
      %2179 = vmatpush.bf16.msra.mxu0 0
      %2180 = vmatpush.bf16.msra.mxu0 0
      %2181 = vmatpush.bf16.msra.mxu0 0
      %2182 = vmatpush.bf16.msra.mxu0 %v2126
      %2183 = vmatmul.bf16.gmra.mxu0 %v2117
      %v2184 = vpop.f32.mrf.mxu0
      %v2185 = vadd.f32 0.0, %v2184
      %v2186 = vpop.f32.mrf.mxu0
      %2187 = vdwg.mxu0
      %2188 = vmatpush.bf16.msra.mxu0 0
      %2189 = vmatpush.bf16.msra.mxu0 0
      %2190 = vmatpush.bf16.msra.mxu0 0
      %2191 = vmatpush.bf16.msra.mxu0 0
      %2192 = vmatpush.bf16.msra.mxu0 0
      %2193 = vmatpush.bf16.msra.mxu0 0
      %2194 = vmatpush.bf16.msra.mxu0 0
      %2195 = vmatpush.bf16.msra.mxu0 %v2129
      %2196 = vmatmul.bf16.gmra.mxu0 %v2117
      %v2197 = vpop.f32.mrf.mxu0
      %v2198 = vadd.f32 0.0, %v2197
      %v2199 = vpop.f32.mrf.mxu0
      %2200 = vdwg.mxu0
      %2201 = vmatpush.bf16.msra.mxu0 0
      %2202 = vmatpush.bf16.msra.mxu0 0
      %2203 = vmatpush.bf16.msra.mxu0 0
      %2204 = vmatpush.bf16.msra.mxu0 0
      %2205 = vmatpush.bf16.msra.mxu0 0
      %2206 = vmatpush.bf16.msra.mxu0 0
      %2207 = vmatpush.bf16.msra.mxu0 0
      %2208 = vmatpush.bf16.msra.mxu0 %v2132
      %2209 = vmatmul.bf16.gmra.mxu0 %v2117
      %v2210 = vpop.f32.mrf.mxu0
      %v2211 = vadd.f32 0.0, %v2210
      %v2212 = vpop.f32.mrf.mxu0
      %2213 = vdwg.mxu0
      %2214 = vmatpush.bf16.msra.mxu0 0
      %2215 = vmatpush.bf16.msra.mxu0 0
      %2216 = vmatpush.bf16.msra.mxu0 0
      %2217 = vmatpush.bf16.msra.mxu0 0
      %2218 = vmatpush.bf16.msra.mxu0 0
      %2219 = vmatpush.bf16.msra.mxu0 0
      %2220 = vmatpush.bf16.msra.mxu0 0
      %2221 = vmatpush.bf16.msra.mxu0 %v2135
      %2222 = vmatmul.bf16.gmra.mxu0 %v2117
      %v2223 = vpop.f32.mrf.mxu0
      %v2224 = vadd.f32 0.0, %v2223
      %v2225 = vpop.f32.mrf.mxu0
      %2226 = vdwg.mxu0
      %2227 = vmatpush.bf16.msra.mxu0 0
      %2228 = vmatpush.bf16.msra.mxu0 0
      %2229 = vmatpush.bf16.msra.mxu0 0
      %2230 = vmatpush.bf16.msra.mxu0 0
      %2231 = vmatpush.bf16.msra.mxu0 0
      %2232 = vmatpush.bf16.msra.mxu0 0
      %2233 = vmatpush.bf16.msra.mxu0 0
      %2234 = vmatpush.bf16.msra.mxu0 %v2138
      %2235 = vmatmul.bf16.gmra.mxu0 %v2117
      %v2236 = vpop.f32.mrf.mxu0
      %v2237 = vadd.f32 0.0, %v2236
      %v2238 = vpop.f32.mrf.mxu0
      %2239 = vdwg.mxu0
      %2240 = vmatpush.bf16.msra.mxu0 0
      %2241 = vmatpush.bf16.msra.mxu0 0
      %2242 = vmatpush.bf16.msra.mxu0 0
      %2243 = vmatpush.bf16.msra.mxu0 0
      %2244 = vmatpush.bf16.msra.mxu0 0
      %2245 = vmatpush.bf16.msra.mxu0 0
      %2246 = vmatpush.bf16.msra.mxu0 0
      %2247 = vmatpush.bf16.msra.mxu0 %v2141
      %2248 = vmatmul.bf16.gmra.mxu0 %v2117
      %v2249 = vpop.f32.mrf.mxu0
      %v2250 = vadd.f32 0.0, %v2249
      %v2251 = vpop.f32.mrf.mxu0
      %2252 = vdwg.mxu0
      %2253 = vmatpush.bf16.msra.mxu0 0
      %2254 = vmatpush.bf16.msra.mxu0 0
      %2255 = vmatpush.bf16.msra.mxu0 0
      %2256 = vmatpush.bf16.msra.mxu0 0
      %2257 = vmatpush.bf16.msra.mxu0 0
      %2258 = vmatpush.bf16.msra.mxu0 0
      %2259 = vmatpush.bf16.msra.mxu0 0
      %2260 = vmatpush.bf16.msra.mxu0 %v2144
      %2261 = vmatmul.bf16.gmra.mxu0 %v2117
      %v2262 = vpop.f32.mrf.mxu0
      %v2263 = vadd.f32 0.0, %v2262
      %v2264 = vpop.f32.mrf.mxu0
      %2265 = vdwg.mxu0
      %2266 = vmatpush.bf16.msra.mxu0 0
      %2267 = vmatpush.bf16.msra.mxu0 0
      %2268 = vmatpush.bf16.msra.mxu0 0
      %2269 = vmatpush.bf16.msra.mxu0 0
      %2270 = vmatpush.bf16.msra.mxu0 0
      %2271 = vmatpush.bf16.msra.mxu0 0
      %2272 = vmatpush.bf16.msra.mxu0 0
      %2273 = vmatpush.bf16.msra.mxu0 %v2147
      %2274 = vmatmul.bf16.gmra.mxu0 %v2117
      %v2275 = vpop.f32.mrf.mxu0
      %v2276 = vadd.f32 0.0, %v2275
      %v2277 = vpop.f32.mrf.mxu0
      %2278 = vdwg.mxu0
      %v2279 = vadd.f32 %v2071, %v2159
      %v2280 = vadd.f32 %v2072, %v2172
      %v2281 = vadd.f32 %v2073, %v2185
      %v2282 = vadd.f32 %v2074, %v2198
      %v2283 = vadd.f32 %v2075, %v2211
      %v2284 = vadd.f32 %v2076, %v2224
      %v2285 = vadd.f32 %v2077, %v2237
      %v2286 = vadd.f32 %v2078, %v2250
      %v2287 = vadd.f32 %v2079, %v2263
      %v2288 = vadd.f32 %v2080, %v2276
      %v2289 = vld [vmem:[%s5] sm:$0xff]
      %2291 = vset.pattern.permute.xlu0 0
      %2292 = vperm.xlu0 %2291, %v2289
      %v2293 = vpop.permute.xlu0 %2292
      %v2295 = vadd.f32 %v2279, %v2293
      %v2296 = vadd.f32 %v2280, %v2293
      %v2297 = vadd.f32 %v2281, %v2293
      %v2298 = vadd.f32 %v2282, %v2293
      %v2299 = vadd.f32 %v2283, %v2293
      %v2300 = vadd.f32 %v2284, %v2293
      %v2301 = vadd.f32 %v2285, %v2293
      %v2302 = vadd.f32 %v2286, %v2293
      %v2303 = vadd.f32 %v2287, %v2293
      %v2304 = vadd.f32 %v2288, %v2293
      %v2305 = vpack.c.bf16 %v2296, %v2295
      %v2306 = vpack.c.bf16 %v2298, %v2297
      %v2307 = vpack.c.bf16 %v2300, %v2299
      %v2308 = vpack.c.bf16 %v2302, %v2301
      %v2309 = vpack.c.bf16 %v2304, %v2303
      %2310 = vst [vmem:[%s251] sm:$0xff] %v2305
      %2311 = vst [vmem:[%s251 + $0x8] sm:$0xff] %v2306
      %2312 = vst [vmem:[%s251 + $0x10] sm:$0xff] %v2307
      %2313 = vst [vmem:[%s251 + $0x18] sm:$0xff] %v2308
      %2314 = vst [vmem:[%s251 + $0x20] sm:$0xff] %v2309
      %p2315 = scmp.lt.s32.totalorder %s17, 1
      %s2316 = scalar_select %p2315, %s17, 1
      %s2317 = smul.addr %s2316, 10
      %s2318 = smul.addr %s2317, 4
      %s2319 = scalar_lea.vmem %s6, %s2318
      // Predicated region
      $region45: #{attention_block_forward.2} parent=43 // pred_check
        %p2320 = pneg %p166
      $region46: #{attention_block_forward.2} parent=43 // pred_check_branch
        %2322 = sbr.rel (%p2320) target = $region48
      $region47: #{attention_block_forward.2} parent=43 // pred_region
        _
      $region48: #{attention_block_forward.2} parent=43 // pred_fallthru
        _
    $region44: #{attention_block_forward.2} parent=5 // pred_fallthru
      _
    %p2323 = scmp.le.s32.totalorder 2, %s12
    // Predicated region
    $region49: #{attention_block_forward.2} parent=5 // pred_check
      %p2324 = pneg %p2323
    $region50: #{attention_block_forward.2} parent=5 // pred_check_branch
      %2326 = sbr.rel (%p2324) target = $region52
    $region51: #{attention_block_forward.2} parent=5 // pred_region
      %s2327 = ssub.s32 %s12, 2
      // Predicated region
      $region53: #{attention_block_forward.2} parent=51 // pred_check
        %p2328 = pneg %p172
      $region54: #{attention_block_forward.2} parent=51 // pred_check_branch
        %2330 = sbr.rel (%p2328) target = $region56
      $region55: #{attention_block_forward.2} parent=51 // pred_region
        %p2331 = scmp.lt.s32.totalorder %s18, 1
        %s2332 = scalar_select %p2331, %s18, 1
        %s2333 = smul.addr %s2332, 10
        %s2334 = smul.addr %s2333, 4
        %s2335 = scalar_lea.vmem %s6, %s2334
      $region56: #{attention_block_forward.2} parent=51 // pred_fallthru
        _
    $region52: #{attention_block_forward.2} parent=5 // pred_fallthru
      _
  $region6: #{attention_block_forward.2} parent=0 // loop_footer
    %s16 = sadd.s32 1, %s12
  $region7: #{attention_block_forward.2} parent=0 // loop_footer_branch
    %11 = sbr.rel target = $region3
  $region8: #{attention_block_forward.2} parent=0 // loop_exit
    _

// kernel: attention_block_forward.3
$region0: #{attention_block_forward.3}
  #allocation0 [shape = 'u32[]', space=smem, size = 0x4, offset = 0x4, fixed_abs, tag = 'smem constant byte address 0x4 - core index']
  #allocation1 [shape = 'u32[72,128]{1,0:T(1,128)}', space=vmem, size = 0x9000, scoped, tag = 'internal scratch']
  #allocation2 [shape = 'bf16[8,640]{1,0:T(8,128)(2,1)}', space=vmem, size = 0x2800, scoped, tag = 'scratch operand']
  #allocation3 [shape = 'f32[1,1]{1,0:T(1,128)S(1)}', space=vmem, size = 0x200, scoped, tag = 'scoped memory for attention_block_forward.3']
  %s0 = inlined_call_operand.vmem [shape: f32[2,8,640], index: 0, kind: input, shape index: {}]
  %s1 = inlined_call_operand.vmem [shape: bf16[2,4,8,384], index: 1, kind: input, shape index: {}]
  %s2 = inlined_call_operand.vmem [shape: f32[1,640], index: 2, kind: input, shape index: {}]
  %s3 = inlined_call_operand.vmem [shape: f32[8,1], index: 3, kind: input, shape index: {}]
  %s4 = inlined_call_operand.vmem [shape: f32[8,1], index: 4, kind: input, shape index: {}]
  %s5 = inlined_call_operand.vmem [shape: bf16[9,8,8], index: 5, kind: input, shape index: {}]
  %s6 = inlined_call_operand.vmem [shape: f32[8,1], index: 6, kind: input, shape index: {}]
  %s7 = inlined_call_operand.vmem [shape: f32[8,1], index: 7, kind: input, shape index: {}]
  %s8 = inlined_call_operand.vmem [shape: f32[8,1], index: 8, kind: input, shape index: {}]
  %s9 = inlined_call_operand.vmem [shape: f32[8,1], index: 9, kind: input, shape index: {}]
  %s10 = inlined_call_operand.<no memory space> [shape: f32[1,1], index: 10, kind: input, shape index: {}]
  %s11 = inlined_call_operand.vmem [shape: f32[2,8,384], index: 11, kind: output, shape index: {}]
  %s12 = sld [smem:[#allocation0]]
  $region77: #{attention_block_forward.3} parent=0
    _
  %s14 = ssub.s32 1, %s12
  %s15 = scalar_select 0, %s14, %s12
  %v16 = vstv %s10
  %17 = vst [vmem:[#allocation3] sm:$0x1] %v16
  loop: start=0, step=1, limit=4
  $region2: #{attention_block_forward.3} parent=0 // loop_pre_header
    _
  $region3: #{attention_block_forward.3} parent=0 // loop_header
    %s19 = sphi 0, %s23
    %p20 = scmp.ge.s32.totalorder %s19, 4
    %s29 = sphi 0, %s31
    %s32 = sphi 0, %s29
    %s33 = sphi 0, %s32
    %s49 = sphi 0, %s33
    %s55 = sphi 0, %s57
    %s58 = sphi 0, %s55
    %s59 = sphi 0, %s58
    %s75 = sphi 0, %s59
    %s79 = sphi 0, %s79
    %s81 = sphi 0, %s79
    %s82 = sphi 0, %s81
    %s96 = sphi 0, %s82
    %s100 = sphi 0, %s100
    %s102 = sphi 0, %s100
    %s103 = sphi 0, %s102
    %s117 = sphi 0, %s103
    %s121 = sphi 0, %s121
    %s123 = sphi 0, %s121
    %s124 = sphi 0, %s123
    %s138 = sphi 0, %s124
    %s142 = sphi 0, %s142
    %s144 = sphi 0, %s142
    %s145 = sphi 0, %s144
    %s159 = sphi 0, %s145
    %s163 = sphi 0, %s163
    %s165 = sphi 0, %s163
    %s166 = sphi 0, %s165
    %s180 = sphi 0, %s166
    %s184 = sphi 0, %s184
    %s186 = sphi 0, %s184
    %s187 = sphi 0, %s186
    %s201 = sphi 0, %s187
    %s205 = sphi 0, %s205
    %s207 = sphi 0, %s205
    %s208 = sphi 0, %s207
    %s222 = sphi 0, %s208
    %s226 = sphi 0, %s226
    %s228 = sphi 0, %s226
    %s229 = sphi 0, %s228
    %s243 = sphi 0, %s229
    %s247 = sphi 0, %s247
    %s249 = sphi 0, %s247
    %s250 = sphi 0, %s249
    %s264 = sphi 0, %s250
    %s270 = sphi 0, %s272
    %s273 = sphi 0, %s270
    %s274 = sphi 0, %s273
    %s290 = sphi 0, %s274
  $region4: #{attention_block_forward.3} parent=0 // loop_header_branch
    %22 = sbr.rel (%p20) target = $region8
  $region5: #{attention_block_forward.3} parent=0 // loop_body
    %s24 = ssub.s32 %s19, 1
    %s25 = ssub.s32 %s19, 2
    %s26 = sadd.s32 %s19, 1
    %s27 = ssub.s32 %s19, %s26
    %p28 = scmp.eq.s32.totalorder %s27, 0
    %s30 = sadd.s32 %s29, 1
    %s31 = scalar_select %p28, %s29, %s30
    %p34 = pneg %p28
    %p35 = scmp.eq.s32.totalorder %s19, 1
    %p36 = por %p34, %p35
    %p37 = scmp.ne.s32.totalorder %s29, %s32
    %p38 = scmp.eq.s32.totalorder %s19, 0
    %p39 = por %p37, %p38
    %p40 = scmp.ne.s32.totalorder %s29, %s32
    %p41 = scmp.eq.s32.totalorder %s24, 1
    %p42 = por %p40, %p41
    %p43 = scmp.ne.s32.totalorder %s32, %s33
    %p44 = scmp.eq.s32.totalorder %s24, 0
    %p45 = por %p43, %p44
    %p46 = scmp.ne.s32.totalorder %s32, %s33
    %p47 = scmp.eq.s32.totalorder %s25, 1
    %p48 = por %p46, %p47
    %p50 = scmp.ne.s32.totalorder %s33, %s49
    %p51 = scmp.eq.s32.totalorder %s25, 0
    %p52 = por %p50, %p51
    %s53 = ssub.s32 %s19, %s26
    %p54 = scmp.eq.s32.totalorder %s53, 0
    %s56 = sadd.s32 %s55, 1
    %s57 = scalar_select %p54, %s55, %s56
    %p60 = pneg %p54
    %p61 = scmp.eq.s32.totalorder %s19, 1
    %p62 = por %p60, %p61
    %p63 = scmp.ne.s32.totalorder %s55, %s58
    %p64 = scmp.eq.s32.totalorder %s19, 0
    %p65 = por %p63, %p64
    %p66 = scmp.ne.s32.totalorder %s55, %s58
    %p67 = scmp.eq.s32.totalorder %s24, 1
    %p68 = por %p66, %p67
    %p69 = scmp.ne.s32.totalorder %s58, %s59
    %p70 = scmp.eq.s32.totalorder %s24, 0
    %p71 = por %p69, %p70
    %p72 = scmp.ne.s32.totalorder %s58, %s59
    %p73 = scmp.eq.s32.totalorder %s25, 1
    %p74 = por %p72, %p73
    %p76 = scmp.ne.s32.totalorder %s59, %s75
    %p77 = scmp.eq.s32.totalorder %s25, 0
    %p78 = por %p76, %p77
    %s80 = sadd.s32 %s79, 1
    %p83 = scmp.eq.s32.totalorder %s19, 1
    %p84 = scmp.ne.s32.totalorder %s79, %s81
    %p85 = scmp.eq.s32.totalorder %s19, 0
    %p86 = por %p84, %p85
    %p87 = scmp.ne.s32.totalorder %s79, %s81
    %p88 = scmp.eq.s32.totalorder %s24, 1
    %p89 = por %p87, %p88
    %p90 = scmp.ne.s32.totalorder %s81, %s82
    %p91 = scmp.eq.s32.totalorder %s24, 0
    %p92 = por %p90, %p91
    %p93 = scmp.ne.s32.totalorder %s81, %s82
    %p94 = scmp.eq.s32.totalorder %s25, 1
    %p95 = por %p93, %p94
    %p97 = scmp.ne.s32.totalorder %s82, %s96
    %p98 = scmp.eq.s32.totalorder %s25, 0
    %p99 = por %p97, %p98
    %s101 = sadd.s32 %s100, 1
    %p104 = scmp.eq.s32.totalorder %s19, 1
    %p105 = scmp.ne.s32.totalorder %s100, %s102
    %p106 = scmp.eq.s32.totalorder %s19, 0
    %p107 = por %p105, %p106
    %p108 = scmp.ne.s32.totalorder %s100, %s102
    %p109 = scmp.eq.s32.totalorder %s24, 1
    %p110 = por %p108, %p109
    %p111 = scmp.ne.s32.totalorder %s102, %s103
    %p112 = scmp.eq.s32.totalorder %s24, 0
    %p113 = por %p111, %p112
    %p114 = scmp.ne.s32.totalorder %s102, %s103
    %p115 = scmp.eq.s32.totalorder %s25, 1
    %p116 = por %p114, %p115
    %p118 = scmp.ne.s32.totalorder %s103, %s117
    %p119 = scmp.eq.s32.totalorder %s25, 0
    %p120 = por %p118, %p119
    %s122 = sadd.s32 %s121, 1
    %p125 = scmp.eq.s32.totalorder %s19, 1
    %p126 = scmp.ne.s32.totalorder %s121, %s123
    %p127 = scmp.eq.s32.totalorder %s19, 0
    %p128 = por %p126, %p127
    %p129 = scmp.ne.s32.totalorder %s121, %s123
    %p130 = scmp.eq.s32.totalorder %s24, 1
    %p131 = por %p129, %p130
    %p132 = scmp.ne.s32.totalorder %s123, %s124
    %p133 = scmp.eq.s32.totalorder %s24, 0
    %p134 = por %p132, %p133
    %p135 = scmp.ne.s32.totalorder %s123, %s124
    %p136 = scmp.eq.s32.totalorder %s25, 1
    %p137 = por %p135, %p136
    %p139 = scmp.ne.s32.totalorder %s124, %s138
    %p140 = scmp.eq.s32.totalorder %s25, 0
    %p141 = por %p139, %p140
    %s143 = sadd.s32 %s142, 1
    %p146 = scmp.eq.s32.totalorder %s19, 1
    %p147 = scmp.ne.s32.totalorder %s142, %s144
    %p148 = scmp.eq.s32.totalorder %s19, 0
    %p149 = por %p147, %p148
    %p150 = scmp.ne.s32.totalorder %s142, %s144
    %p151 = scmp.eq.s32.totalorder %s24, 1
    %p152 = por %p150, %p151
    %p153 = scmp.ne.s32.totalorder %s144, %s145
    %p154 = scmp.eq.s32.totalorder %s24, 0
    %p155 = por %p153, %p154
    %p156 = scmp.ne.s32.totalorder %s144, %s145
    %p157 = scmp.eq.s32.totalorder %s25, 1
    %p158 = por %p156, %p157
    %p160 = scmp.ne.s32.totalorder %s145, %s159
    %p161 = scmp.eq.s32.totalorder %s25, 0
    %p162 = por %p160, %p161
    %s164 = sadd.s32 %s163, 1
    %p167 = scmp.eq.s32.totalorder %s19, 1
    %p168 = scmp.ne.s32.totalorder %s163, %s165
    %p169 = scmp.eq.s32.totalorder %s19, 0
    %p170 = por %p168, %p169
    %p171 = scmp.ne.s32.totalorder %s163, %s165
    %p172 = scmp.eq.s32.totalorder %s24, 1
    %p173 = por %p171, %p172
    %p174 = scmp.ne.s32.totalorder %s165, %s166
    %p175 = scmp.eq.s32.totalorder %s24, 0
    %p176 = por %p174, %p175
    %p177 = scmp.ne.s32.totalorder %s165, %s166
    %p178 = scmp.eq.s32.totalorder %s25, 1
    %p179 = por %p177, %p178
    %p181 = scmp.ne.s32.totalorder %s166, %s180
    %p182 = scmp.eq.s32.totalorder %s25, 0
    %p183 = por %p181, %p182
    %s185 = sadd.s32 %s184, 1
    %p188 = scmp.eq.s32.totalorder %s19, 1
    %p189 = scmp.ne.s32.totalorder %s184, %s186
    %p190 = scmp.eq.s32.totalorder %s19, 0
    %p191 = por %p189, %p190
    %p192 = scmp.ne.s32.totalorder %s184, %s186
    %p193 = scmp.eq.s32.totalorder %s24, 1
    %p194 = por %p192, %p193
    %p195 = scmp.ne.s32.totalorder %s186, %s187
    %p196 = scmp.eq.s32.totalorder %s24, 0
    %p197 = por %p195, %p196
    %p198 = scmp.ne.s32.totalorder %s186, %s187
    %p199 = scmp.eq.s32.totalorder %s25, 1
    %p200 = por %p198, %p199
    %p202 = scmp.ne.s32.totalorder %s187, %s201
    %p203 = scmp.eq.s32.totalorder %s25, 0
    %p204 = por %p202, %p203
    %s206 = sadd.s32 %s205, 1
    %p209 = scmp.eq.s32.totalorder %s19, 1
    %p210 = scmp.ne.s32.totalorder %s205, %s207
    %p211 = scmp.eq.s32.totalorder %s19, 0
    %p212 = por %p210, %p211
    %p213 = scmp.ne.s32.totalorder %s205, %s207
    %p214 = scmp.eq.s32.totalorder %s24, 1
    %p215 = por %p213, %p214
    %p216 = scmp.ne.s32.totalorder %s207, %s208
    %p217 = scmp.eq.s32.totalorder %s24, 0
    %p218 = por %p216, %p217
    %p219 = scmp.ne.s32.totalorder %s207, %s208
    %p220 = scmp.eq.s32.totalorder %s25, 1
    %p221 = por %p219, %p220
    %p223 = scmp.ne.s32.totalorder %s208, %s222
    %p224 = scmp.eq.s32.totalorder %s25, 0
    %p225 = por %p223, %p224
    %s227 = sadd.s32 %s226, 1
    %p230 = scmp.eq.s32.totalorder %s19, 1
    %p231 = scmp.ne.s32.totalorder %s226, %s228
    %p232 = scmp.eq.s32.totalorder %s19, 0
    %p233 = por %p231, %p232
    %p234 = scmp.ne.s32.totalorder %s226, %s228
    %p235 = scmp.eq.s32.totalorder %s24, 1
    %p236 = por %p234, %p235
    %p237 = scmp.ne.s32.totalorder %s228, %s229
    %p238 = scmp.eq.s32.totalorder %s24, 0
    %p239 = por %p237, %p238
    %p240 = scmp.ne.s32.totalorder %s228, %s229
    %p241 = scmp.eq.s32.totalorder %s25, 1
    %p242 = por %p240, %p241
    %p244 = scmp.ne.s32.totalorder %s229, %s243
    %p245 = scmp.eq.s32.totalorder %s25, 0
    %p246 = por %p244, %p245
    %s248 = sadd.s32 %s247, 1
    %p251 = scmp.eq.s32.totalorder %s19, 1
    %p252 = scmp.ne.s32.totalorder %s247, %s249
    %p253 = scmp.eq.s32.totalorder %s19, 0
    %p254 = por %p252, %p253
    %p255 = scmp.ne.s32.totalorder %s247, %s249
    %p256 = scmp.eq.s32.totalorder %s24, 1
    %p257 = por %p255, %p256
    %p258 = scmp.ne.s32.totalorder %s249, %s250
    %p259 = scmp.eq.s32.totalorder %s24, 0
    %p260 = por %p258, %p259
    %p261 = scmp.ne.s32.totalorder %s249, %s250
    %p262 = scmp.eq.s32.totalorder %s25, 1
    %p263 = por %p261, %p262
    %p265 = scmp.ne.s32.totalorder %s250, %s264
    %p266 = scmp.eq.s32.totalorder %s25, 0
    %p267 = por %p265, %p266
    %s268 = ssub.s32 %s19, %s26
    %p269 = scmp.eq.s32.totalorder %s268, 0
    %s271 = sadd.s32 %s270, 1
    %s272 = scalar_select %p269, %s270, %s271
    %p275 = pneg %p269
    %p276 = scmp.eq.s32.totalorder %s19, 1
    %p277 = por %p275, %p276
    %p278 = scmp.ne.s32.totalorder %s270, %s273
    %p279 = scmp.eq.s32.totalorder %s19, 0
    %p280 = por %p278, %p279
    %p281 = scmp.ne.s32.totalorder %s270, %s273
    %p282 = scmp.eq.s32.totalorder %s24, 1
    %p283 = por %p281, %p282
    %p284 = scmp.ne.s32.totalorder %s273, %s274
    %p285 = scmp.eq.s32.totalorder %s24, 0
    %p286 = por %p284, %p285
    %p287 = scmp.ne.s32.totalorder %s273, %s274
    %p288 = scmp.eq.s32.totalorder %s25, 1
    %p289 = por %p287, %p288
    %p291 = scmp.ne.s32.totalorder %s274, %s290
    %p292 = scmp.eq.s32.totalorder %s25, 0
    %p293 = por %p291, %p292
    %p294 = scmp.le.s32.totalorder 1, %s19
    %p295 = scmp.lt.s32.totalorder %s19, 3
    %p296 = pnand %p294, %p295
    %p297 = pneg %p296
    // Predicated region
    $region9: #{attention_block_forward.3} parent=5 // pred_check
      _
    $region10: #{attention_block_forward.3} parent=5 // pred_check_branch
      %299 = sbr.rel (%p296) target = $region12
    $region11: #{attention_block_forward.3} parent=5 // pred_region
      %s300 = ssub.s32 %s19, 1
      // Predicated region
      $region13: #{attention_block_forward.3} parent=11 // pred_check
        %p301 = pneg %p92
      $region14: #{attention_block_forward.3} parent=11 // pred_check_branch
        %303 = sbr.rel (%p301) target = $region16
      $region15: #{attention_block_forward.3} parent=11 // pred_region
        _
      $region16: #{attention_block_forward.3} parent=11 // pred_fallthru
        _
      // Predicated region
      $region17: #{attention_block_forward.3} parent=11 // pred_check
        %p304 = pneg %p113
      $region18: #{attention_block_forward.3} parent=11 // pred_check_branch
        %306 = sbr.rel (%p304) target = $region20
      $region19: #{attention_block_forward.3} parent=11 // pred_region
        _
      $region20: #{attention_block_forward.3} parent=11 // pred_fallthru
        _
      // Predicated region
      $region21: #{attention_block_forward.3} parent=11 // pred_check
        %p307 = pneg %p134
      $region22: #{attention_block_forward.3} parent=11 // pred_check_branch
        %309 = sbr.rel (%p307) target = $region24
      $region23: #{attention_block_forward.3} parent=11 // pred_region
        _
      $region24: #{attention_block_forward.3} parent=11 // pred_fallthru
        _
      // Predicated region
      $region25: #{attention_block_forward.3} parent=11 // pred_check
        %p310 = pneg %p155
      $region26: #{attention_block_forward.3} parent=11 // pred_check_branch
        %312 = sbr.rel (%p310) target = $region28
      $region27: #{attention_block_forward.3} parent=11 // pred_region
        _
      $region28: #{attention_block_forward.3} parent=11 // pred_fallthru
        _
      // Predicated region
      $region29: #{attention_block_forward.3} parent=11 // pred_check
        %p313 = pneg %p176
      $region30: #{attention_block_forward.3} parent=11 // pred_check_branch
        %315 = sbr.rel (%p313) target = $region32
      $region31: #{attention_block_forward.3} parent=11 // pred_region
        _
      $region32: #{attention_block_forward.3} parent=11 // pred_fallthru
        _
      // Predicated region
      $region33: #{attention_block_forward.3} parent=11 // pred_check
        %p316 = pneg %p197
      $region34: #{attention_block_forward.3} parent=11 // pred_check_branch
        %318 = sbr.rel (%p316) target = $region36
      $region35: #{attention_block_forward.3} parent=11 // pred_region
        _
      $region36: #{attention_block_forward.3} parent=11 // pred_fallthru
        _
      // Predicated region
      $region37: #{attention_block_forward.3} parent=11 // pred_check
        %p319 = pneg %p218
      $region38: #{attention_block_forward.3} parent=11 // pred_check_branch
        %321 = sbr.rel (%p319) target = $region40
      $region39: #{attention_block_forward.3} parent=11 // pred_region
        _
      $region40: #{attention_block_forward.3} parent=11 // pred_fallthru
        _
      // Predicated region
      $region41: #{attention_block_forward.3} parent=11 // pred_check
        %p322 = pneg %p239
      $region42: #{attention_block_forward.3} parent=11 // pred_check_branch
        %324 = sbr.rel (%p322) target = $region44
      $region43: #{attention_block_forward.3} parent=11 // pred_region
        _
      $region44: #{attention_block_forward.3} parent=11 // pred_fallthru
        _
      // Predicated region
      $region45: #{attention_block_forward.3} parent=11 // pred_check
        %p325 = pneg %p260
      $region46: #{attention_block_forward.3} parent=11 // pred_check_branch
        %327 = sbr.rel (%p325) target = $region48
      $region47: #{attention_block_forward.3} parent=11 // pred_region
        _
      $region48: #{attention_block_forward.3} parent=11 // pred_fallthru
        _
    $region12: #{attention_block_forward.3} parent=5 // pred_fallthru
      _
    %p328 = scmp.lt.s32.totalorder %s19, 2
    // Predicated region
    $region49: #{attention_block_forward.3} parent=5 // pred_check
      %p329 = pneg %p328
    $region50: #{attention_block_forward.3} parent=5 // pred_check_branch
      %331 = sbr.rel (%p329) target = $region52
    $region51: #{attention_block_forward.3} parent=5 // pred_region
      // Predicated region
      $region53: #{attention_block_forward.3} parent=51 // pred_check
        %p332 = pneg %p39
      $region54: #{attention_block_forward.3} parent=51 // pred_check_branch
        %334 = sbr.rel (%p332) target = $region56
      $region55: #{attention_block_forward.3} parent=51 // pred_region
        %p335 = scmp.lt.s32.totalorder %s19, 1
        %s336 = scalar_select %p335, %s19, 1
        %s337 = smul.addr %s336, 5
        %s338 = smul.addr %s337, 8
        %s339 = scalar_lea.vmem %s0, %s338
      $region56: #{attention_block_forward.3} parent=51 // pred_fallthru
        _
      // Predicated region
      $region57: #{attention_block_forward.3} parent=51 // pred_check
        %p340 = pneg %p65
      $region58: #{attention_block_forward.3} parent=51 // pred_check_branch
        %342 = sbr.rel (%p340) target = $region60
      $region59: #{attention_block_forward.3} parent=51 // pred_region
        %p343 = scmp.lt.s32.totalorder %s19, 1
        %s344 = scalar_select %p343, %s19, 1
        %s345 = smul.addr %s344, 12
        %s346 = smul.addr %s345, 4
        %s347 = scalar_lea.vmem %s1, %s346
      $region60: #{attention_block_forward.3} parent=51 // pred_fallthru
        _
    $region52: #{attention_block_forward.3} parent=5 // pred_fallthru
      _
    %p348 = scmp.le.s32.totalorder 1, %s19
    %p349 = scmp.lt.s32.totalorder %s19, 3
    %p350 = pnand %p348, %p349
    %p351 = pneg %p350
    // Predicated region
    $region61: #{attention_block_forward.3} parent=5 // pred_check
      _
    $region62: #{attention_block_forward.3} parent=5 // pred_check_branch
      %353 = sbr.rel (%p350) target = $region64
    $region63: #{attention_block_forward.3} parent=5 // pred_region
      %s354 = ssub.s32 %s19, 1
      %p355 = scmp.lt.s32.totalorder %s24, 1
      %s356 = scalar_select %p355, %s24, 1
      %s357 = smul.addr %s356, 5
      %s358 = smul.addr %s357, 8
      %s359 = scalar_lea.vmem %s0, %s358
      %p360 = pneg %p45
      %p361 = pneg %p42
      %p362 = scmp.lt.s32.totalorder %s24, 1
      %s363 = scalar_select %p362, %s24, 1
      %s364 = smul.addr %s363, 12
      %s365 = smul.addr %s364, 4
      %s366 = scalar_lea.vmem %s1, %s365
      %p367 = pneg %p71
      %p368 = pneg %p68
      %p369 = pneg %p92
      %p370 = pneg %p89
      %p371 = pneg %p113
      %p372 = pneg %p110
      %p373 = pneg %p134
      %p374 = pneg %p131
      %p375 = pneg %p155
      %p376 = pneg %p152
      %p377 = pneg %p176
      %p378 = pneg %p173
      %p379 = pneg %p197
      %p380 = pneg %p194
      %p381 = pneg %p218
      %p382 = pneg %p215
      %p383 = pneg %p239
      %p384 = pneg %p236
      %p385 = pneg %p260
      %p386 = pneg %p257
      %p387 = pneg %p286
      %p388 = pneg %p283
      %p389 = scmp.lt.s32.totalorder %s24, 1
      %s390 = scalar_select %p389, %s24, 1
      %s391 = smul.addr %s390, 3
      %s392 = smul.addr %s391, 8
      %s393 = scalar_lea.vmem %s11, %s392
      %p394 = scmp.lt.s32.totalorder %s24, 1
      %s395 = scalar_select %p394, %s24, 1
      %s396 = smul.addr %s395, 5
      %s397 = smul.addr %s396, 8
      %s398 = scalar_lea.vmem %s0, %s397
      %p399 = scmp.lt.s32.totalorder %s24, 1
      %s400 = scalar_select %p399, %s24, 1
      %s401 = smul.addr %s400, 12
      %s402 = smul.addr %s401, 4
      %s403 = scalar_lea.vmem %s1, %s402
      %p404 = scmp.lt.s32.totalorder %s24, 1
      %s405 = scalar_select %p404, %s24, 1
      %s406 = smul.addr %s405, 3
      %s407 = smul.addr %s406, 8
      %s408 = scalar_lea.vmem %s11, %s407
      %v410 = vld [vmem:[%s398] sm:$0xff]
      %v411 = vld [vmem:[%s398 + $0x8] sm:$0xff]
      %v412 = vld [vmem:[%s398 + $0x10] sm:$0xff]
      %v413 = vld [vmem:[%s398 + $0x18] sm:$0xff]
      %v414 = vld [vmem:[%s398 + $0x20] sm:$0xff]
      %v415 = vld [vmem:[%s3] sm:$0xff]
      %417 = vset.pattern.permute.xlu0 0
      %418 = vperm.xlu0 %417, %v415
      %v419 = vpop.permute.xlu0 %418
      %v421 = vmul.f32 %v410, %v419
      %v422 = vmul.f32 %v411, %v419
      %v423 = vmul.f32 %v412, %v419
      %v424 = vmul.f32 %v413, %v419
      %v425 = vmul.f32 %v414, %v419
      %v426 = vld [vmem:[%s4] sm:$0xff]
      %428 = vset.pattern.permute.xlu0 0
      %429 = vperm.xlu0 %428, %v426
      %v430 = vpop.permute.xlu0 %429
      %v432 = vadd.f32 %v421, %v430
      %v433 = vadd.f32 %v422, %v430
      %v434 = vadd.f32 %v423, %v430
      %v435 = vadd.f32 %v424, %v430
      %v436 = vadd.f32 %v425, %v430
      %v437 = vmax.f32 %v432, 0.0
      %v438 = vmax.f32 %v433, 0.0
      %v439 = vmax.f32 %v434, 0.0
      %v440 = vmax.f32 %v435, 0.0
      %v441 = vmax.f32 %v436, 0.0
      %v442 = vld [vmem:[%s2] sm:$0x1f]
      %v444 = vperm.slane %v442, 0
      %v445 = vperm.slane %v442, 1
      %v446 = vperm.slane %v442, 2
      %v447 = vperm.slane %v442, 3
      %v448 = vperm.slane %v442, 4
      %v454 = vmul.f32 %v437, %v444
      %v455 = vmul.f32 %v438, %v445
      %v456 = vmul.f32 %v439, %v446
      %v457 = vmul.f32 %v440, %v447
      %v458 = vmul.f32 %v441, %v448
      %v459 = vpack.c.bf16 %v455, %v454
      %v460 = vpack.c.bf16 %v457, %v456
      %v461 = vpack.c.bf16 %v458, %v458
      %462 = vst [vmem:[#allocation2] sm:$0xff] %v459
      %463 = vst [vmem:[#allocation2 + $0x8] sm:$0xff] %v460
      %464 = vst [vmem:[#allocation2 + $0x10] sm:$0xf] %v461
      %v465 = vld [vmem:[%s5] sm:$0xf]
      %v466 = vld [vmem:[#allocation2] sm:$0xff]
      %v467 = vld [vmem:[#allocation2 + $0x8] sm:$0xff]
      %s468 = scalar_lea.vmem %s5, 4
      %v469 = vld [vmem:[%s468] sm:$0xf]
      %v472 = vunpack.c.l.b16 %v466
      %v473 = vunpack.c.h.b16 %v466
      %v474 = vunpack.c.l.b16 %v467
      %v475 = vunpack.c.h.b16 %v467
      %v476 = vpack.c.b16 %v472, %v472
      %v477 = vpack.c.b16 %v473, %v473
      %v478 = vpack.c.b16 %v474, %v474
      %v479 = vpack.c.b16 %v475, %v475
      %480 = vrot.lane.b32.xlu0 %v476, 18
      %v481 = vpop.permute.xlu0 %480
      %482 = vrot.lane.b32.xlu0 %v477, 18
      %v483 = vpop.permute.xlu0 %482
      %484 = vrot.lane.b32.xlu0 %v478, 18
      %v485 = vpop.permute.xlu0 %484
      %486 = vrot.lane.b32.xlu0 %v479, 18
      %v487 = vpop.permute.xlu0 %486
      %vm488 = vcmask 146432
      %v489 = vsel %vm488, %v481, %v483
      %v490 = vsel %vm488, %v483, %v485
      %v491 = vsel %vm488, %v485, %v487
      %vm492 = vcmask 64512
      %v494 = vsel %vm492, %v469, 0
      %vm496 = vcmask 1043456
      %v498 = vsel %vm496, %v489, 0
      %v501 = vsel %vm496, %v490, 0
      %v504 = vsel %vm496, %v491, 0
      %506 = vmatpush.bf16.msra.mxu0 0
      %507 = vmatpush.bf16.msra.mxu0 0
      %508 = vmatpush.bf16.msra.mxu0 0
      %509 = vmatpush.bf16.msra.mxu0 0
      %510 = vmatpush.bf16.msra.mxu0 0
      %511 = vmatpush.bf16.msra.mxu0 0
      %512 = vmatpush.bf16.msra.mxu0 0
      %513 = vmatpush.bf16.msra.mxu0 %v498
      %514 = vmatmul.bf16.gmra.mxu0 %v494
      %v515 = vpop.f32.mrf.mxu0
      %v516 = vadd.f32 0.0, %v515
      %v517 = vpop.f32.mrf.mxu0
      %518 = vdwg.mxu0
      %519 = vmatpush.bf16.msra.mxu0 0
      %520 = vmatpush.bf16.msra.mxu0 0
      %521 = vmatpush.bf16.msra.mxu0 0
      %522 = vmatpush.bf16.msra.mxu0 0
      %523 = vmatpush.bf16.msra.mxu0 0
      %524 = vmatpush.bf16.msra.mxu0 0
      %525 = vmatpush.bf16.msra.mxu0 0
      %526 = vmatpush.bf16.msra.mxu0 %v501
      %527 = vmatmul.bf16.gmra.mxu0 %v494
      %v528 = vpop.f32.mrf.mxu0
      %v529 = vadd.f32 0.0, %v528
      %v530 = vpop.f32.mrf.mxu0
      %531 = vdwg.mxu0
      %532 = vmatpush.bf16.msra.mxu0 0
      %533 = vmatpush.bf16.msra.mxu0 0
      %534 = vmatpush.bf16.msra.mxu0 0
      %535 = vmatpush.bf16.msra.mxu0 0
      %536 = vmatpush.bf16.msra.mxu0 0
      %537 = vmatpush.bf16.msra.mxu0 0
      %538 = vmatpush.bf16.msra.mxu0 0
      %539 = vmatpush.bf16.msra.mxu0 %v504
      %540 = vmatmul.bf16.gmra.mxu0 %v494
      %v541 = vpop.f32.mrf.mxu0
      %v542 = vadd.f32 0.0, %v541
      %v543 = vpop.f32.mrf.mxu0
      %544 = vdwg.mxu0
      %545 = vrot.lane.b32.xlu0 %v476, 19
      %v546 = vpop.permute.xlu0 %545
      %547 = vrot.lane.b32.xlu0 %v477, 19
      %v548 = vpop.permute.xlu0 %547
      %549 = vrot.lane.b32.xlu0 %v478, 19
      %v550 = vpop.permute.xlu0 %549
      %551 = vrot.lane.b32.xlu0 %v479, 19
      %v552 = vpop.permute.xlu0 %551
      %vm553 = vcmask 154624
      %v554 = vsel %vm553, %v546, %v548
      %v555 = vsel %vm553, %v548, %v550
      %v556 = vsel %vm553, %v550, %v552
      %v558 = vsel %vm492, %v465, 0
      %v561 = vsel %vm496, %v554, 0
      %v564 = vsel %vm496, %v555, 0
      %v567 = vsel %vm496, %v556, 0
      %569 = vmatpush.bf16.msra.mxu0 0
      %570 = vmatpush.bf16.msra.mxu0 0
      %571 = vmatpush.bf16.msra.mxu0 0
      %572 = vmatpush.bf16.msra.mxu0 0
      %573 = vmatpush.bf16.msra.mxu0 0
      %574 = vmatpush.bf16.msra.mxu0 0
      %575 = vmatpush.bf16.msra.mxu0 0
      %576 = vmatpush.bf16.msra.mxu0 %v561
      %577 = vmatmul.bf16.gmra.mxu0 %v558
      %v578 = vpop.f32.mrf.mxu0
      %v579 = vadd.f32 %v516, %v578
      %v580 = vpop.f32.mrf.mxu0
      %581 = vdwg.mxu0
      %582 = vmatpush.bf16.msra.mxu0 0
      %583 = vmatpush.bf16.msra.mxu0 0
      %584 = vmatpush.bf16.msra.mxu0 0
      %585 = vmatpush.bf16.msra.mxu0 0
      %586 = vmatpush.bf16.msra.mxu0 0
      %587 = vmatpush.bf16.msra.mxu0 0
      %588 = vmatpush.bf16.msra.mxu0 0
      %589 = vmatpush.bf16.msra.mxu0 %v564
      %590 = vmatmul.bf16.gmra.mxu0 %v558
      %v591 = vpop.f32.mrf.mxu0
      %v592 = vadd.f32 %v529, %v591
      %v593 = vpop.f32.mrf.mxu0
      %594 = vdwg.mxu0
      %595 = vmatpush.bf16.msra.mxu0 0
      %596 = vmatpush.bf16.msra.mxu0 0
      %597 = vmatpush.bf16.msra.mxu0 0
      %598 = vmatpush.bf16.msra.mxu0 0
      %599 = vmatpush.bf16.msra.mxu0 0
      %600 = vmatpush.bf16.msra.mxu0 0
      %601 = vmatpush.bf16.msra.mxu0 0
      %602 = vmatpush.bf16.msra.mxu0 %v567
      %603 = vmatmul.bf16.gmra.mxu0 %v558
      %v604 = vpop.f32.mrf.mxu0
      %v605 = vadd.f32 %v542, %v604
      %v606 = vpop.f32.mrf.mxu0
      %607 = vdwg.mxu0
      %s608 = scalar_lea.vmem %s5, 8
      %v609 = vld [vmem:[%s608] sm:$0xf]
      %610 = vrot.lane.b32.xlu0 %v476, 17
      %v611 = vpop.permute.xlu0 %610
      %612 = vrot.lane.b32.xlu0 %v477, 17
      %v613 = vpop.permute.xlu0 %612
      %614 = vrot.lane.b32.xlu0 %v478, 17
      %v615 = vpop.permute.xlu0 %614
      %616 = vrot.lane.b32.xlu0 %v479, 17
      %v617 = vpop.permute.xlu0 %616
      %vm618 = vcmask 138240
      %v619 = vsel %vm618, %v611, %v613
      %v620 = vsel %vm618, %v613, %v615
      %v621 = vsel %vm618, %v615, %v617
      %v623 = vsel %vm492, %v609, 0
      %v626 = vsel %vm496, %v619, 0
      %v629 = vsel %vm496, %v620, 0
      %v632 = vsel %vm496, %v621, 0
      %634 = vmatpush.bf16.msra.mxu0 0
      %635 = vmatpush.bf16.msra.mxu0 0
      %636 = vmatpush.bf16.msra.mxu0 0
      %637 = vmatpush.bf16.msra.mxu0 0
      %638 = vmatpush.bf16.msra.mxu0 0
      %639 = vmatpush.bf16.msra.mxu0 0
      %640 = vmatpush.bf16.msra.mxu0 0
      %641 = vmatpush.bf16.msra.mxu0 %v626
      %642 = vmatmul.bf16.gmra.mxu0 %v623
      %v643 = vpop.f32.mrf.mxu0
      %v644 = vadd.f32 0.0, %v643
      %v645 = vpop.f32.mrf.mxu0
      %646 = vdwg.mxu0
      %647 = vmatpush.bf16.msra.mxu0 0
      %648 = vmatpush.bf16.msra.mxu0 0
      %649 = vmatpush.bf16.msra.mxu0 0
      %650 = vmatpush.bf16.msra.mxu0 0
      %651 = vmatpush.bf16.msra.mxu0 0
      %652 = vmatpush.bf16.msra.mxu0 0
      %653 = vmatpush.bf16.msra.mxu0 0
      %654 = vmatpush.bf16.msra.mxu0 %v629
      %655 = vmatmul.bf16.gmra.mxu0 %v623
      %v656 = vpop.f32.mrf.mxu0
      %v657 = vadd.f32 0.0, %v656
      %v658 = vpop.f32.mrf.mxu0
      %659 = vdwg.mxu0
      %660 = vmatpush.bf16.msra.mxu0 0
      %661 = vmatpush.bf16.msra.mxu0 0
      %662 = vmatpush.bf16.msra.mxu0 0
      %663 = vmatpush.bf16.msra.mxu0 0
      %664 = vmatpush.bf16.msra.mxu0 0
      %665 = vmatpush.bf16.msra.mxu0 0
      %666 = vmatpush.bf16.msra.mxu0 0
      %667 = vmatpush.bf16.msra.mxu0 %v632
      %668 = vmatmul.bf16.gmra.mxu0 %v623
      %v669 = vpop.f32.mrf.mxu0
      %v670 = vadd.f32 0.0, %v669
      %v671 = vpop.f32.mrf.mxu0
      %672 = vdwg.mxu0
      %v673 = vadd.f32 %v579, %v644
      %v674 = vadd.f32 %v592, %v657
      %v675 = vadd.f32 %v605, %v670
      %s676 = scalar_lea.vmem %s5, 12
      %v677 = vld [vmem:[%s676] sm:$0xf]
      %678 = vrot.lane.b32.xlu0 %v476, 1
      %v679 = vpop.permute.xlu0 %678
      %680 = vrot.lane.b32.xlu0 %v477, 1
      %v681 = vpop.permute.xlu0 %680
      %682 = vrot.lane.b32.xlu0 %v478, 1
      %v683 = vpop.permute.xlu0 %682
      %684 = vrot.lane.b32.xlu0 %v479, 1
      %v685 = vpop.permute.xlu0 %684
      %vm686 = vcmask 7168
      %v687 = vsel %vm686, %v679, %v681
      %v688 = vsel %vm686, %v681, %v683
      %v689 = vsel %vm686, %v683, %v685
      %v691 = vsel %vm492, %v677, 0
      %v694 = vsel %vm496, %v687, 0
      %v697 = vsel %vm496, %v688, 0
      %v700 = vsel %vm496, %v689, 0
      %702 = vmatpush.bf16.msra.mxu0 0
      %703 = vmatpush.bf16.msra.mxu0 0
      %704 = vmatpush.bf16.msra.mxu0 0
      %705 = vmatpush.bf16.msra.mxu0 0
      %706 = vmatpush.bf16.msra.mxu0 0
      %707 = vmatpush.bf16.msra.mxu0 0
      %708 = vmatpush.bf16.msra.mxu0 0
      %709 = vmatpush.bf16.msra.mxu0 %v694
      %710 = vmatmul.bf16.gmra.mxu0 %v691
      %v711 = vpop.f32.mrf.mxu0
      %v712 = vadd.f32 0.0, %v711
      %v713 = vpop.f32.mrf.mxu0
      %714 = vdwg.mxu0
      %715 = vmatpush.bf16.msra.mxu0 0
      %716 = vmatpush.bf16.msra.mxu0 0
      %717 = vmatpush.bf16.msra.mxu0 0
      %718 = vmatpush.bf16.msra.mxu0 0
      %719 = vmatpush.bf16.msra.mxu0 0
      %720 = vmatpush.bf16.msra.mxu0 0
      %721 = vmatpush.bf16.msra.mxu0 0
      %722 = vmatpush.bf16.msra.mxu0 %v697
      %723 = vmatmul.bf16.gmra.mxu0 %v691
      %v724 = vpop.f32.mrf.mxu0
      %v725 = vadd.f32 0.0, %v724
      %v726 = vpop.f32.mrf.mxu0
      %727 = vdwg.mxu0
      %728 = vmatpush.bf16.msra.mxu0 0
      %729 = vmatpush.bf16.msra.mxu0 0
      %730 = vmatpush.bf16.msra.mxu0 0
      %731 = vmatpush.bf16.msra.mxu0 0
      %732 = vmatpush.bf16.msra.mxu0 0
      %733 = vmatpush.bf16.msra.mxu0 0
      %734 = vmatpush.bf16.msra.mxu0 0
      %735 = vmatpush.bf16.msra.mxu0 %v700
      %736 = vmatmul.bf16.gmra.mxu0 %v691
      %v737 = vpop.f32.mrf.mxu0
      %v738 = vadd.f32 0.0, %v737
      %v739 = vpop.f32.mrf.mxu0
      %740 = vdwg.mxu0
      %v741 = vadd.f32 %v673, %v712
      %v742 = vadd.f32 %v674, %v725
      %v743 = vadd.f32 %v675, %v738
      %s744 = scalar_lea.vmem %s5, 16
      %v745 = vld [vmem:[%s744] sm:$0xf]
      %v746 = vld [vmem:[#allocation2 + $0x4] sm:$0xff]
      %v747 = vld [vmem:[#allocation2 + $0xc] sm:$0xf]
      %v750 = vunpack.c.l.b16 %v746
      %v751 = vunpack.c.h.b16 %v746
      %v752 = vunpack.c.l.b16 %v747
      %v753 = vpack.c.b16 %v750, %v750
      %v754 = vpack.c.b16 %v751, %v751
      %v755 = vpack.c.b16 %v752, %v752
      %v757 = vsel %vm492, %v745, 0
      %v760 = vsel %vm496, %v753, 0
      %v763 = vsel %vm496, %v754, 0
      %v766 = vsel %vm496, %v755, 0
      %768 = vmatpush.bf16.msra.mxu0 0
      %769 = vmatpush.bf16.msra.mxu0 0
      %770 = vmatpush.bf16.msra.mxu0 0
      %771 = vmatpush.bf16.msra.mxu0 0
      %772 = vmatpush.bf16.msra.mxu0 0
      %773 = vmatpush.bf16.msra.mxu0 0
      %774 = vmatpush.bf16.msra.mxu0 0
      %775 = vmatpush.bf16.msra.mxu0 %v760
      %776 = vmatmul.bf16.gmra.mxu0 %v757
      %v777 = vpop.f32.mrf.mxu0
      %v778 = vadd.f32 0.0, %v777
      %v779 = vpop.f32.mrf.mxu0
      %780 = vdwg.mxu0
      %781 = vmatpush.bf16.msra.mxu0 0
      %782 = vmatpush.bf16.msra.mxu0 0
      %783 = vmatpush.bf16.msra.mxu0 0
      %784 = vmatpush.bf16.msra.mxu0 0
      %785 = vmatpush.bf16.msra.mxu0 0
      %786 = vmatpush.bf16.msra.mxu0 0
      %787 = vmatpush.bf16.msra.mxu0 0
      %788 = vmatpush.bf16.msra.mxu0 %v763
      %789 = vmatmul.bf16.gmra.mxu0 %v757
      %v790 = vpop.f32.mrf.mxu0
      %v791 = vadd.f32 0.0, %v790
      %v792 = vpop.f32.mrf.mxu0
      %793 = vdwg.mxu0
      %794 = vmatpush.bf16.msra.mxu0 0
      %795 = vmatpush.bf16.msra.mxu0 0
      %796 = vmatpush.bf16.msra.mxu0 0
      %797 = vmatpush.bf16.msra.mxu0 0
      %798 = vmatpush.bf16.msra.mxu0 0
      %799 = vmatpush.bf16.msra.mxu0 0
      %800 = vmatpush.bf16.msra.mxu0 0
      %801 = vmatpush.bf16.msra.mxu0 %v766
      %802 = vmatmul.bf16.gmra.mxu0 %v757
      %v803 = vpop.f32.mrf.mxu0
      %v804 = vadd.f32 0.0, %v803
      %v805 = vpop.f32.mrf.mxu0
      %806 = vdwg.mxu0
      %v807 = vadd.f32 %v741, %v778
      %v808 = vadd.f32 %v742, %v791
      %v809 = vadd.f32 %v743, %v804
      %s810 = scalar_lea.vmem %s5, 20
      %v811 = vld [vmem:[%s810] sm:$0xf]
      %v812 = vld [vmem:[#allocation2 + $0x4] sm:$0xff]
      %v813 = vld [vmem:[#allocation2 + $0xc] sm:$0xff]
      %v816 = vunpack.c.l.b16 %v812
      %v817 = vunpack.c.h.b16 %v812
      %v818 = vunpack.c.l.b16 %v813
      %v819 = vunpack.c.h.b16 %v813
      %v820 = vpack.c.b16 %v816, %v816
      %v821 = vpack.c.b16 %v817, %v817
      %v822 = vpack.c.b16 %v818, %v818
      %v823 = vpack.c.b16 %v819, %v819
      %824 = vrot.lane.b32.xlu0 %v820, 127
      %v825 = vpop.permute.xlu0 %824
      %826 = vrot.lane.b32.xlu0 %v821, 127
      %v827 = vpop.permute.xlu0 %826
      %828 = vrot.lane.b32.xlu0 %v822, 127
      %v829 = vpop.permute.xlu0 %828
      %830 = vrot.lane.b32.xlu0 %v823, 127
      %v831 = vpop.permute.xlu0 %830
      %vm832 = vcmask 1039360
      %v833 = vsel %vm832, %v825, %v827
      %v834 = vsel %vm832, %v827, %v829
      %v835 = vsel %vm832, %v829, %v831
      %v837 = vsel %vm492, %v811, 0
      %v840 = vsel %vm496, %v833, 0
      %v843 = vsel %vm496, %v834, 0
      %v846 = vsel %vm496, %v835, 0
      %848 = vmatpush.bf16.msra.mxu0 0
      %849 = vmatpush.bf16.msra.mxu0 0
      %850 = vmatpush.bf16.msra.mxu0 0
      %851 = vmatpush.bf16.msra.mxu0 0
      %852 = vmatpush.bf16.msra.mxu0 0
      %853 = vmatpush.bf16.msra.mxu0 0
      %854 = vmatpush.bf16.msra.mxu0 0
      %855 = vmatpush.bf16.msra.mxu0 %v840
      %856 = vmatmul.bf16.gmra.mxu0 %v837
      %v857 = vpop.f32.mrf.mxu0
      %v858 = vadd.f32 0.0, %v857
      %v859 = vpop.f32.mrf.mxu0
      %860 = vdwg.mxu0
      %861 = vmatpush.bf16.msra.mxu0 0
      %862 = vmatpush.bf16.msra.mxu0 0
      %863 = vmatpush.bf16.msra.mxu0 0
      %864 = vmatpush.bf16.msra.mxu0 0
      %865 = vmatpush.bf16.msra.mxu0 0
      %866 = vmatpush.bf16.msra.mxu0 0
      %867 = vmatpush.bf16.msra.mxu0 0
      %868 = vmatpush.bf16.msra.mxu0 %v843
      %869 = vmatmul.bf16.gmra.mxu0 %v837
      %v870 = vpop.f32.mrf.mxu0
      %v871 = vadd.f32 0.0, %v870
      %v872 = vpop.f32.mrf.mxu0
      %873 = vdwg.mxu0
      %874 = vmatpush.bf16.msra.mxu0 0
      %875 = vmatpush.bf16.msra.mxu0 0
      %876 = vmatpush.bf16.msra.mxu0 0
      %877 = vmatpush.bf16.msra.mxu0 0
      %878 = vmatpush.bf16.msra.mxu0 0
      %879 = vmatpush.bf16.msra.mxu0 0
      %880 = vmatpush.bf16.msra.mxu0 0
      %881 = vmatpush.bf16.msra.mxu0 %v846
      %882 = vmatmul.bf16.gmra.mxu0 %v837
      %v883 = vpop.f32.mrf.mxu0
      %v884 = vadd.f32 0.0, %v883
      %v885 = vpop.f32.mrf.mxu0
      %886 = vdwg.mxu0
      %v887 = vadd.f32 %v807, %v858
      %v888 = vadd.f32 %v808, %v871
      %v889 = vadd.f32 %v809, %v884
      %s890 = scalar_lea.vmem %s5, 24
      %v891 = vld [vmem:[%s890] sm:$0xf]
      %892 = vrot.lane.b32.xlu0 %v820, 111
      %v893 = vpop.permute.xlu0 %892
      %894 = vrot.lane.b32.xlu0 %v821, 111
      %v895 = vpop.permute.xlu0 %894
      %896 = vrot.lane.b32.xlu0 %v822, 111
      %v897 = vpop.permute.xlu0 %896
      %898 = vrot.lane.b32.xlu0 %v823, 111
      %v899 = vpop.permute.xlu0 %898
      %vm900 = vcmask 908288
      %v901 = vsel %vm900, %v893, %v895
      %v902 = vsel %vm900, %v895, %v897
      %v903 = vsel %vm900, %v897, %v899
      %v905 = vsel %vm492, %v891, 0
      %v908 = vsel %vm496, %v901, 0
      %v911 = vsel %vm496, %v902, 0
      %v914 = vsel %vm496, %v903, 0
      %916 = vmatpush.bf16.msra.mxu0 0
      %917 = vmatpush.bf16.msra.mxu0 0
      %918 = vmatpush.bf16.msra.mxu0 0
      %919 = vmatpush.bf16.msra.mxu0 0
      %920 = vmatpush.bf16.msra.mxu0 0
      %921 = vmatpush.bf16.msra.mxu0 0
      %922 = vmatpush.bf16.msra.mxu0 0
      %923 = vmatpush.bf16.msra.mxu0 %v908
      %924 = vmatmul.bf16.gmra.mxu0 %v905
      %v925 = vpop.f32.mrf.mxu0
      %v926 = vadd.f32 0.0, %v925
      %v927 = vpop.f32.mrf.mxu0
      %928 = vdwg.mxu0
      %929 = vmatpush.bf16.msra.mxu0 0
      %930 = vmatpush.bf16.msra.mxu0 0
      %931 = vmatpush.bf16.msra.mxu0 0
      %932 = vmatpush.bf16.msra.mxu0 0
      %933 = vmatpush.bf16.msra.mxu0 0
      %934 = vmatpush.bf16.msra.mxu0 0
      %935 = vmatpush.bf16.msra.mxu0 0
      %936 = vmatpush.bf16.msra.mxu0 %v911
      %937 = vmatmul.bf16.gmra.mxu0 %v905
      %v938 = vpop.f32.mrf.mxu0
      %v939 = vadd.f32 0.0, %v938
      %v940 = vpop.f32.mrf.mxu0
      %941 = vdwg.mxu0
      %942 = vmatpush.bf16.msra.mxu0 0
      %943 = vmatpush.bf16.msra.mxu0 0
      %944 = vmatpush.bf16.msra.mxu0 0
      %945 = vmatpush.bf16.msra.mxu0 0
      %946 = vmatpush.bf16.msra.mxu0 0
      %947 = vmatpush.bf16.msra.mxu0 0
      %948 = vmatpush.bf16.msra.mxu0 0
      %949 = vmatpush.bf16.msra.mxu0 %v914
      %950 = vmatmul.bf16.gmra.mxu0 %v905
      %v951 = vpop.f32.mrf.mxu0
      %v952 = vadd.f32 0.0, %v951
      %v953 = vpop.f32.mrf.mxu0
      %954 = vdwg.mxu0
      %v955 = vadd.f32 %v887, %v926
      %v956 = vadd.f32 %v888, %v939
      %v957 = vadd.f32 %v889, %v952
      %s958 = scalar_lea.vmem %s5, 28
      %v959 = vld [vmem:[%s958] sm:$0xf]
      %960 = vrot.lane.b32.xlu0 %v820, 110
      %v961 = vpop.permute.xlu0 %960
      %962 = vrot.lane.b32.xlu0 %v821, 110
      %v963 = vpop.permute.xlu0 %962
      %964 = vrot.lane.b32.xlu0 %v822, 110
      %v965 = vpop.permute.xlu0 %964
      %966 = vrot.lane.b32.xlu0 %v823, 110
      %v967 = vpop.permute.xlu0 %966
      %vm968 = vcmask 900096
      %v969 = vsel %vm968, %v961, %v963
      %v970 = vsel %vm968, %v963, %v965
      %v971 = vsel %vm968, %v965, %v967
      %v973 = vsel %vm492, %v959, 0
      %v976 = vsel %vm496, %v969, 0
      %v979 = vsel %vm496, %v970, 0
      %v982 = vsel %vm496, %v971, 0
      %984 = vmatpush.bf16.msra.mxu0 0
      %985 = vmatpush.bf16.msra.mxu0 0
      %986 = vmatpush.bf16.msra.mxu0 0
      %987 = vmatpush.bf16.msra.mxu0 0
      %988 = vmatpush.bf16.msra.mxu0 0
      %989 = vmatpush.bf16.msra.mxu0 0
      %990 = vmatpush.bf16.msra.mxu0 0
      %991 = vmatpush.bf16.msra.mxu0 %v976
      %992 = vmatmul.bf16.gmra.mxu0 %v973
      %v993 = vpop.f32.mrf.mxu0
      %v994 = vadd.f32 0.0, %v993
      %v995 = vpop.f32.mrf.mxu0
      %996 = vdwg.mxu0
      %997 = vmatpush.bf16.msra.mxu0 0
      %998 = vmatpush.bf16.msra.mxu0 0
      %999 = vmatpush.bf16.msra.mxu0 0
      %1000 = vmatpush.bf16.msra.mxu0 0
      %1001 = vmatpush.bf16.msra.mxu0 0
      %1002 = vmatpush.bf16.msra.mxu0 0
      %1003 = vmatpush.bf16.msra.mxu0 0
      %1004 = vmatpush.bf16.msra.mxu0 %v979
      %1005 = vmatmul.bf16.gmra.mxu0 %v973
      %v1006 = vpop.f32.mrf.mxu0
      %v1007 = vadd.f32 0.0, %v1006
      %v1008 = vpop.f32.mrf.mxu0
      %1009 = vdwg.mxu0
      %1010 = vmatpush.bf16.msra.mxu0 0
      %1011 = vmatpush.bf16.msra.mxu0 0
      %1012 = vmatpush.bf16.msra.mxu0 0
      %1013 = vmatpush.bf16.msra.mxu0 0
      %1014 = vmatpush.bf16.msra.mxu0 0
      %1015 = vmatpush.bf16.msra.mxu0 0
      %1016 = vmatpush.bf16.msra.mxu0 0
      %1017 = vmatpush.bf16.msra.mxu0 %v982
      %1018 = vmatmul.bf16.gmra.mxu0 %v973
      %v1019 = vpop.f32.mrf.mxu0
      %v1020 = vadd.f32 0.0, %v1019
      %v1021 = vpop.f32.mrf.mxu0
      %1022 = vdwg.mxu0
      %v1023 = vadd.f32 %v955, %v994
      %v1024 = vadd.f32 %v956, %v1007
      %v1025 = vadd.f32 %v957, %v1020
      %s1026 = scalar_lea.vmem %s5, 32
      %v1027 = vld [vmem:[%s1026] sm:$0xf]
      %1028 = vrot.lane.b32.xlu0 %v820, 109
      %v1029 = vpop.permute.xlu0 %1028
      %1030 = vrot.lane.b32.xlu0 %v821, 109
      %v1031 = vpop.permute.xlu0 %1030
      %1032 = vrot.lane.b32.xlu0 %v822, 109
      %v1033 = vpop.permute.xlu0 %1032
      %1034 = vrot.lane.b32.xlu0 %v823, 109
      %v1035 = vpop.permute.xlu0 %1034
      %vm1036 = vcmask 891904
      %v1037 = vsel %vm1036, %v1029, %v1031
      %v1038 = vsel %vm1036, %v1031, %v1033
      %v1039 = vsel %vm1036, %v1033, %v1035
      %v1041 = vsel %vm492, %v1027, 0
      %v1044 = vsel %vm496, %v1037, 0
      %v1047 = vsel %vm496, %v1038, 0
      %v1050 = vsel %vm496, %v1039, 0
      %1052 = vmatpush.bf16.msra.mxu0 0
      %1053 = vmatpush.bf16.msra.mxu0 0
      %1054 = vmatpush.bf16.msra.mxu0 0
      %1055 = vmatpush.bf16.msra.mxu0 0
      %1056 = vmatpush.bf16.msra.mxu0 0
      %1057 = vmatpush.bf16.msra.mxu0 0
      %1058 = vmatpush.bf16.msra.mxu0 0
      %1059 = vmatpush.bf16.msra.mxu0 %v1044
      %1060 = vmatmul.bf16.gmra.mxu0 %v1041
      %v1061 = vpop.f32.mrf.mxu0
      %v1062 = vadd.f32 0.0, %v1061
      %v1063 = vpop.f32.mrf.mxu0
      %1064 = vdwg.mxu0
      %1065 = vmatpush.bf16.msra.mxu0 0
      %1066 = vmatpush.bf16.msra.mxu0 0
      %1067 = vmatpush.bf16.msra.mxu0 0
      %1068 = vmatpush.bf16.msra.mxu0 0
      %1069 = vmatpush.bf16.msra.mxu0 0
      %1070 = vmatpush.bf16.msra.mxu0 0
      %1071 = vmatpush.bf16.msra.mxu0 0
      %1072 = vmatpush.bf16.msra.mxu0 %v1047
      %1073 = vmatmul.bf16.gmra.mxu0 %v1041
      %v1074 = vpop.f32.mrf.mxu0
      %v1075 = vadd.f32 0.0, %v1074
      %v1076 = vpop.f32.mrf.mxu0
      %1077 = vdwg.mxu0
      %1078 = vmatpush.bf16.msra.mxu0 0
      %1079 = vmatpush.bf16.msra.mxu0 0
      %1080 = vmatpush.bf16.msra.mxu0 0
      %1081 = vmatpush.bf16.msra.mxu0 0
      %1082 = vmatpush.bf16.msra.mxu0 0
      %1083 = vmatpush.bf16.msra.mxu0 0
      %1084 = vmatpush.bf16.msra.mxu0 0
      %1085 = vmatpush.bf16.msra.mxu0 %v1050
      %1086 = vmatmul.bf16.gmra.mxu0 %v1041
      %v1087 = vpop.f32.mrf.mxu0
      %v1088 = vadd.f32 0.0, %v1087
      %v1089 = vpop.f32.mrf.mxu0
      %1090 = vdwg.mxu0
      %v1091 = vadd.f32 %v1023, %v1062
      %v1092 = vadd.f32 %v1024, %v1075
      %v1093 = vadd.f32 %v1025, %v1088
      %v1094 = vld [vmem:[%s6] sm:$0xff]
      %1096 = vset.pattern.permute.xlu0 0
      %1097 = vperm.xlu0 %1096, %v1094
      %v1098 = vpop.permute.xlu0 %1097
      %v1100 = vadd.f32 %v1091, %v1098
      %v1101 = vadd.f32 %v1092, %v1098
      %v1102 = vadd.f32 %v1093, %v1098
      %v1103 = vld [vmem:[%s403] sm:$0xff]
      %v1104 = vld [vmem:[%s403 + $0x8] sm:$0xf]
      %v1105 = vld [vmem:[%s403 + $0xc] sm:$0xff]
      %v1106 = vld [vmem:[%s403 + $0x14] sm:$0xf]
      %v1107 = vld [vmem:[%s403 + $0x18] sm:$0xff]
      %v1108 = vld [vmem:[%s403 + $0x20] sm:$0xf]
      %v1109 = vld [vmem:[%s403 + $0x24] sm:$0xff]
      %v1110 = vld [vmem:[%s403 + $0x2c] sm:$0xf]
      %v1111 = vunpack.c.l.bf16 %v1103
      %v1112 = vunpack.c.h.bf16 %v1103
      %v1113 = vunpack.c.l.bf16 %v1104
      %v1114 = vunpack.c.l.bf16 %v1105
      %v1115 = vunpack.c.h.bf16 %v1105
      %v1116 = vunpack.c.l.bf16 %v1106
      %v1117 = vunpack.c.l.bf16 %v1107
      %v1118 = vunpack.c.h.bf16 %v1107
      %v1119 = vunpack.c.l.bf16 %v1108
      %v1120 = vunpack.c.l.bf16 %v1109
      %v1121 = vunpack.c.h.bf16 %v1109
      %v1122 = vunpack.c.l.bf16 %v1110
      %v1123 = vmax.f32 %v1111, %v1117
      %v1124 = vmax.f32 %v1114, %v1120
      %v1125 = vmax.f32 %v1123, %v1124
      %v1126 = vmax.f32 %v1112, %v1118
      %v1127 = vmax.f32 %v1115, %v1121
      %v1128 = vmax.f32 %v1126, %v1127
      %v1129 = vmax.f32 %v1113, %v1119
      %v1130 = vmax.f32 %v1116, %v1122
      %v1131 = vmax.f32 %v1129, %v1130
      %v1132 = vadd.f32 %v1125, %v1100
      %v1133 = vadd.f32 %v1128, %v1101
      %v1134 = vadd.f32 %v1131, %v1102
      %v1135 = vld [vmem:[%s7] sm:$0xff]
      %1137 = vset.pattern.permute.xlu0 0
      %1138 = vperm.xlu0 %1137, %v1135
      %v1139 = vpop.permute.xlu0 %1138
      %v1141 = vmul.f32 %v1132, %v1139
      %v1142 = vmul.f32 %v1133, %v1139
      %v1143 = vmul.f32 %v1134, %v1139
      %v1144 = vld [vmem:[%s8] sm:$0xff]
      %1146 = vset.pattern.permute.xlu0 0
      %1147 = vperm.xlu0 %1146, %v1144
      %v1148 = vpop.permute.xlu0 %1147
      %v1150 = vadd.f32 %v1141, %v1148
      %v1151 = vadd.f32 %v1142, %v1148
      %v1152 = vadd.f32 %v1143, %v1148
      %v1153 = vmax.f32 %v1150, 0.0
      %v1154 = vmax.f32 %v1151, 0.0
      %v1155 = vmax.f32 %v1152, 0.0
      %v1156 = vld [vmem:[%s9] sm:$0xff]
      %1158 = vset.pattern.permute.xlu0 0
      %1159 = vperm.xlu0 %1158, %v1156
      %v1160 = vpop.permute.xlu0 %1159
      %v1162 = vmul.f32 %v1153, %v1160
      %v1163 = vmul.f32 %v1154, %v1160
      %v1164 = vmul.f32 %v1155, %v1160
      %v1165 = vrot.slane %v1162, 4
      %v1166 = vadd.f32 %v1162, %v1165
      %v1167 = vrot.slane %v1166, 2
      %v1168 = vadd.f32 %v1166, %v1167
      %v1169 = vrot.slane %v1168, 1
      %v1170 = vadd.f32 %v1168, %v1169
      %v1171 = vrot.slane %v1163, 4
      %v1172 = vadd.f32 %v1163, %v1171
      %v1173 = vrot.slane %v1172, 2
      %v1174 = vadd.f32 %v1172, %v1173
      %v1175 = vrot.slane %v1174, 1
      %v1176 = vadd.f32 %v1174, %v1175
      %v1177 = vrot.slane %v1164, 4
      %v1178 = vadd.f32 %v1164, %v1177
      %v1179 = vrot.slane %v1178, 2
      %v1180 = vadd.f32 %v1178, %v1179
      %v1181 = vrot.slane %v1180, 1
      %v1182 = vadd.f32 %v1180, %v1181
      %v1183 = vld [vmem:[#allocation3] sm:$0x1]
      %1185 = vset.pattern.permute.xlu0 0
      %1186 = vperm.xlu0 %1185, %v1183
      %v1187 = vpop.permute.xlu0 %1186
      %v1189 = vperm.slane %v1187, 0
      %v1190 = vadd.f32 %v1170, %v1189
      %v1191 = vadd.f32 %v1176, %v1189
      %v1192 = vadd.f32 %v1182, %v1189
      %v1193 = vmul.f32 %v1190, %v411
      %v1194 = vmul.f32 %v1191, %v412
      %v1195 = vmul.f32 %v1192, %v413
      %1196 = vst [vmem:[%s408] sm:$0xff] %v1193
      %1197 = vst [vmem:[%s408 + $0x8] sm:$0xff] %v1194
      %1198 = vst [vmem:[%s408 + $0x10] sm:$0xff] %v1195
      %p1199 = scmp.lt.s32.totalorder %s24, 1
      %s1200 = scalar_select %p1199, %s24, 1
      %s1201 = smul.addr %s1200, 3
      %s1202 = smul.addr %s1201, 8
      %s1203 = scalar_lea.vmem %s11, %s1202
      // Predicated region
      $region65: #{attention_block_forward.3} parent=63 // pred_check
        %p1204 = pneg %p283
      $region66: #{attention_block_forward.3} parent=63 // pred_check_branch
        %1206 = sbr.rel (%p1204) target = $region68
      $region67: #{attention_block_forward.3} parent=63 // pred_region
        _
      $region68: #{attention_block_forward.3} parent=63 // pred_fallthru
        _
    $region64: #{attention_block_forward.3} parent=5 // pred_fallthru
      _
    %p1207 = scmp.le.s32.totalorder 2, %s19
    // Predicated region
    $region69: #{attention_block_forward.3} parent=5 // pred_check
      %p1208 = pneg %p1207
    $region70: #{attention_block_forward.3} parent=5 // pred_check_branch
      %1210 = sbr.rel (%p1208) target = $region72
    $region71: #{attention_block_forward.3} parent=5 // pred_region
      %s1211 = ssub.s32 %s19, 2
      // Predicated region
      $region73: #{attention_block_forward.3} parent=71 // pred_check
        %p1212 = pneg %p289
      $region74: #{attention_block_forward.3} parent=71 // pred_check_branch
        %1214 = sbr.rel (%p1212) target = $region76
      $region75: #{attention_block_forward.3} parent=71 // pred_region
        %p1215 = scmp.lt.s32.totalorder %s25, 1
        %s1216 = scalar_select %p1215, %s25, 1
        %s1217 = smul.addr %s1216, 3
        %s1218 = smul.addr %s1217, 8
        %s1219 = scalar_lea.vmem %s11, %s1218
      $region76: #{attention_block_forward.3} parent=71 // pred_fallthru
        _
    $region72: #{attention_block_forward.3} parent=5 // pred_fallthru
      _
  $region6: #{attention_block_forward.3} parent=0 // loop_footer
    %s23 = sadd.s32 1, %s19
  $region7: #{attention_block_forward.3} parent=0 // loop_footer_branch
    %18 = sbr.rel target = $region3
  $region8: #{attention_block_forward.3} parent=0 // loop_exit
    _

</llo_original>
